<compile_context>
chip_gen: v7x
topology: tpu7x:2x2x1
jax: 0.10.0
libtpu: 0.0.40
codegen_flags: <defaults>
</compile_context>

<pallas_src>
from functools import partial

import numpy as np

import jax
import jax.numpy as jnp
from jax.experimental import pallas as pl
from jax.experimental.pallas import tpu as pltpu


# ----------------------------- LeNet geometry ------------------------------
IN_HW = 32          # input spatial size (1 channel)
K = 5               # conv kernel size
C1, C2 = 6, 16      # conv output channels
C1_HW = IN_HW - K + 1          # 28
P1_HW = C1_HW // 2             # 14
C2_HW = P1_HW - K + 1          # 10
P2_HW = C2_HW // 2             # 5
FLAT = C2 * P2_HW * P2_HW      # 400

LANE = 128                     # padded lane width for compact activations
N1 = 256                       # padded conv1 output width (>= 28*6 = 168)
N2 = 256                       # padded conv2 output width (>= 10*16 = 160)


# ------------------------------ fused kernel -------------------------------

def cnnnet_kernel(x_ref, m1_ref, s1_ref, b1_ref, m2_ref, s2_ref, b2_ref,
                  fc1w_ref, fc1b_ref, fc2w_ref, fc2b_ref, fc3w_ref, fc3b_ref,
                  o_ref):
    """One program per B_TILE images.

    Frame layout: image b owns rows [b*32, b*32+32) of every activation;
    lanes are W*C with channels fastest.  Valid rows per image:
      conv1 out : rows o       (o  = 0..27)    pool1: rows 2*r1 (r1 = 0..13)
      conv2 out : rows 2*o2    (o2 = 0..9)     pool2: rows 4*r2 (r2 = 0..4)
      fc head   : row 0.
    All other rows hold finite garbage that is never read for valid results.
    """
    BR = x_ref.shape[0]                       # B_TILE * 32 (static)
    f32, bf16 = jnp.float32, jnp.bfloat16

    def shifted(a, k):
        # out[r] = a[r + k]  (cyclic; wrapped rows only ever feed garbage rows)
        return a if k == 0 else pltpu.roll(a, shift=BR - k, axis=0)

    # ---- conv1 (1->6, 5x5, valid) as 5 banded MXU matmuls -------------------
    xf = x_ref[...]                                             # [BR, 32] f32
    acc1 = jnp.dot(xf.astype(bf16), m1_ref[0], preferred_element_type=f32)
    for ki in range(1, K):
        acc1 = acc1 + jnp.dot(shifted(xf, ki).astype(bf16), m1_ref[ki],
                              preferred_element_type=f32)      # [BR, 256]

    # ---- pool1: 2x2 max via roll+max (XLU/VPU) + 1 lane-compaction matmul ---
    # relu(max(conv)+b) == max(relu(conv+b)) since bias is per-channel const.
    t = jnp.maximum(acc1, shifted(acc1, 1))                    # row-pair max
    t = jnp.maximum(t, pltpu.roll(t, shift=N1 - C1, axis=1))   # col-pair max
    h1 = jnp.maximum(jnp.dot(t.astype(bf16), s1_ref[...],
                             preferred_element_type=f32) + b1_ref[...], 0.0)
    # h1: [BR, 128] (84 valid lanes), pooled rows at 2*r1

    # ---- conv2 (6->16, 5x5, valid; input rows are 2 apart) ------------------
    acc2 = jnp.dot(h1.astype(bf16), m2_ref[0], preferred_element_type=f32)
    for ki in range(1, K):
        acc2 = acc2 + jnp.dot(shifted(h1, 2 * ki).astype(bf16), m2_ref[ki],
                              preferred_element_type=f32)      # [BR, 256]

    # ---- pool2 --------------------------------------------------------------
    t = jnp.maximum(acc2, shifted(acc2, 2))
    t = jnp.maximum(t, pltpu.roll(t, shift=N2 - C2, axis=1))
    h2 = jnp.maximum(jnp.dot(t.astype(bf16), s2_ref[...],
                             preferred_element_type=f32) + b2_ref[...], 0.0)
    # h2: [BR, 128] (80 valid lanes), pooled rows at 4*r2

    # ---- fc1 (400->120), batch-stacked: valid result lands on row 0/image ---
    z = jnp.dot(h2.astype(bf16), fc1w_ref[0], preferred_element_type=f32)
    for r2 in range(1, P2_HW):
        z = z + jnp.dot(shifted(h2, 4 * r2).astype(bf16), fc1w_ref[r2],
                        preferred_element_type=f32)
    z = jnp.maximum(z + fc1b_ref[...], 0.0)                    # [BR, 128]

    # ---- fc2 (120->84) + ReLU -----------------------------------------------
    z = jnp.maximum(jnp.dot(z.astype(bf16), fc2w_ref[...],
                            preferred_element_type=f32) + fc2b_ref[...], 0.0)

    # ---- fc3 (84->1), emitted as a lane-dense [1, BR] row, + sigmoid --------
    y = jax.lax.dot_general(fc3w_ref[...], z.astype(bf16),
                            (((1,), (1,)), ((), ())),
                            preferred_element_type=f32)        # [1, BR]
    y = y + fc3b_ref[...]
    # numerically stable sigmoid (tanh runs on the otherwise-idle EUP)
    o_ref[0] = 0.5 * (jnp.tanh(0.5 * y) + 1.0)


# --------------------------- pallas_call wrapper ----------------------------

def _const_spec(shape):
    """Full-array block, same block every grid step (stays VMEM-resident)."""
    n = len(shape)
    return pl.BlockSpec(shape, lambda t, _n=n: (0,) * _n)


@partial(jax.jit, static_argnames=("b_tile",))
def cnnnet_forward(prep, x, *, b_tile=8):
    """x: [B, 1, 32, 32] float32 -> [B, 1] sigmoid outputs."""
    B = x.shape[0]
    b_pad = -(-B // b_tile) * b_tile
    num_tiles = b_pad // b_tile
    BR = b_tile * IN_HW

    x3 = x.reshape(B, IN_HW, IN_HW)
    if b_pad != B:
        x3 = jnp.concatenate(
            [x3, jnp.zeros((b_pad - B, IN_HW, IN_HW), x3.dtype)], axis=0)
    xs = x3.reshape(b_pad * IN_HW, IN_HW)      # images stacked along rows

    operands = (
        xs,
        prep["m1"], prep["s1"], prep["b1"],
        prep["m2"], prep["s2"], prep["b2"],
        prep["fc1w"], prep["fc1b"], prep["fc2w"], prep["fc2b"],
        prep["fc3w"], prep["fc3b"],
    )
    in_specs = [pl.BlockSpec((BR, IN_HW), lambda t: (t, 0))]
    in_specs += [_const_spec(a.shape) for a in operands[1:]]

    # advisory cost estimate (helps XLA schedule around the custom call)
    mac_cols = (K * IN_HW * N1 + N1 * LANE + K * LANE * N2 + N2 * LANE
                + K * LANE * LANE + LANE * LANE + LANE)
    w_bytes = sum(int(np.prod(a.shape)) * a.dtype.itemsize
                  for a in operands[1:])
    cost = pl.CostEstimate(
        flops=int(2 * num_tiles * BR * mac_cols),
        transcendentals=int(num_tiles * BR),
        bytes_accessed=int(xs.size * 4 + w_bytes + num_tiles * BR * 4))

    out = pl.pallas_call(
        cnnnet_kernel,
        out_shape=jax.ShapeDtypeStruct((num_tiles, 1, BR), jnp.float32),
        grid=(num_tiles,),
        in_specs=in_specs,
        out_specs=pl.BlockSpec((1, 1, BR), lambda t: (t, 0, 0)),
        compiler_params=pltpu.CompilerParams(
            dimension_semantics=("parallel",)),
        cost_estimate=cost,
    )(*operands)

    # The valid per-image value sits at frame row 0 of each image, i.e. every
    # 32nd element of the flattened lane-dense output (XLA strided slice).
    return out.reshape(-1)[::IN_HW][:B].reshape(B, 1)


# ------------------------- one-time weight preparation ----------------------

def _pad_np(a, shape):
    out = np.zeros(shape, dtype=np.float32)
    out[tuple(slice(0, s) for s in a.shape)] = a
    return out


def _band_matrices(w, w_in, k_pad, n_pad):
    """Conv weight [Cout, Cin, k, k] -> k banded operands [k, k_pad, n_pad] so
    that  conv_out[row o] = sum_ki (act row o+ki) @ M[ki], with activations
    laid out as [H, W*Cin] (channels fastest)."""
    cout, cin, k, _ = w.shape
    ow = w_in - k + 1
    m = np.zeros((k, w_in, cin, ow, cout), dtype=np.float32)
    for ki in range(k):
        for kj in range(k):
            for o in range(ow):
                m[ki, o + kj, :, o, :] = w[:, :, ki, kj].T
    m = m.reshape(k, w_in * cin, ow * cout)
    return _pad_np(m, (k, k_pad, n_pad))


def _lane_pool_select(w, c, n_in, n_out):
    """0/1 matrix [n_in, n_out] compacting the even-phase pooled columns:
    input lane (2q)*c + ch  ->  output lane q*c + ch."""
    s = np.zeros((n_in, n_out), dtype=np.float32)
    for q in range(w // 2):
        for ch in range(c):
            s[(2 * q) * c + ch, q * c + ch] = 1.0
    return s


def prepare_params(params):
    """One-time reorder / zero-pad / bf16-pack of the weights for the kernel."""
    to_np = lambda a: np.asarray(jax.device_get(a), dtype=np.float32)
    bf = lambda a: jnp.asarray(a, dtype=jnp.bfloat16)
    f32 = lambda a: jnp.asarray(a, dtype=jnp.float32)

    # fc1 rows arrive in torch flatten order (c*25 + h*5 + w); re-permute to
    # the kernel's (h, w*16 + c) order, split by pooled row h, pad to 128x128.
    fc1 = to_np(params["fc1_w"]).reshape(C2, P2_HW, P2_HW, 120)
    fc1 = fc1.transpose(1, 2, 0, 3).reshape(P2_HW, P2_HW * C2, 120)
    fc1 = np.stack([_pad_np(fc1[h], (LANE, LANE)) for h in range(P2_HW)])

    return {
        "m1": bf(_band_matrices(to_np(params["conv1_w"]), IN_HW, IN_HW, N1)),
        "s1": bf(_lane_pool_select(C1_HW, C1, N1, LANE)),
        "b1": f32(_pad_np(np.tile(to_np(params["conv1_b"]), P1_HW)[None, :],
                          (1, LANE))),
        "m2": bf(_band_matrices(to_np(params["conv2_w"]), P1_HW, LANE, N2)),
        "s2": bf(_lane_pool_select(C2_HW, C2, N2, LANE)),
        "b2": f32(_pad_np(np.tile(to_np(params["conv2_b"]), P2_HW)[None, :],
                          (1, LANE))),
        "fc1w": bf(fc1),
        "fc1b": f32(_pad_np(to_np(params["fc1_b"]), (1, LANE))),
        "fc2w": bf(_pad_np(to_np(params["fc2_w"]), (LANE, LANE))),
        "fc2b": f32(_pad_np(to_np(params["fc2_b"]), (1, LANE))),
        "fc3w": bf(_pad_np(to_np(params["fc3_w"]).T, (1, LANE))),
        "fc3b": f32(to_np(params["fc3_b"])),
    }


# ----------------------------- parameter setup ------------------------------

def init_params(key):
    """PyTorch-layout params with the default U(-1/sqrt(fan_in), +..) init.
    FC weights are stored [in, out] (= torch weight.T)."""
    def uniform(k, shape, fan_in):
        bound = 1.0 / np.sqrt(float(fan_in))
        return jax.random.uniform(k, shape, jnp.float32, -bound, bound)

    ks = jax.random.split(key, 10)
    return {
        "conv1_w": uniform(ks[0], (C1, 1, K, K), 1 * K * K),
        "conv1_b": uniform(ks[1], (C1,), 1 * K * K),
        "conv2_w": uniform(ks[2], (C2, C1, K, K), C1 * K * K),
        "conv2_b": uniform(ks[3], (C2,), C1 * K * K),
        "fc1_w": uniform(ks[4], (FLAT, 120), FLAT),
        "fc1_b": uniform(ks[5], (1, 120), FLAT),
        "fc2_w": uniform(ks[6], (120, 84), 120),
        "fc2_b": uniform(ks[7], (1, 84), 120),
        "fc3_w": uniform(ks[8], (84, 1), 84),
        "fc3_b": uniform(ks[9], (1, 1), 84),
    }


# ----------------------------- pure-JAX reference ---------------------------

def cnnnet_reference(params, x):
    def conv(h, w, b):
        y = jax.lax.conv_general_dilated(
            h, w, window_strides=(1, 1), padding="VALID",
            dimension_numbers=("NCHW", "OIHW", "NCHW"))
        return y + b[None, :, None, None]

    def pool(h):
        return jax.lax.reduce_window(h, -jnp.inf, jax.lax.max,
                                     (1, 1, 2, 2), (1, 1, 2, 2), "VALID")

    h = pool(jax.nn.relu(conv(x, params["conv1_w"], params["conv1_b"])))
    h = pool(jax.nn.relu(conv(h, params["conv2_w"], params["conv2_b"])))
    h = h.reshape(h.shape[0], -1)
    h = jax.nn.relu(h @ params["fc1_w"] + params["fc1_b"])
    h = jax.nn.relu(h @ params["fc2_w"] + params["fc2_b"])
    return jax.nn.sigmoid(h @ params["fc3_w"] + params["fc3_b"])


# ---------------------------------- main ------------------------------------

if __name__ == "__main__":
    key = jax.random.PRNGKey(0)
    pkey, xkey = jax.random.split(key)
    params = init_params(pkey)
    prep = prepare_params(params)

    # LeNet geometry: 32x32 single-channel inputs.  batch=6 with B_TILE=4
    # exercises a 2-step ("parallel") grid plus the batch-padding path.
    x = jax.random.normal(xkey, (6, 1, IN_HW, IN_HW), dtype=jnp.float32)

    out = jax.block_until_ready(cnnnet_forward(prep, x, b_tile=4))
    ref = jax.block_until_ready(cnnnet_reference(params, x))

    assert out.shape == (6, 1)
    assert bool(jnp.all(jnp.isfinite(out)))
    assert bool(jnp.all((out >= 0.0) & (out <= 1.0)))          # sigmoid range
    # bf16 MXU inputs -> relaxed tolerance vs. the f32 reference.
    assert bool(jnp.allclose(out, ref, rtol=5e-2, atol=5e-3)), (
        f"max abs err = {float(jnp.max(jnp.abs(out - ref)))}")
    print("KERNEL_OK")
</pallas_src>

<mosaic_0001>
module attributes {stable_mosaic.version = 11 : i64} {
  func.func @cnnnet_kernel(%arg0: i32, %arg1: memref<128x32xf32, #tpu.memory_space<vmem>>, %arg2: memref<5x32x256xbf16, #tpu.memory_space<vmem>>, %arg3: memref<256x128xbf16, #tpu.memory_space<vmem>>, %arg4: memref<1x128xf32, #tpu.memory_space<vmem>>, %arg5: memref<5x128x256xbf16, #tpu.memory_space<vmem>>, %arg6: memref<256x128xbf16, #tpu.memory_space<vmem>>, %arg7: memref<1x128xf32, #tpu.memory_space<vmem>>, %arg8: memref<5x128x128xbf16, #tpu.memory_space<vmem>>, %arg9: memref<1x128xf32, #tpu.memory_space<vmem>>, %arg10: memref<128x128xbf16, #tpu.memory_space<vmem>>, %arg11: memref<1x128xf32, #tpu.memory_space<vmem>>, %arg12: memref<1x128xbf16, #tpu.memory_space<vmem>>, %arg13: memref<1x1xf32, #tpu.memory_space<vmem>>, %arg14: memref<1x1x128xf32, #tpu.memory_space<vmem>>) attributes {dimension_semantics = [#tpu.dimension_semantics<parallel>], iteration_bounds = array<i64: 2>, scalar_prefetch = 0 : i64, scratch_operands = 0 : i64, tpu.core_type = #tpu.core_type<tc>, window_params = [{transform_indices = @transform_0, window_bounds = array<i64: 128, 32>}, {pipeline_mode = #tpu.pipeline_mode<synchronous>, transform_indices = @transform_1, window_bounds = array<i64: 5, 32, 256>}, {pipeline_mode = #tpu.pipeline_mode<synchronous>, transform_indices = @transform_2, window_bounds = array<i64: 256, 128>}, {pipeline_mode = #tpu.pipeline_mode<synchronous>, transform_indices = @transform_3, window_bounds = array<i64: 1, 128>}, {pipeline_mode = #tpu.pipeline_mode<synchronous>, transform_indices = @transform_4, window_bounds = array<i64: 5, 128, 256>}, {pipeline_mode = #tpu.pipeline_mode<synchronous>, transform_indices = @transform_5, window_bounds = array<i64: 256, 128>}, {pipeline_mode = #tpu.pipeline_mode<synchronous>, transform_indices = @transform_6, window_bounds = array<i64: 1, 128>}, {pipeline_mode = #tpu.pipeline_mode<synchronous>, transform_indices = @transform_7, window_bounds = array<i64: 5, 128, 128>}, {pipeline_mode = #tpu.pipeline_mode<synchronous>, transform_indices = @transform_8, window_bounds = array<i64: 1, 128>}, {pipeline_mode = #tpu.pipeline_mode<synchronous>, transform_indices = @transform_9, window_bounds = array<i64: 128, 128>}, {pipeline_mode = #tpu.pipeline_mode<synchronous>, transform_indices = @transform_10, window_bounds = array<i64: 1, 128>}, {pipeline_mode = #tpu.pipeline_mode<synchronous>, transform_indices = @transform_11, window_bounds = array<i64: 1, 128>}, {pipeline_mode = #tpu.pipeline_mode<synchronous>, transform_indices = @transform_12, window_bounds = array<i64: 1, 1>}, {transform_indices = @transform_13, window_bounds = array<i64: 1, 1, 128>}]} {
    %c0 = arith.constant 0 : index
    %c0_0 = arith.constant 0 : index
    %0 = vector.load %arg1[%c0, %c0_0] : memref<128x32xf32, #tpu.memory_space<vmem>>, vector<128x32xf32>
    %1 = arith.truncf %0 : vector<128x32xf32> to vector<128x32xbf16>
    %c0_1 = arith.constant 0 : index
    %c0_2 = arith.constant 0 : index
    %c0_3 = arith.constant 0 : index
    %2 = vector.load %arg2[%c0_1, %c0_2, %c0_3] : memref<5x32x256xbf16, #tpu.memory_space<vmem>>, vector<1x32x256xbf16>
    %3 = vector.shape_cast %2 : vector<1x32x256xbf16> to vector<32x256xbf16>
    %cst = arith.constant dense<0.000000e+00> : vector<128x256xf32>
    %4 = tpu.matmul %1, %3, %cst {dimension_numbers = #tpu.dot_dimension_numbers<[1], [0], [0], [1], [0, 0, 1, 1], [], []>} : vector<128x32xbf16>, vector<32x256xbf16>, vector<128x256xf32> -> vector<128x256xf32>
    %c127_i32 = arith.constant 127 : i32
    %5 = tpu.dynamic_rotate %0 by %c127_i32 dim 0 : vector<128x32xf32>, i32 -> vector<128x32xf32>
    %6 = arith.truncf %5 : vector<128x32xf32> to vector<128x32xbf16>
    %c1 = arith.constant 1 : index
    %c0_4 = arith.constant 0 : index
    %c0_5 = arith.constant 0 : index
    %7 = vector.load %arg2[%c1, %c0_4, %c0_5] : memref<5x32x256xbf16, #tpu.memory_space<vmem>>, vector<1x32x256xbf16>
    %8 = vector.shape_cast %7 : vector<1x32x256xbf16> to vector<32x256xbf16>
    %cst_6 = arith.constant dense<0.000000e+00> : vector<128x256xf32>
    %9 = tpu.matmul %6, %8, %cst_6 {dimension_numbers = #tpu.dot_dimension_numbers<[1], [0], [0], [1], [0, 0, 1, 1], [], []>} : vector<128x32xbf16>, vector<32x256xbf16>, vector<128x256xf32> -> vector<128x256xf32>
    %10 = arith.addf %4, %9 : vector<128x256xf32>
    %c126_i32 = arith.constant 126 : i32
    %11 = tpu.dynamic_rotate %0 by %c126_i32 dim 0 : vector<128x32xf32>, i32 -> vector<128x32xf32>
    %12 = arith.truncf %11 : vector<128x32xf32> to vector<128x32xbf16>
    %c2 = arith.constant 2 : index
    %c0_7 = arith.constant 0 : index
    %c0_8 = arith.constant 0 : index
    %13 = vector.load %arg2[%c2, %c0_7, %c0_8] : memref<5x32x256xbf16, #tpu.memory_space<vmem>>, vector<1x32x256xbf16>
    %14 = vector.shape_cast %13 : vector<1x32x256xbf16> to vector<32x256xbf16>
    %cst_9 = arith.constant dense<0.000000e+00> : vector<128x256xf32>
    %15 = tpu.matmul %12, %14, %cst_9 {dimension_numbers = #tpu.dot_dimension_numbers<[1], [0], [0], [1], [0, 0, 1, 1], [], []>} : vector<128x32xbf16>, vector<32x256xbf16>, vector<128x256xf32> -> vector<128x256xf32>
    %16 = arith.addf %10, %15 : vector<128x256xf32>
    %c125_i32 = arith.constant 125 : i32
    %17 = tpu.dynamic_rotate %0 by %c125_i32 dim 0 : vector<128x32xf32>, i32 -> vector<128x32xf32>
    %18 = arith.truncf %17 : vector<128x32xf32> to vector<128x32xbf16>
    %c3 = arith.constant 3 : index
    %c0_10 = arith.constant 0 : index
    %c0_11 = arith.constant 0 : index
    %19 = vector.load %arg2[%c3, %c0_10, %c0_11] : memref<5x32x256xbf16, #tpu.memory_space<vmem>>, vector<1x32x256xbf16>
    %20 = vector.shape_cast %19 : vector<1x32x256xbf16> to vector<32x256xbf16>
    %cst_12 = arith.constant dense<0.000000e+00> : vector<128x256xf32>
    %21 = tpu.matmul %18, %20, %cst_12 {dimension_numbers = #tpu.dot_dimension_numbers<[1], [0], [0], [1], [0, 0, 1, 1], [], []>} : vector<128x32xbf16>, vector<32x256xbf16>, vector<128x256xf32> -> vector<128x256xf32>
    %22 = arith.addf %16, %21 : vector<128x256xf32>
    %c124_i32 = arith.constant 124 : i32
    %23 = tpu.dynamic_rotate %0 by %c124_i32 dim 0 : vector<128x32xf32>, i32 -> vector<128x32xf32>
    %24 = arith.truncf %23 : vector<128x32xf32> to vector<128x32xbf16>
    %c4 = arith.constant 4 : index
    %c0_13 = arith.constant 0 : index
    %c0_14 = arith.constant 0 : index
    %25 = vector.load %arg2[%c4, %c0_13, %c0_14] : memref<5x32x256xbf16, #tpu.memory_space<vmem>>, vector<1x32x256xbf16>
    %26 = vector.shape_cast %25 : vector<1x32x256xbf16> to vector<32x256xbf16>
    %cst_15 = arith.constant dense<0.000000e+00> : vector<128x256xf32>
    %27 = tpu.matmul %24, %26, %cst_15 {dimension_numbers = #tpu.dot_dimension_numbers<[1], [0], [0], [1], [0, 0, 1, 1], [], []>} : vector<128x32xbf16>, vector<32x256xbf16>, vector<128x256xf32> -> vector<128x256xf32>
    %28 = arith.addf %22, %27 : vector<128x256xf32>
    %c127_i32_16 = arith.constant 127 : i32
    %29 = tpu.dynamic_rotate %28 by %c127_i32_16 dim 0 : vector<128x256xf32>, i32 -> vector<128x256xf32>
    %30 = arith.maximumf %28, %29 : vector<128x256xf32>
    %c250_i32 = arith.constant 250 : i32
    %31 = tpu.dynamic_rotate %30 by %c250_i32 dim 1 : vector<128x256xf32>, i32 -> vector<128x256xf32>
    %32 = arith.maximumf %30, %31 : vector<128x256xf32>
    %33 = arith.truncf %32 : vector<128x256xf32> to vector<128x256xbf16>
    %c0_17 = arith.constant 0 : index
    %c0_18 = arith.constant 0 : index
    %34 = vector.load %arg3[%c0_17, %c0_18] : memref<256x128xbf16, #tpu.memory_space<vmem>>, vector<256x128xbf16>
    %cst_19 = arith.constant dense<0.000000e+00> : vector<128x128xf32>
    %35 = tpu.matmul %33, %34, %cst_19 {dimension_numbers = #tpu.dot_dimension_numbers<[1], [0], [0], [1], [0, 0, 1, 1], [], []>} : vector<128x256xbf16>, vector<256x128xbf16>, vector<128x128xf32> -> vector<128x128xf32>
    %c0_20 = arith.constant 0 : index
    %c0_21 = arith.constant 0 : index
    %36 = vector.load %arg4[%c0_20, %c0_21] : memref<1x128xf32, #tpu.memory_space<vmem>>, vector<1x128xf32>
    %37 = vector.broadcast %36 : vector<1x128xf32> to vector<128x128xf32>
    %38 = arith.addf %35, %37 : vector<128x128xf32>
    %cst_22 = arith.constant 0.000000e+00 : f32
    %39 = vector.broadcast %cst_22 : f32 to vector<128x128xf32>
    %40 = arith.maximumf %38, %39 : vector<128x128xf32>
    %41 = arith.truncf %40 : vector<128x128xf32> to vector<128x128xbf16>
    %c0_23 = arith.constant 0 : index
    %c0_24 = arith.constant 0 : index
    %c0_25 = arith.constant 0 : index
    %42 = vector.load %arg5[%c0_23, %c0_24, %c0_25] : memref<5x128x256xbf16, #tpu.memory_space<vmem>>, vector<1x128x256xbf16>
    %43 = vector.shape_cast %42 : vector<1x128x256xbf16> to vector<128x256xbf16>
    %cst_26 = arith.constant dense<0.000000e+00> : vector<128x256xf32>
    %44 = tpu.matmul %41, %43, %cst_26 {dimension_numbers = #tpu.dot_dimension_numbers<[1], [0], [0], [1], [0, 0, 1, 1], [], []>} : vector<128x128xbf16>, vector<128x256xbf16>, vector<128x256xf32> -> vector<128x256xf32>
    %c126_i32_27 = arith.constant 126 : i32
    %45 = tpu.dynamic_rotate %40 by %c126_i32_27 dim 0 : vector<128x128xf32>, i32 -> vector<128x128xf32>
    %46 = arith.truncf %45 : vector<128x128xf32> to vector<128x128xbf16>
    %c1_28 = arith.constant 1 : index
    %c0_29 = arith.constant 0 : index
    %c0_30 = arith.constant 0 : index
    %47 = vector.load %arg5[%c1_28, %c0_29, %c0_30] : memref<5x128x256xbf16, #tpu.memory_space<vmem>>, vector<1x128x256xbf16>
    %48 = vector.shape_cast %47 : vector<1x128x256xbf16> to vector<128x256xbf16>
    %cst_31 = arith.constant dense<0.000000e+00> : vector<128x256xf32>
    %49 = tpu.matmul %46, %48, %cst_31 {dimension_numbers = #tpu.dot_dimension_numbers<[1], [0], [0], [1], [0, 0, 1, 1], [], []>} : vector<128x128xbf16>, vector<128x256xbf16>, vector<128x256xf32> -> vector<128x256xf32>
    %50 = arith.addf %44, %49 : vector<128x256xf32>
    %c124_i32_32 = arith.constant 124 : i32
    %51 = tpu.dynamic_rotate %40 by %c124_i32_32 dim 0 : vector<128x128xf32>, i32 -> vector<128x128xf32>
    %52 = arith.truncf %51 : vector<128x128xf32> to vector<128x128xbf16>
    %c2_33 = arith.constant 2 : index
    %c0_34 = arith.constant 0 : index
    %c0_35 = arith.constant 0 : index
    %53 = vector.load %arg5[%c2_33, %c0_34, %c0_35] : memref<5x128x256xbf16, #tpu.memory_space<vmem>>, vector<1x128x256xbf16>
    %54 = vector.shape_cast %53 : vector<1x128x256xbf16> to vector<128x256xbf16>
    %cst_36 = arith.constant dense<0.000000e+00> : vector<128x256xf32>
    %55 = tpu.matmul %52, %54, %cst_36 {dimension_numbers = #tpu.dot_dimension_numbers<[1], [0], [0], [1], [0, 0, 1, 1], [], []>} : vector<128x128xbf16>, vector<128x256xbf16>, vector<128x256xf32> -> vector<128x256xf32>
    %56 = arith.addf %50, %55 : vector<128x256xf32>
    %c122_i32 = arith.constant 122 : i32
    %57 = tpu.dynamic_rotate %40 by %c122_i32 dim 0 : vector<128x128xf32>, i32 -> vector<128x128xf32>
    %58 = arith.truncf %57 : vector<128x128xf32> to vector<128x128xbf16>
    %c3_37 = arith.constant 3 : index
    %c0_38 = arith.constant 0 : index
    %c0_39 = arith.constant 0 : index
    %59 = vector.load %arg5[%c3_37, %c0_38, %c0_39] : memref<5x128x256xbf16, #tpu.memory_space<vmem>>, vector<1x128x256xbf16>
    %60 = vector.shape_cast %59 : vector<1x128x256xbf16> to vector<128x256xbf16>
    %cst_40 = arith.constant dense<0.000000e+00> : vector<128x256xf32>
    %61 = tpu.matmul %58, %60, %cst_40 {dimension_numbers = #tpu.dot_dimension_numbers<[1], [0], [0], [1], [0, 0, 1, 1], [], []>} : vector<128x128xbf16>, vector<128x256xbf16>, vector<128x256xf32> -> vector<128x256xf32>
    %62 = arith.addf %56, %61 : vector<128x256xf32>
    %c120_i32 = arith.constant 120 : i32
    %63 = tpu.dynamic_rotate %40 by %c120_i32 dim 0 : vector<128x128xf32>, i32 -> vector<128x128xf32>
    %64 = arith.truncf %63 : vector<128x128xf32> to vector<128x128xbf16>
    %c4_41 = arith.constant 4 : index
    %c0_42 = arith.constant 0 : index
    %c0_43 = arith.constant 0 : index
    %65 = vector.load %arg5[%c4_41, %c0_42, %c0_43] : memref<5x128x256xbf16, #tpu.memory_space<vmem>>, vector<1x128x256xbf16>
    %66 = vector.shape_cast %65 : vector<1x128x256xbf16> to vector<128x256xbf16>
    %cst_44 = arith.constant dense<0.000000e+00> : vector<128x256xf32>
    %67 = tpu.matmul %64, %66, %cst_44 {dimension_numbers = #tpu.dot_dimension_numbers<[1], [0], [0], [1], [0, 0, 1, 1], [], []>} : vector<128x128xbf16>, vector<128x256xbf16>, vector<128x256xf32> -> vector<128x256xf32>
    %68 = arith.addf %62, %67 : vector<128x256xf32>
    %c126_i32_45 = arith.constant 126 : i32
    %69 = tpu.dynamic_rotate %68 by %c126_i32_45 dim 0 : vector<128x256xf32>, i32 -> vector<128x256xf32>
    %70 = arith.maximumf %68, %69 : vector<128x256xf32>
    %c240_i32 = arith.constant 240 : i32
    %71 = tpu.dynamic_rotate %70 by %c240_i32 dim 1 : vector<128x256xf32>, i32 -> vector<128x256xf32>
    %72 = arith.maximumf %70, %71 : vector<128x256xf32>
    %73 = arith.truncf %72 : vector<128x256xf32> to vector<128x256xbf16>
    %c0_46 = arith.constant 0 : index
    %c0_47 = arith.constant 0 : index
    %74 = vector.load %arg6[%c0_46, %c0_47] : memref<256x128xbf16, #tpu.memory_space<vmem>>, vector<256x128xbf16>
    %cst_48 = arith.constant dense<0.000000e+00> : vector<128x128xf32>
    %75 = tpu.matmul %73, %74, %cst_48 {dimension_numbers = #tpu.dot_dimension_numbers<[1], [0], [0], [1], [0, 0, 1, 1], [], []>} : vector<128x256xbf16>, vector<256x128xbf16>, vector<128x128xf32> -> vector<128x128xf32>
    %c0_49 = arith.constant 0 : index
    %c0_50 = arith.constant 0 : index
    %76 = vector.load %arg7[%c0_49, %c0_50] : memref<1x128xf32, #tpu.memory_space<vmem>>, vector<1x128xf32>
    %77 = vector.broadcast %76 : vector<1x128xf32> to vector<128x128xf32>
    %78 = arith.addf %75, %77 : vector<128x128xf32>
    %cst_51 = arith.constant 0.000000e+00 : f32
    %79 = vector.broadcast %cst_51 : f32 to vector<128x128xf32>
    %80 = arith.maximumf %78, %79 : vector<128x128xf32>
    %81 = arith.truncf %80 : vector<128x128xf32> to vector<128x128xbf16>
    %c0_52 = arith.constant 0 : index
    %c0_53 = arith.constant 0 : index
    %c0_54 = arith.constant 0 : index
    %82 = vector.load %arg8[%c0_52, %c0_53, %c0_54] : memref<5x128x128xbf16, #tpu.memory_space<vmem>>, vector<1x128x128xbf16>
    %83 = vector.shape_cast %82 : vector<1x128x128xbf16> to vector<128x128xbf16>
    %cst_55 = arith.constant dense<0.000000e+00> : vector<128x128xf32>
    %84 = tpu.matmul %81, %83, %cst_55 {dimension_numbers = #tpu.dot_dimension_numbers<[1], [0], [0], [1], [0, 0, 1, 1], [], []>} : vector<128x128xbf16>, vector<128x128xbf16>, vector<128x128xf32> -> vector<128x128xf32>
    %c124_i32_56 = arith.constant 124 : i32
    %85 = tpu.dynamic_rotate %80 by %c124_i32_56 dim 0 : vector<128x128xf32>, i32 -> vector<128x128xf32>
    %86 = arith.truncf %85 : vector<128x128xf32> to vector<128x128xbf16>
    %c1_57 = arith.constant 1 : index
    %c0_58 = arith.constant 0 : index
    %c0_59 = arith.constant 0 : index
    %87 = vector.load %arg8[%c1_57, %c0_58, %c0_59] : memref<5x128x128xbf16, #tpu.memory_space<vmem>>, vector<1x128x128xbf16>
    %88 = vector.shape_cast %87 : vector<1x128x128xbf16> to vector<128x128xbf16>
    %cst_60 = arith.constant dense<0.000000e+00> : vector<128x128xf32>
    %89 = tpu.matmul %86, %88, %cst_60 {dimension_numbers = #tpu.dot_dimension_numbers<[1], [0], [0], [1], [0, 0, 1, 1], [], []>} : vector<128x128xbf16>, vector<128x128xbf16>, vector<128x128xf32> -> vector<128x128xf32>
    %90 = arith.addf %84, %89 : vector<128x128xf32>
    %c120_i32_61 = arith.constant 120 : i32
    %91 = tpu.dynamic_rotate %80 by %c120_i32_61 dim 0 : vector<128x128xf32>, i32 -> vector<128x128xf32>
    %92 = arith.truncf %91 : vector<128x128xf32> to vector<128x128xbf16>
    %c2_62 = arith.constant 2 : index
    %c0_63 = arith.constant 0 : index
    %c0_64 = arith.constant 0 : index
    %93 = vector.load %arg8[%c2_62, %c0_63, %c0_64] : memref<5x128x128xbf16, #tpu.memory_space<vmem>>, vector<1x128x128xbf16>
    %94 = vector.shape_cast %93 : vector<1x128x128xbf16> to vector<128x128xbf16>
    %cst_65 = arith.constant dense<0.000000e+00> : vector<128x128xf32>
    %95 = tpu.matmul %92, %94, %cst_65 {dimension_numbers = #tpu.dot_dimension_numbers<[1], [0], [0], [1], [0, 0, 1, 1], [], []>} : vector<128x128xbf16>, vector<128x128xbf16>, vector<128x128xf32> -> vector<128x128xf32>
    %96 = arith.addf %90, %95 : vector<128x128xf32>
    %c116_i32 = arith.constant 116 : i32
    %97 = tpu.dynamic_rotate %80 by %c116_i32 dim 0 : vector<128x128xf32>, i32 -> vector<128x128xf32>
    %98 = arith.truncf %97 : vector<128x128xf32> to vector<128x128xbf16>
    %c3_66 = arith.constant 3 : index
    %c0_67 = arith.constant 0 : index
    %c0_68 = arith.constant 0 : index
    %99 = vector.load %arg8[%c3_66, %c0_67, %c0_68] : memref<5x128x128xbf16, #tpu.memory_space<vmem>>, vector<1x128x128xbf16>
    %100 = vector.shape_cast %99 : vector<1x128x128xbf16> to vector<128x128xbf16>
    %cst_69 = arith.constant dense<0.000000e+00> : vector<128x128xf32>
    %101 = tpu.matmul %98, %100, %cst_69 {dimension_numbers = #tpu.dot_dimension_numbers<[1], [0], [0], [1], [0, 0, 1, 1], [], []>} : vector<128x128xbf16>, vector<128x128xbf16>, vector<128x128xf32> -> vector<128x128xf32>
    %102 = arith.addf %96, %101 : vector<128x128xf32>
    %c112_i32 = arith.constant 112 : i32
    %103 = tpu.dynamic_rotate %80 by %c112_i32 dim 0 : vector<128x128xf32>, i32 -> vector<128x128xf32>
    %104 = arith.truncf %103 : vector<128x128xf32> to vector<128x128xbf16>
    %c4_70 = arith.constant 4 : index
    %c0_71 = arith.constant 0 : index
    %c0_72 = arith.constant 0 : index
    %105 = vector.load %arg8[%c4_70, %c0_71, %c0_72] : memref<5x128x128xbf16, #tpu.memory_space<vmem>>, vector<1x128x128xbf16>
    %106 = vector.shape_cast %105 : vector<1x128x128xbf16> to vector<128x128xbf16>
    %cst_73 = arith.constant dense<0.000000e+00> : vector<128x128xf32>
    %107 = tpu.matmul %104, %106, %cst_73 {dimension_numbers = #tpu.dot_dimension_numbers<[1], [0], [0], [1], [0, 0, 1, 1], [], []>} : vector<128x128xbf16>, vector<128x128xbf16>, vector<128x128xf32> -> vector<128x128xf32>
    %108 = arith.addf %102, %107 : vector<128x128xf32>
    %c0_74 = arith.constant 0 : index
    %c0_75 = arith.constant 0 : index
    %109 = vector.load %arg9[%c0_74, %c0_75] : memref<1x128xf32, #tpu.memory_space<vmem>>, vector<1x128xf32>
    %110 = vector.broadcast %109 : vector<1x128xf32> to vector<128x128xf32>
    %111 = arith.addf %108, %110 : vector<128x128xf32>
    %cst_76 = arith.constant 0.000000e+00 : f32
    %112 = vector.broadcast %cst_76 : f32 to vector<128x128xf32>
    %113 = arith.maximumf %111, %112 : vector<128x128xf32>
    %114 = arith.truncf %113 : vector<128x128xf32> to vector<128x128xbf16>
    %c0_77 = arith.constant 0 : index
    %c0_78 = arith.constant 0 : index
    %115 = vector.load %arg10[%c0_77, %c0_78] : memref<128x128xbf16, #tpu.memory_space<vmem>>, vector<128x128xbf16>
    %cst_79 = arith.constant dense<0.000000e+00> : vector<128x128xf32>
    %116 = tpu.matmul %114, %115, %cst_79 {dimension_numbers = #tpu.dot_dimension_numbers<[1], [0], [0], [1], [0, 0, 1, 1], [], []>} : vector<128x128xbf16>, vector<128x128xbf16>, vector<128x128xf32> -> vector<128x128xf32>
    %c0_80 = arith.constant 0 : index
    %c0_81 = arith.constant 0 : index
    %117 = vector.load %arg11[%c0_80, %c0_81] : memref<1x128xf32, #tpu.memory_space<vmem>>, vector<1x128xf32>
    %118 = vector.broadcast %117 : vector<1x128xf32> to vector<128x128xf32>
    %119 = arith.addf %116, %118 : vector<128x128xf32>
    %cst_82 = arith.constant 0.000000e+00 : f32
    %120 = vector.broadcast %cst_82 : f32 to vector<128x128xf32>
    %121 = arith.maximumf %119, %120 : vector<128x128xf32>
    %c0_83 = arith.constant 0 : index
    %c0_84 = arith.constant 0 : index
    %122 = vector.load %arg12[%c0_83, %c0_84] : memref<1x128xbf16, #tpu.memory_space<vmem>>, vector<1x128xbf16>
    %123 = arith.truncf %121 : vector<128x128xf32> to vector<128x128xbf16>
    %cst_85 = arith.constant dense<0.000000e+00> : vector<1x128xf32>
    %124 = tpu.matmul %122, %123, %cst_85 {dimension_numbers = #tpu.dot_dimension_numbers<[1], [1], [0], [0], [0, 0, 1, 0], [], []>} : vector<1x128xbf16>, vector<128x128xbf16>, vector<1x128xf32> -> vector<1x128xf32>
    %c0_86 = arith.constant 0 : index
    %c0_87 = arith.constant 0 : index
    %125 = vector.load %arg13[%c0_86, %c0_87] : memref<1x1xf32, #tpu.memory_space<vmem>>, vector<1x1xf32>
    %126 = vector.broadcast %125 : vector<1x1xf32> to vector<1x128xf32>
    %127 = arith.addf %124, %126 : vector<1x128xf32>
    %cst_88 = arith.constant 5.000000e-01 : f32
    %128 = vector.broadcast %cst_88 : f32 to vector<1x128xf32>
    %129 = arith.mulf %128, %127 : vector<1x128xf32>
    %130 = math.tanh %129 : vector<1x128xf32>
    %cst_89 = arith.constant 1.000000e+00 : f32
    %131 = vector.broadcast %cst_89 : f32 to vector<1x128xf32>
    %132 = arith.addf %130, %131 : vector<1x128xf32>
    %cst_90 = arith.constant 5.000000e-01 : f32
    %133 = vector.broadcast %cst_90 : f32 to vector<1x128xf32>
    %134 = arith.mulf %133, %132 : vector<1x128xf32>
    %c0_91 = arith.constant 0 : index
    %c0_92 = arith.constant 0 : index
    %c0_93 = arith.constant 0 : index
    %135 = vector.load %arg14[%c0_91, %c0_92, %c0_93] : memref<1x1x128xf32, #tpu.memory_space<vmem>>, vector<1x1x128xf32>
    %136 = vector.shape_cast %135 : vector<1x1x128xf32> to vector<1x128xf32>
    %137 = vector.shape_cast %134 : vector<1x128xf32> to vector<1x1x128xf32>
    tpu.vector_store %arg14[%c0_91, %c0_92, %c0_93], %137 {strides = array<i32>} : memref<1x1x128xf32, #tpu.memory_space<vmem>>, vector<1x1x128xf32>,
    return
  }
  func.func @transform_0(%arg0: i32) -> (i32, i32) {
    %c0_i32 = arith.constant 0 : i32
    %c0_i32_0 = arith.constant 0 : i32
    return %arg0, %c0_i32 : i32, i32
  }
  func.func @transform_1(%arg0: i32) -> (i32, i32, i32) {
    %c0_i32 = arith.constant 0 : i32
    %c0_i32_0 = arith.constant 0 : i32
    %c0_i32_1 = arith.constant 0 : i32
    %c0_i32_2 = arith.constant 0 : i32
    return %c0_i32, %c0_i32_0, %c0_i32_1 : i32, i32, i32
  }
  func.func @transform_2(%arg0: i32) -> (i32, i32) {
    %c0_i32 = arith.constant 0 : i32
    %c0_i32_0 = arith.constant 0 : i32
    %c0_i32_1 = arith.constant 0 : i32
    return %c0_i32, %c0_i32_0 : i32, i32
  }
  func.func @transform_3(%arg0: i32) -> (i32, i32) {
    %c0_i32 = arith.constant 0 : i32
    %c0_i32_0 = arith.constant 0 : i32
    %c0_i32_1 = arith.constant 0 : i32
    return %c0_i32, %c0_i32_0 : i32, i32
  }
  func.func @transform_4(%arg0: i32) -> (i32, i32, i32) {
    %c0_i32 = arith.constant 0 : i32
    %c0_i32_0 = arith.constant 0 : i32
    %c0_i32_1 = arith.constant 0 : i32
    %c0_i32_2 = arith.constant 0 : i32
    return %c0_i32, %c0_i32_0, %c0_i32_1 : i32, i32, i32
  }
  func.func @transform_5(%arg0: i32) -> (i32, i32) {
    %c0_i32 = arith.constant 0 : i32
    %c0_i32_0 = arith.constant 0 : i32
    %c0_i32_1 = arith.constant 0 : i32
    return %c0_i32, %c0_i32_0 : i32, i32
  }
  func.func @transform_6(%arg0: i32) -> (i32, i32) {
    %c0_i32 = arith.constant 0 : i32
    %c0_i32_0 = arith.constant 0 : i32
    %c0_i32_1 = arith.constant 0 : i32
    return %c0_i32, %c0_i32_0 : i32, i32
  }
  func.func @transform_7(%arg0: i32) -> (i32, i32, i32) {
    %c0_i32 = arith.constant 0 : i32
    %c0_i32_0 = arith.constant 0 : i32
    %c0_i32_1 = arith.constant 0 : i32
    %c0_i32_2 = arith.constant 0 : i32
    return %c0_i32, %c0_i32_0, %c0_i32_1 : i32, i32, i32
  }
  func.func @transform_8(%arg0: i32) -> (i32, i32) {
    %c0_i32 = arith.constant 0 : i32
    %c0_i32_0 = arith.constant 0 : i32
    %c0_i32_1 = arith.constant 0 : i32
    return %c0_i32, %c0_i32_0 : i32, i32
  }
  func.func @transform_9(%arg0: i32) -> (i32, i32) {
    %c0_i32 = arith.constant 0 : i32
    %c0_i32_0 = arith.constant 0 : i32
    %c0_i32_1 = arith.constant 0 : i32
    return %c0_i32, %c0_i32_0 : i32, i32
  }
  func.func @transform_10(%arg0: i32) -> (i32, i32) {
    %c0_i32 = arith.constant 0 : i32
    %c0_i32_0 = arith.constant 0 : i32
    %c0_i32_1 = arith.constant 0 : i32
    return %c0_i32, %c0_i32_0 : i32, i32
  }
  func.func @transform_11(%arg0: i32) -> (i32, i32) {
    %c0_i32 = arith.constant 0 : i32
    %c0_i32_0 = arith.constant 0 : i32
    %c0_i32_1 = arith.constant 0 : i32
    return %c0_i32, %c0_i32_0 : i32, i32
  }
  func.func @transform_12(%arg0: i32) -> (i32, i32) {
    %c0_i32 = arith.constant 0 : i32
    %c0_i32_0 = arith.constant 0 : i32
    %c0_i32_1 = arith.constant 0 : i32
    return %c0_i32, %c0_i32_0 : i32, i32
  }
  func.func @transform_13(%arg0: i32) -> (i32, i32, i32) {
    %c0_i32 = arith.constant 0 : i32
    %c0_i32_0 = arith.constant 0 : i32
    %c0_i32_1 = arith.constant 0 : i32
    return %arg0, %c0_i32, %c0_i32_0 : i32, i32, i32
  }
}

</mosaic_0001>

<llo_original>
// kernel: cnnnet_forward.1
$region0: #{cnnnet_forward.1}
  #allocation0 [shape = 'u32[]', space=smem, size = 0x4, offset = 0x4, fixed_abs, tag = 'smem constant byte address 0x4 - core index']
  #allocation1 [shape = 'u32[144,128]{1,0:T(1,128)}', space=vmem, size = 0x12000, scoped, tag = 'internal scratch']
  #allocation2 [shape = 'f32[1,1]{1,0:T(1,128)S(1)}', space=vmem, size = 0x200, scoped, tag = 'scoped memory for cnnnet_forward.1']
  %s0 = inlined_call_operand.vmem [shape: f32[256,32], index: 0, kind: input, shape index: {}]
  %s1 = inlined_call_operand.vmem [shape: bf16[5,32,256], index: 1, kind: input, shape index: {}]
  %s2 = inlined_call_operand.hbm [shape: bf16[256,128], index: 2, kind: input, shape index: {}]
  %s3 = inlined_call_operand.vmem [shape: f32[1,128], index: 3, kind: input, shape index: {}]
  %s4 = inlined_call_operand.hbm [shape: bf16[5,128,256], index: 4, kind: input, shape index: {}]
  %s5 = inlined_call_operand.hbm [shape: bf16[256,128], index: 5, kind: input, shape index: {}]
  %s6 = inlined_call_operand.vmem [shape: f32[1,128], index: 6, kind: input, shape index: {}]
  %s7 = inlined_call_operand.vmem [shape: bf16[5,128,128], index: 7, kind: input, shape index: {}]
  %s8 = inlined_call_operand.vmem [shape: f32[1,128], index: 8, kind: input, shape index: {}]
  %s9 = inlined_call_operand.hbm [shape: bf16[128,128], index: 9, kind: input, shape index: {}]
  %s10 = inlined_call_operand.hbm [shape: f32[1,128], index: 10, kind: input, shape index: {}]
  %s11 = inlined_call_operand.hbm [shape: bf16[1,128], index: 11, kind: input, shape index: {}]
  %s12 = inlined_call_operand.<no memory space> [shape: f32[1,1], index: 12, kind: input, shape index: {}]
  %s13 = inlined_call_operand.vmem [shape: f32[2,1,128], index: 13, kind: output, shape index: {}]
  %s14 = sld [smem:[#allocation0]]
  $region109: #{cnnnet_forward.1} parent=0
    _
  %s16 = ssub.s32 1, %s14
  %s17 = scalar_select 0, %s16, %s14
  %v18 = vstv %s12
  %19 = vst [vmem:[#allocation2] sm:$0x1] %v18
  $region1: #{cnnnet_forward.1} parent=0
    #allocation3 [shape = 'u8[65536]{0}', space=vmem, size = 0x10000, scoped, tag = 'input window, operand 2, single buffered']
    #allocation4 [shape = 's32[2]{0}', space=sflag, size = 0x8, scoped, tag = 'scoped memory for cnnnet_forward.1']
    #allocation5 [shape = 'u8[327680]{0}', space=vmem, size = 0x50000, scoped, tag = 'input window, operand 4, single buffered']
    #allocation6 [shape = 's32[1]{0}', space=sflag, size = 0x4, scoped, tag = 'scoped memory for cnnnet_forward.1']
    #allocation7 [shape = 'u8[65536]{0}', space=vmem, size = 0x10000, scoped, tag = 'input window, operand 5, single buffered']
    #allocation8 [shape = 'u8[32768]{0}', space=vmem, size = 0x8000, scoped, tag = 'input window, operand 9, single buffered']
    #allocation9 [shape = 's32[1]{0}', space=sflag, size = 0x4, scoped, tag = 'scoped memory for cnnnet_forward.1']
    #allocation10 [shape = 'u8[512]{0}', space=vmem, size = 0x400, scoped, tag = 'input window, operand 10, single buffered']
    #allocation11 [shape = 'u8[512]{0}', space=vmem, size = 0x400, scoped, tag = 'input window, operand 11, single buffered']
    #allocation12 [shape = 's32[1]{0}', space=sflag, size = 0x4, scoped, tag = 'scoped memory for cnnnet_forward.1']
    %20 = vsyncpa [#allocation4], 0
    %21 = vsyncpa [#allocation6], 0
    %22 = vsyncpa [#allocation9], 0
    %23 = vsyncpa [#allocation12], 0
    loop: start=0, step=1, limit=4
    $region2: #{cnnnet_forward.1} parent=1 // loop_pre_header
      _
    $region3: #{cnnnet_forward.1} parent=1 // loop_header
      %s25 = sphi 0, %s29
      %p26 = scmp.ge.s32.totalorder %s25, 4
      %s35 = sphi 0, %s37
      %s38 = sphi 0, %s35
      %s39 = sphi 0, %s38
      %s55 = sphi 0, %s39
      %s59 = sphi 0, %s59
      %s61 = sphi 0, %s59
      %s62 = sphi 0, %s61
      %s76 = sphi 0, %s62
      %s80 = sphi 0, %s80
      %s82 = sphi 0, %s80
      %s83 = sphi 0, %s82
      %s97 = sphi 0, %s83
      %s101 = sphi 0, %s101
      %s103 = sphi 0, %s101
      %s104 = sphi 0, %s103
      %s118 = sphi 0, %s104
      %s122 = sphi 0, %s122
      %s124 = sphi 0, %s122
      %s125 = sphi 0, %s124
      %s139 = sphi 0, %s125
      %s143 = sphi 0, %s143
      %s145 = sphi 0, %s143
      %s146 = sphi 0, %s145
      %s160 = sphi 0, %s146
      %s164 = sphi 0, %s164
      %s166 = sphi 0, %s164
      %s167 = sphi 0, %s166
      %s181 = sphi 0, %s167
      %s185 = sphi 0, %s185
      %s187 = sphi 0, %s185
      %s188 = sphi 0, %s187
      %s202 = sphi 0, %s188
      %s206 = sphi 0, %s206
      %s208 = sphi 0, %s206
      %s209 = sphi 0, %s208
      %s223 = sphi 0, %s209
      %s227 = sphi 0, %s227
      %s229 = sphi 0, %s227
      %s230 = sphi 0, %s229
      %s244 = sphi 0, %s230
      %s248 = sphi 0, %s248
      %s250 = sphi 0, %s248
      %s251 = sphi 0, %s250
      %s265 = sphi 0, %s251
      %s269 = sphi 0, %s269
      %s271 = sphi 0, %s269
      %s272 = sphi 0, %s271
      %s286 = sphi 0, %s272
      %s290 = sphi 0, %s290
      %s292 = sphi 0, %s290
      %s293 = sphi 0, %s292
      %s307 = sphi 0, %s293
      %s313 = sphi 0, %s315
      %s316 = sphi 0, %s313
      %s317 = sphi 0, %s316
      %s333 = sphi 0, %s317
    $region4: #{cnnnet_forward.1} parent=1 // loop_header_branch
      %28 = sbr.rel (%p26) target = $region8
    $region5: #{cnnnet_forward.1} parent=1 // loop_body
      %s30 = ssub.s32 %s25, 1
      %s31 = ssub.s32 %s25, 2
      %s32 = sadd.s32 %s25, 1
      %s33 = ssub.s32 %s25, %s32
      %p34 = scmp.eq.s32.totalorder %s33, 0
      %s36 = sadd.s32 %s35, 1
      %s37 = scalar_select %p34, %s35, %s36
      %p40 = pneg %p34
      %p41 = scmp.eq.s32.totalorder %s25, 1
      %p42 = por %p40, %p41
      %p43 = scmp.ne.s32.totalorder %s35, %s38
      %p44 = scmp.eq.s32.totalorder %s25, 0
      %p45 = por %p43, %p44
      %p46 = scmp.ne.s32.totalorder %s35, %s38
      %p47 = scmp.eq.s32.totalorder %s30, 1
      %p48 = por %p46, %p47
      %p49 = scmp.ne.s32.totalorder %s38, %s39
      %p50 = scmp.eq.s32.totalorder %s30, 0
      %p51 = por %p49, %p50
      %p52 = scmp.ne.s32.totalorder %s38, %s39
      %p53 = scmp.eq.s32.totalorder %s31, 1
      %p54 = por %p52, %p53
      %p56 = scmp.ne.s32.totalorder %s39, %s55
      %p57 = scmp.eq.s32.totalorder %s31, 0
      %p58 = por %p56, %p57
      %s60 = sadd.s32 %s59, 1
      %p63 = scmp.eq.s32.totalorder %s25, 1
      %p64 = scmp.ne.s32.totalorder %s59, %s61
      %p65 = scmp.eq.s32.totalorder %s25, 0
      %p66 = por %p64, %p65
      %p67 = scmp.ne.s32.totalorder %s59, %s61
      %p68 = scmp.eq.s32.totalorder %s30, 1
      %p69 = por %p67, %p68
      %p70 = scmp.ne.s32.totalorder %s61, %s62
      %p71 = scmp.eq.s32.totalorder %s30, 0
      %p72 = por %p70, %p71
      %p73 = scmp.ne.s32.totalorder %s61, %s62
      %p74 = scmp.eq.s32.totalorder %s31, 1
      %p75 = por %p73, %p74
      %p77 = scmp.ne.s32.totalorder %s62, %s76
      %p78 = scmp.eq.s32.totalorder %s31, 0
      %p79 = por %p77, %p78
      %s81 = sadd.s32 %s80, 1
      %p84 = scmp.eq.s32.totalorder %s25, 1
      %p85 = scmp.ne.s32.totalorder %s80, %s82
      %p86 = scmp.eq.s32.totalorder %s25, 0
      %p87 = por %p85, %p86
      %p88 = scmp.ne.s32.totalorder %s80, %s82
      %p89 = scmp.eq.s32.totalorder %s30, 1
      %p90 = por %p88, %p89
      %p91 = scmp.ne.s32.totalorder %s82, %s83
      %p92 = scmp.eq.s32.totalorder %s30, 0
      %p93 = por %p91, %p92
      %p94 = scmp.ne.s32.totalorder %s82, %s83
      %p95 = scmp.eq.s32.totalorder %s31, 1
      %p96 = por %p94, %p95
      %p98 = scmp.ne.s32.totalorder %s83, %s97
      %p99 = scmp.eq.s32.totalorder %s31, 0
      %p100 = por %p98, %p99
      %s102 = sadd.s32 %s101, 1
      %p105 = scmp.eq.s32.totalorder %s25, 1
      %p106 = scmp.ne.s32.totalorder %s101, %s103
      %p107 = scmp.eq.s32.totalorder %s25, 0
      %p108 = por %p106, %p107
      %p109 = scmp.ne.s32.totalorder %s101, %s103
      %p110 = scmp.eq.s32.totalorder %s30, 1
      %p111 = por %p109, %p110
      %p112 = scmp.ne.s32.totalorder %s103, %s104
      %p113 = scmp.eq.s32.totalorder %s30, 0
      %p114 = por %p112, %p113
      %p115 = scmp.ne.s32.totalorder %s103, %s104
      %p116 = scmp.eq.s32.totalorder %s31, 1
      %p117 = por %p115, %p116
      %p119 = scmp.ne.s32.totalorder %s104, %s118
      %p120 = scmp.eq.s32.totalorder %s31, 0
      %p121 = por %p119, %p120
      %s123 = sadd.s32 %s122, 1
      %p126 = scmp.eq.s32.totalorder %s25, 1
      %p127 = scmp.ne.s32.totalorder %s122, %s124
      %p128 = scmp.eq.s32.totalorder %s25, 0
      %p129 = por %p127, %p128
      %p130 = scmp.ne.s32.totalorder %s122, %s124
      %p131 = scmp.eq.s32.totalorder %s30, 1
      %p132 = por %p130, %p131
      %p133 = scmp.ne.s32.totalorder %s124, %s125
      %p134 = scmp.eq.s32.totalorder %s30, 0
      %p135 = por %p133, %p134
      %p136 = scmp.ne.s32.totalorder %s124, %s125
      %p137 = scmp.eq.s32.totalorder %s31, 1
      %p138 = por %p136, %p137
      %p140 = scmp.ne.s32.totalorder %s125, %s139
      %p141 = scmp.eq.s32.totalorder %s31, 0
      %p142 = por %p140, %p141
      %s144 = sadd.s32 %s143, 1
      %p147 = scmp.eq.s32.totalorder %s25, 1
      %p148 = scmp.ne.s32.totalorder %s143, %s145
      %p149 = scmp.eq.s32.totalorder %s25, 0
      %p150 = por %p148, %p149
      %p151 = scmp.ne.s32.totalorder %s143, %s145
      %p152 = scmp.eq.s32.totalorder %s30, 1
      %p153 = por %p151, %p152
      %p154 = scmp.ne.s32.totalorder %s145, %s146
      %p155 = scmp.eq.s32.totalorder %s30, 0
      %p156 = por %p154, %p155
      %p157 = scmp.ne.s32.totalorder %s145, %s146
      %p158 = scmp.eq.s32.totalorder %s31, 1
      %p159 = por %p157, %p158
      %p161 = scmp.ne.s32.totalorder %s146, %s160
      %p162 = scmp.eq.s32.totalorder %s31, 0
      %p163 = por %p161, %p162
      %s165 = sadd.s32 %s164, 1
      %p168 = scmp.eq.s32.totalorder %s25, 1
      %p169 = scmp.ne.s32.totalorder %s164, %s166
      %p170 = scmp.eq.s32.totalorder %s25, 0
      %p171 = por %p169, %p170
      %p172 = scmp.ne.s32.totalorder %s164, %s166
      %p173 = scmp.eq.s32.totalorder %s30, 1
      %p174 = por %p172, %p173
      %p175 = scmp.ne.s32.totalorder %s166, %s167
      %p176 = scmp.eq.s32.totalorder %s30, 0
      %p177 = por %p175, %p176
      %p178 = scmp.ne.s32.totalorder %s166, %s167
      %p179 = scmp.eq.s32.totalorder %s31, 1
      %p180 = por %p178, %p179
      %p182 = scmp.ne.s32.totalorder %s167, %s181
      %p183 = scmp.eq.s32.totalorder %s31, 0
      %p184 = por %p182, %p183
      %s186 = sadd.s32 %s185, 1
      %p189 = scmp.eq.s32.totalorder %s25, 1
      %p190 = scmp.ne.s32.totalorder %s185, %s187
      %p191 = scmp.eq.s32.totalorder %s25, 0
      %p192 = por %p190, %p191
      %p193 = scmp.ne.s32.totalorder %s185, %s187
      %p194 = scmp.eq.s32.totalorder %s30, 1
      %p195 = por %p193, %p194
      %p196 = scmp.ne.s32.totalorder %s187, %s188
      %p197 = scmp.eq.s32.totalorder %s30, 0
      %p198 = por %p196, %p197
      %p199 = scmp.ne.s32.totalorder %s187, %s188
      %p200 = scmp.eq.s32.totalorder %s31, 1
      %p201 = por %p199, %p200
      %p203 = scmp.ne.s32.totalorder %s188, %s202
      %p204 = scmp.eq.s32.totalorder %s31, 0
      %p205 = por %p203, %p204
      %s207 = sadd.s32 %s206, 1
      %p210 = scmp.eq.s32.totalorder %s25, 1
      %p211 = scmp.ne.s32.totalorder %s206, %s208
      %p212 = scmp.eq.s32.totalorder %s25, 0
      %p213 = por %p211, %p212
      %p214 = scmp.ne.s32.totalorder %s206, %s208
      %p215 = scmp.eq.s32.totalorder %s30, 1
      %p216 = por %p214, %p215
      %p217 = scmp.ne.s32.totalorder %s208, %s209
      %p218 = scmp.eq.s32.totalorder %s30, 0
      %p219 = por %p217, %p218
      %p220 = scmp.ne.s32.totalorder %s208, %s209
      %p221 = scmp.eq.s32.totalorder %s31, 1
      %p222 = por %p220, %p221
      %p224 = scmp.ne.s32.totalorder %s209, %s223
      %p225 = scmp.eq.s32.totalorder %s31, 0
      %p226 = por %p224, %p225
      %s228 = sadd.s32 %s227, 1
      %p231 = scmp.eq.s32.totalorder %s25, 1
      %p232 = scmp.ne.s32.totalorder %s227, %s229
      %p233 = scmp.eq.s32.totalorder %s25, 0
      %p234 = por %p232, %p233
      %p235 = scmp.ne.s32.totalorder %s227, %s229
      %p236 = scmp.eq.s32.totalorder %s30, 1
      %p237 = por %p235, %p236
      %p238 = scmp.ne.s32.totalorder %s229, %s230
      %p239 = scmp.eq.s32.totalorder %s30, 0
      %p240 = por %p238, %p239
      %p241 = scmp.ne.s32.totalorder %s229, %s230
      %p242 = scmp.eq.s32.totalorder %s31, 1
      %p243 = por %p241, %p242
      %p245 = scmp.ne.s32.totalorder %s230, %s244
      %p246 = scmp.eq.s32.totalorder %s31, 0
      %p247 = por %p245, %p246
      %s249 = sadd.s32 %s248, 1
      %p252 = scmp.eq.s32.totalorder %s25, 1
      %p253 = scmp.ne.s32.totalorder %s248, %s250
      %p254 = scmp.eq.s32.totalorder %s25, 0
      %p255 = por %p253, %p254
      %p256 = scmp.ne.s32.totalorder %s248, %s250
      %p257 = scmp.eq.s32.totalorder %s30, 1
      %p258 = por %p256, %p257
      %p259 = scmp.ne.s32.totalorder %s250, %s251
      %p260 = scmp.eq.s32.totalorder %s30, 0
      %p261 = por %p259, %p260
      %p262 = scmp.ne.s32.totalorder %s250, %s251
      %p263 = scmp.eq.s32.totalorder %s31, 1
      %p264 = por %p262, %p263
      %p266 = scmp.ne.s32.totalorder %s251, %s265
      %p267 = scmp.eq.s32.totalorder %s31, 0
      %p268 = por %p266, %p267
      %s270 = sadd.s32 %s269, 1
      %p273 = scmp.eq.s32.totalorder %s25, 1
      %p274 = scmp.ne.s32.totalorder %s269, %s271
      %p275 = scmp.eq.s32.totalorder %s25, 0
      %p276 = por %p274, %p275
      %p277 = scmp.ne.s32.totalorder %s269, %s271
      %p278 = scmp.eq.s32.totalorder %s30, 1
      %p279 = por %p277, %p278
      %p280 = scmp.ne.s32.totalorder %s271, %s272
      %p281 = scmp.eq.s32.totalorder %s30, 0
      %p282 = por %p280, %p281
      %p283 = scmp.ne.s32.totalorder %s271, %s272
      %p284 = scmp.eq.s32.totalorder %s31, 1
      %p285 = por %p283, %p284
      %p287 = scmp.ne.s32.totalorder %s272, %s286
      %p288 = scmp.eq.s32.totalorder %s31, 0
      %p289 = por %p287, %p288
      %s291 = sadd.s32 %s290, 1
      %p294 = scmp.eq.s32.totalorder %s25, 1
      %p295 = scmp.ne.s32.totalorder %s290, %s292
      %p296 = scmp.eq.s32.totalorder %s25, 0
      %p297 = por %p295, %p296
      %p298 = scmp.ne.s32.totalorder %s290, %s292
      %p299 = scmp.eq.s32.totalorder %s30, 1
      %p300 = por %p298, %p299
      %p301 = scmp.ne.s32.totalorder %s292, %s293
      %p302 = scmp.eq.s32.totalorder %s30, 0
      %p303 = por %p301, %p302
      %p304 = scmp.ne.s32.totalorder %s292, %s293
      %p305 = scmp.eq.s32.totalorder %s31, 1
      %p306 = por %p304, %p305
      %p308 = scmp.ne.s32.totalorder %s293, %s307
      %p309 = scmp.eq.s32.totalorder %s31, 0
      %p310 = por %p308, %p309
      %s311 = ssub.s32 %s25, %s32
      %p312 = scmp.eq.s32.totalorder %s311, 0
      %s314 = sadd.s32 %s313, 1
      %s315 = scalar_select %p312, %s313, %s314
      %p318 = pneg %p312
      %p319 = scmp.eq.s32.totalorder %s25, 1
      %p320 = por %p318, %p319
      %p321 = scmp.ne.s32.totalorder %s313, %s316
      %p322 = scmp.eq.s32.totalorder %s25, 0
      %p323 = por %p321, %p322
      %p324 = scmp.ne.s32.totalorder %s313, %s316
      %p325 = scmp.eq.s32.totalorder %s30, 1
      %p326 = por %p324, %p325
      %p327 = scmp.ne.s32.totalorder %s316, %s317
      %p328 = scmp.eq.s32.totalorder %s30, 0
      %p329 = por %p327, %p328
      %p330 = scmp.ne.s32.totalorder %s316, %s317
      %p331 = scmp.eq.s32.totalorder %s31, 1
      %p332 = por %p330, %p331
      %p334 = scmp.ne.s32.totalorder %s317, %s333
      %p335 = scmp.eq.s32.totalorder %s31, 0
      %p336 = por %p334, %p335
      %p337 = scmp.le.s32.totalorder 1, %s25
      %p338 = scmp.lt.s32.totalorder %s25, 3
      %p339 = pnand %p337, %p338
      %p340 = pneg %p339
      // Predicated region
      $region9: #{cnnnet_forward.1} parent=5 // pred_check
        _
      $region10: #{cnnnet_forward.1} parent=5 // pred_check_branch
        %342 = sbr.rel (%p339) target = $region12
      $region11: #{cnnnet_forward.1} parent=5 // pred_region
        %s343 = ssub.s32 %s25, 1
        // Predicated region
        $region13: #{cnnnet_forward.1} parent=11 // pred_check
          %p344 = pneg %p72
        $region14: #{cnnnet_forward.1} parent=11 // pred_check_branch
          %346 = sbr.rel (%p344) target = $region16
        $region15: #{cnnnet_forward.1} parent=11 // pred_region
          _
        $region16: #{cnnnet_forward.1} parent=11 // pred_fallthru
          _
        // Predicated region
        $region17: #{cnnnet_forward.1} parent=11 // pred_check
          %p347 = pneg %p93
        $region18: #{cnnnet_forward.1} parent=11 // pred_check_branch
          %349 = sbr.rel (%p347) target = $region20
        $region19: #{cnnnet_forward.1} parent=11 // pred_region
          %s351 = ssub.s32 2048, 2048
          %352 = vsyncadd [#allocation4], %s351
          %s353 = sshll.u32 [#allocation3], 4
          %s354 = int_to_ptr.vmem [resolvable:$true] %s353
          %359 = dma.hbm_to_vmem [thread:$0]  %s2, 2048, %s354, [#allocation4], 64, 64, 4
        $region20: #{cnnnet_forward.1} parent=11 // pred_fallthru
          _
        // Predicated region
        $region21: #{cnnnet_forward.1} parent=11 // pred_check
          %p360 = pneg %p114
        $region22: #{cnnnet_forward.1} parent=11 // pred_check_branch
          %362 = sbr.rel (%p360) target = $region24
        $region23: #{cnnnet_forward.1} parent=11 // pred_region
          _
        $region24: #{cnnnet_forward.1} parent=11 // pred_fallthru
          _
        // Predicated region
        $region25: #{cnnnet_forward.1} parent=11 // pred_check
          %p363 = pneg %p135
        $region26: #{cnnnet_forward.1} parent=11 // pred_check_branch
          %365 = sbr.rel (%p363) target = $region28
        $region27: #{cnnnet_forward.1} parent=11 // pred_region
          %s367 = ssub.s32 10240, 10240
          %368 = vsyncadd [#allocation6], %s367
          %s369 = sshll.u32 [#allocation5], 4
          %s370 = int_to_ptr.vmem [resolvable:$true] %s369
          %375 = dma.hbm_to_vmem [thread:$0]  %s4, 10240, %s370, [#allocation6], 128, 128, 8
        $region28: #{cnnnet_forward.1} parent=11 // pred_fallthru
          _
        // Predicated region
        $region29: #{cnnnet_forward.1} parent=11 // pred_check
          %p376 = pneg %p156
        $region30: #{cnnnet_forward.1} parent=11 // pred_check_branch
          %378 = sbr.rel (%p376) target = $region32
        $region31: #{cnnnet_forward.1} parent=11 // pred_region
          %s380 = ssub.s32 2048, 2048
          %381 = vsyncadd [#allocation6], %s380
          %s382 = sshll.u32 [#allocation7], 4
          %s383 = int_to_ptr.vmem [resolvable:$true] %s382
          %388 = dma.hbm_to_vmem [thread:$0]  %s5, 2048, %s383, [#allocation6], 64, 64, 4
        $region32: #{cnnnet_forward.1} parent=11 // pred_fallthru
          _
        // Predicated region
        $region33: #{cnnnet_forward.1} parent=11 // pred_check
          %p389 = pneg %p177
        $region34: #{cnnnet_forward.1} parent=11 // pred_check_branch
          %391 = sbr.rel (%p389) target = $region36
        $region35: #{cnnnet_forward.1} parent=11 // pred_region
          _
        $region36: #{cnnnet_forward.1} parent=11 // pred_fallthru
          _
        // Predicated region
        $region37: #{cnnnet_forward.1} parent=11 // pred_check
          %p392 = pneg %p198
        $region38: #{cnnnet_forward.1} parent=11 // pred_check_branch
          %394 = sbr.rel (%p392) target = $region40
        $region39: #{cnnnet_forward.1} parent=11 // pred_region
          _
        $region40: #{cnnnet_forward.1} parent=11 // pred_fallthru
          _
        // Predicated region
        $region41: #{cnnnet_forward.1} parent=11 // pred_check
          %p395 = pneg %p219
        $region42: #{cnnnet_forward.1} parent=11 // pred_check_branch
          %397 = sbr.rel (%p395) target = $region44
        $region43: #{cnnnet_forward.1} parent=11 // pred_region
          _
        $region44: #{cnnnet_forward.1} parent=11 // pred_fallthru
          _
        // Predicated region
        $region45: #{cnnnet_forward.1} parent=11 // pred_check
          %p398 = pneg %p240
        $region46: #{cnnnet_forward.1} parent=11 // pred_check_branch
          %400 = sbr.rel (%p398) target = $region48
        $region47: #{cnnnet_forward.1} parent=11 // pred_region
          %s402 = ssub.s32 1024, 1024
          %403 = vsyncadd [#allocation9], %s402
          %s404 = sshll.u32 [#allocation8], 4
          %s405 = int_to_ptr.vmem [resolvable:$true] %s404
          %410 = dma.hbm_to_vmem [thread:$0]  %s9, 1024, %s405, [#allocation9], 64, 64, 4
        $region48: #{cnnnet_forward.1} parent=11 // pred_fallthru
          _
        // Predicated region
        $region49: #{cnnnet_forward.1} parent=11 // pred_check
          %p411 = pneg %p261
        $region50: #{cnnnet_forward.1} parent=11 // pred_check_branch
          %413 = sbr.rel (%p411) target = $region52
        $region51: #{cnnnet_forward.1} parent=11 // pred_region
          %s415 = ssub.s32 16, 16
          %416 = vsyncadd [#allocation9], %s415
          %s418 = sshll.u32 [#allocation10], 4
          %s419 = int_to_ptr.vmem [resolvable:$true] %s418
          %421 = dma.hbm_to_vmem [thread:$0]  %s10, 16, %s419, [#allocation9]
        $region52: #{cnnnet_forward.1} parent=11 // pred_fallthru
          _
        // Predicated region
        $region53: #{cnnnet_forward.1} parent=11 // pred_check
          %p422 = pneg %p282
        $region54: #{cnnnet_forward.1} parent=11 // pred_check_branch
          %424 = sbr.rel (%p422) target = $region56
        $region55: #{cnnnet_forward.1} parent=11 // pred_region
          %s426 = ssub.s32 16, 16
          %427 = vsyncadd [#allocation12], %s426
          %s429 = sshll.u32 [#allocation11], 4
          %s430 = int_to_ptr.vmem [resolvable:$true] %s429
          %432 = dma.hbm_to_vmem [thread:$0]  %s11, 16, %s430, [#allocation12]
        $region56: #{cnnnet_forward.1} parent=11 // pred_fallthru
          _
        // Predicated region
        $region57: #{cnnnet_forward.1} parent=11 // pred_check
          %p433 = pneg %p303
        $region58: #{cnnnet_forward.1} parent=11 // pred_check_branch
          %435 = sbr.rel (%p433) target = $region60
        $region59: #{cnnnet_forward.1} parent=11 // pred_region
          _
        $region60: #{cnnnet_forward.1} parent=11 // pred_fallthru
          _
      $region12: #{cnnnet_forward.1} parent=5 // pred_fallthru
        _
      %p436 = scmp.lt.s32.totalorder %s25, 2
      // Predicated region
      $region61: #{cnnnet_forward.1} parent=5 // pred_check
        %p437 = pneg %p436
      $region62: #{cnnnet_forward.1} parent=5 // pred_check_branch
        %439 = sbr.rel (%p437) target = $region64
      $region63: #{cnnnet_forward.1} parent=5 // pred_region
        // Predicated region
        $region65: #{cnnnet_forward.1} parent=63 // pred_check
          %p440 = pneg %p45
        $region66: #{cnnnet_forward.1} parent=63 // pred_check_branch
          %442 = sbr.rel (%p440) target = $region68
        $region67: #{cnnnet_forward.1} parent=63 // pred_region
          %s443 = smul.u32 16, %s25
          %p444 = scmp.lt.s32.totalorder %s443, 31
          %s445 = scalar_select %p444, %s443, 31
          %s446 = smul.addr %s445, 8
          %s447 = scalar_lea.vmem %s0, %s446
          %s448 = smul.u32 16, %s25
        $region68: #{cnnnet_forward.1} parent=63 // pred_fallthru
          _
      $region64: #{cnnnet_forward.1} parent=5 // pred_fallthru
        _
      %p449 = scmp.le.s32.totalorder 1, %s25
      %p450 = scmp.lt.s32.totalorder %s25, 3
      %p451 = pnand %p449, %p450
      %p452 = pneg %p451
      // Predicated region
      $region69: #{cnnnet_forward.1} parent=5 // pred_check
        _
      $region70: #{cnnnet_forward.1} parent=5 // pred_check_branch
        %454 = sbr.rel (%p451) target = $region72
      $region71: #{cnnnet_forward.1} parent=5 // pred_region
        %s455 = ssub.s32 %s25, 1
        // Predicated region
        $region73: #{cnnnet_forward.1} parent=71 // pred_check
          %p456 = pneg %p93
        $region74: #{cnnnet_forward.1} parent=71 // pred_check_branch
          %458 = sbr.rel (%p456) target = $region76
        $region75: #{cnnnet_forward.1} parent=71 // pred_region
          %459 = dma.done [#allocation4], 2048
        $region76: #{cnnnet_forward.1} parent=71 // pred_fallthru
          _
        // Predicated region
        $region77: #{cnnnet_forward.1} parent=71 // pred_check
          %p460 = pneg %p135
        $region78: #{cnnnet_forward.1} parent=71 // pred_check_branch
          %462 = sbr.rel (%p460) target = $region80
        $region79: #{cnnnet_forward.1} parent=71 // pred_region
          %463 = dma.done [#allocation6], 10240
        $region80: #{cnnnet_forward.1} parent=71 // pred_fallthru
          _
        // Predicated region
        $region81: #{cnnnet_forward.1} parent=71 // pred_check
          %p464 = pneg %p156
        $region82: #{cnnnet_forward.1} parent=71 // pred_check_branch
          %466 = sbr.rel (%p464) target = $region84
        $region83: #{cnnnet_forward.1} parent=71 // pred_region
          %467 = dma.done [#allocation6], 2048
        $region84: #{cnnnet_forward.1} parent=71 // pred_fallthru
          _
        // Predicated region
        $region85: #{cnnnet_forward.1} parent=71 // pred_check
          %p468 = pneg %p240
        $region86: #{cnnnet_forward.1} parent=71 // pred_check_branch
          %470 = sbr.rel (%p468) target = $region88
        $region87: #{cnnnet_forward.1} parent=71 // pred_region
          %471 = dma.done [#allocation9], 1024
        $region88: #{cnnnet_forward.1} parent=71 // pred_fallthru
          _
        // Predicated region
        $region89: #{cnnnet_forward.1} parent=71 // pred_check
          %p472 = pneg %p261
        $region90: #{cnnnet_forward.1} parent=71 // pred_check_branch
          %474 = sbr.rel (%p472) target = $region92
        $region91: #{cnnnet_forward.1} parent=71 // pred_region
          %475 = dma.done [#allocation9], 16
        $region92: #{cnnnet_forward.1} parent=71 // pred_fallthru
          _
        // Predicated region
        $region93: #{cnnnet_forward.1} parent=71 // pred_check
          %p476 = pneg %p282
        $region94: #{cnnnet_forward.1} parent=71 // pred_check_branch
          %478 = sbr.rel (%p476) target = $region96
        $region95: #{cnnnet_forward.1} parent=71 // pred_region
          %479 = dma.done [#allocation12], 16
        $region96: #{cnnnet_forward.1} parent=71 // pred_fallthru
          _
        %s480 = smul.u32 16, %s30
        %p481 = scmp.lt.s32.totalorder %s480, 31
        %s482 = scalar_select %p481, %s480, 31
        %s483 = smul.addr %s482, 8
        %s484 = scalar_lea.vmem %s0, %s483
        %p485 = pneg %p51
        %p486 = pneg %p48
        %p487 = pneg %p72
        %p488 = pneg %p69
        %p489 = pneg %p93
        %p490 = pneg %p90
        %p491 = pneg %p114
        %p492 = pneg %p111
        %p493 = pneg %p135
        %p494 = pneg %p132
        %p495 = pneg %p156
        %p496 = pneg %p153
        %p497 = pneg %p177
        %p498 = pneg %p174
        %p499 = pneg %p198
        %p500 = pneg %p195
        %p501 = pneg %p219
        %p502 = pneg %p216
        %p503 = pneg %p240
        %p504 = pneg %p237
        %p505 = pneg %p261
        %p506 = pneg %p258
        %p507 = pneg %p282
        %p508 = pneg %p279
        %p509 = pneg %p303
        %p510 = pneg %p300
        %p511 = pneg %p329
        %p512 = pneg %p326
        %p513 = scmp.lt.s32.totalorder %s30, 1
        %s514 = scalar_select %p513, %s30, 1
        %s515 = scalar_lea.vmem %s13, %s514
        %s516 = smul.u32 16, %s30
        %p517 = scmp.lt.s32.totalorder %s516, 31
        %s518 = scalar_select %p517, %s516, 31
        %s519 = smul.addr %s518, 8
        %s520 = scalar_lea.vmem %s0, %s519
        %s521 = smul.u32 16, %s30
        %p522 = scmp.lt.s32.totalorder %s30, 1
        %s523 = scalar_select %p522, %s30, 1
        %s524 = scalar_lea.vmem %s13, %s523
        %v526 = vld [vmem:[%s520] sm:$0xff]
        %v527 = vld [vmem:[%s520 + $0x8] sm:$0xff]
        %v528 = vld [vmem:[%s520 + $0x10] sm:$0xff]
        %v529 = vld [vmem:[%s520 + $0x18] sm:$0xff]
        %v530 = vld [vmem:[%s520 + $0x20] sm:$0xff]
        %v531 = vld [vmem:[%s520 + $0x28] sm:$0xff]
        %v532 = vld [vmem:[%s520 + $0x30] sm:$0xff]
        %v533 = vld [vmem:[%s520 + $0x38] sm:$0xff]
        %v534 = vld [vmem:[%s520 + $0x40] sm:$0xff]
        %v535 = vld [vmem:[%s520 + $0x48] sm:$0xff]
        %v536 = vld [vmem:[%s520 + $0x50] sm:$0xff]
        %v537 = vld [vmem:[%s520 + $0x58] sm:$0xff]
        %v538 = vld [vmem:[%s520 + $0x60] sm:$0xff]
        %v539 = vld [vmem:[%s520 + $0x68] sm:$0xff]
        %v540 = vld [vmem:[%s520 + $0x70] sm:$0xff]
        %v541 = vld [vmem:[%s520 + $0x78] sm:$0xff]
        %v542 = vpack.c.bf16 %v527, %v526
        %v543 = vpack.c.bf16 %v529, %v528
        %v544 = vpack.c.bf16 %v531, %v530
        %v545 = vpack.c.bf16 %v533, %v532
        %v546 = vpack.c.bf16 %v535, %v534
        %v547 = vpack.c.bf16 %v537, %v536
        %v548 = vpack.c.bf16 %v539, %v538
        %v549 = vpack.c.bf16 %v541, %v540
        %v550 = vld [vmem:[%s1] sm:$0xff]
        %v551 = vld [vmem:[%s1 + $0x8] sm:$0xff]
        %v552 = vld [vmem:[%s1 + $0x10] sm:$0xff]
        %v553 = vld [vmem:[%s1 + $0x18] sm:$0xff]
        %v554 = vrot.slane %v526, 1
        %v555 = vrot.slane %v527, 1
        %v556 = vrot.slane %v528, 1
        %v557 = vrot.slane %v529, 1
        %v558 = vrot.slane %v530, 1
        %v559 = vrot.slane %v531, 1
        %v560 = vrot.slane %v532, 1
        %v561 = vrot.slane %v533, 1
        %v562 = vrot.slane %v534, 1
        %v563 = vrot.slane %v535, 1
        %v564 = vrot.slane %v536, 1
        %v565 = vrot.slane %v537, 1
        %v566 = vrot.slane %v538, 1
        %v567 = vrot.slane %v539, 1
        %v568 = vrot.slane %v540, 1
        %v569 = vrot.slane %v541, 1
        %v570 = vlaneseq
        %v571 = vshrl.u32 %v570, 7
        %vm572 = vcmp.lt.s32.totalorder %v571, 7
        %v573 = vsel %vm572, %v568, %v569
        %v574 = vsel %vm572, %v567, %v568
        %v575 = vsel %vm572, %v566, %v567
        %v576 = vsel %vm572, %v565, %v566
        %v577 = vsel %vm572, %v564, %v565
        %v578 = vsel %vm572, %v563, %v564
        %v579 = vsel %vm572, %v562, %v563
        %v580 = vsel %vm572, %v561, %v562
        %v581 = vsel %vm572, %v560, %v561
        %v582 = vsel %vm572, %v559, %v560
        %v583 = vsel %vm572, %v558, %v559
        %v584 = vsel %vm572, %v557, %v558
        %v585 = vsel %vm572, %v556, %v557
        %v586 = vsel %vm572, %v555, %v556
        %v587 = vsel %vm572, %v554, %v555
        %v588 = vsel %vm572, %v569, %v554
        %v589 = vpack.c.bf16 %v586, %v587
        %v590 = vpack.c.bf16 %v584, %v585
        %v591 = vpack.c.bf16 %v582, %v583
        %v592 = vpack.c.bf16 %v580, %v581
        %v593 = vpack.c.bf16 %v578, %v579
        %v594 = vpack.c.bf16 %v576, %v577
        %v595 = vpack.c.bf16 %v574, %v575
        %v596 = vpack.c.bf16 %v588, %v573
        %s597 = scalar_lea.vmem %s1, 32
        %v598 = vld [vmem:[%s597] sm:$0xff]
        %v599 = vld [vmem:[%s597 + $0x8] sm:$0xff]
        %v600 = vld [vmem:[%s597 + $0x10] sm:$0xff]
        %v601 = vld [vmem:[%s597 + $0x18] sm:$0xff]
        %v606 = vunpack.c.l.b16 %v598
        %v607 = vunpack.c.h.b16 %v598
        %v608 = vunpack.c.l.b16 %v599
        %v609 = vunpack.c.h.b16 %v599
        %v610 = vunpack.c.l.b16 %v600
        %v611 = vunpack.c.h.b16 %v600
        %v612 = vunpack.c.l.b16 %v601
        %v613 = vunpack.c.h.b16 %v601
        %v614 = vpack.c.b16 %v608, %v606
        %v615 = vpack.c.b16 %v609, %v607
        %v616 = vpack.c.b16 %v612, %v610
        %v617 = vpack.c.b16 %v613, %v611
        %vm622 = vcmask 261120
        %v624 = vsel %vm622, %v589, 0
        %v627 = vsel %vm622, %v590, 0
        %v630 = vsel %vm622, %v591, 0
        %v633 = vsel %vm622, %v592, 0
        %v636 = vsel %vm622, %v593, 0
        %v639 = vsel %vm622, %v594, 0
        %v642 = vsel %vm622, %v595, 0
        %v645 = vsel %vm622, %v596, 0
        %647 = vmatprep.subr.bf16.mxu0 %v615
        %648 = vmatpush1.bf16.msra.mxu0 %v614
        %649 = vmatprep.subr.bf16.mxu0 %v617
        %650 = vmatpush1.bf16.msra.mxu0 %v616
        %651 = vmatprep.subr.bf16.mxu0 0
        %652 = vmatpush1.bf16.msra.mxu0 0
        %653 = vmatprep.subr.bf16.mxu0 0
        %654 = vmatpush1.bf16.msra.mxu0 0
        %655 = vmatprep.subr.bf16.mxu0 0
        %656 = vmatpush1.bf16.msra.mxu0 0
        %657 = vmatprep.subr.bf16.mxu0 0
        %658 = vmatpush1.bf16.msra.mxu0 0
        %659 = vmatprep.subr.bf16.mxu0 0
        %660 = vmatpush1.bf16.msra.mxu0 0
        %661 = vmatprep.subr.bf16.mxu0 0
        %662 = vmatpush1.bf16.msra.mxu0 0
        %663 = vmatprep.subr.bf16.mxu0 0
        %664 = vmatpush1.bf16.msra.mxu0 0
        %665 = vmatprep.subr.bf16.mxu0 0
        %666 = vmatpush1.bf16.msra.mxu0 0
        %667 = vmatprep.subr.bf16.mxu0 0
        %668 = vmatpush1.bf16.msra.mxu0 0
        %669 = vmatprep.subr.bf16.mxu0 0
        %670 = vmatpush1.bf16.msra.mxu0 0
        %671 = vmatprep.subr.bf16.mxu0 0
        %672 = vmatpush1.bf16.msra.mxu0 0
        %673 = vmatprep.subr.bf16.mxu0 0
        %674 = vmatpush1.bf16.msra.mxu0 0
        %675 = vmatprep.subr.bf16.mxu0 0
        %676 = vmatpush1.bf16.msra.mxu0 0
        %677 = vmatprep.subr.bf16.mxu0 0
        %678 = vmatpush1.bf16.msra.mxu0 0
        %679 = vmatprep.mubr.bf16.mxu0 0
        %680 = vmatmul.mubr.bf16.gmra.mrb[0].mxu0 %v624
        %v681 = vpop.f32.mrb[0].mxu0
        %v682 = vadd.f32 0.0, %v681
        %v683 = vpop.f32.mrb[0].mxu0
        %v684 = vadd.f32 0.0, %v683
        %v685 = vpop.f32.mrb[0].mxu0
        %v686 = vadd.f32 0.0, %v685
        %v687 = vpop.f32.mrb[0].mxu0
        %v688 = vadd.f32 0.0, %v687
        %689 = vmatprep.mubr.bf16.mxu0 0
        %690 = vmatmul.mubr.bf16.gmra.mrb[0].mxu0 %v627
        %v691 = vpop.f32.mrb[0].mxu0
        %v692 = vadd.f32 0.0, %v691
        %v693 = vpop.f32.mrb[0].mxu0
        %v694 = vadd.f32 0.0, %v693
        %v695 = vpop.f32.mrb[0].mxu0
        %v696 = vadd.f32 0.0, %v695
        %v697 = vpop.f32.mrb[0].mxu0
        %v698 = vadd.f32 0.0, %v697
        %699 = vmatprep.mubr.bf16.mxu0 0
        %700 = vmatmul.mubr.bf16.gmra.mrb[0].mxu0 %v630
        %v701 = vpop.f32.mrb[0].mxu0
        %v702 = vadd.f32 0.0, %v701
        %v703 = vpop.f32.mrb[0].mxu0
        %v704 = vadd.f32 0.0, %v703
        %v705 = vpop.f32.mrb[0].mxu0
        %v706 = vadd.f32 0.0, %v705
        %v707 = vpop.f32.mrb[0].mxu0
        %v708 = vadd.f32 0.0, %v707
        %709 = vmatprep.mubr.bf16.mxu0 0
        %710 = vmatmul.mubr.bf16.gmra.mrb[0].mxu0 %v633
        %v711 = vpop.f32.mrb[0].mxu0
        %v712 = vadd.f32 0.0, %v711
        %v713 = vpop.f32.mrb[0].mxu0
        %v714 = vadd.f32 0.0, %v713
        %v715 = vpop.f32.mrb[0].mxu0
        %v716 = vadd.f32 0.0, %v715
        %v717 = vpop.f32.mrb[0].mxu0
        %v718 = vadd.f32 0.0, %v717
        %719 = vmatprep.mubr.bf16.mxu0 0
        %720 = vmatmul.mubr.bf16.gmra.mrb[0].mxu0 %v636
        %v721 = vpop.f32.mrb[0].mxu0
        %v722 = vadd.f32 0.0, %v721
        %v723 = vpop.f32.mrb[0].mxu0
        %v724 = vadd.f32 0.0, %v723
        %v725 = vpop.f32.mrb[0].mxu0
        %v726 = vadd.f32 0.0, %v725
        %v727 = vpop.f32.mrb[0].mxu0
        %v728 = vadd.f32 0.0, %v727
        %729 = vmatprep.mubr.bf16.mxu0 0
        %730 = vmatmul.mubr.bf16.gmra.mrb[0].mxu0 %v639
        %v731 = vpop.f32.mrb[0].mxu0
        %v732 = vadd.f32 0.0, %v731
        %v733 = vpop.f32.mrb[0].mxu0
        %v734 = vadd.f32 0.0, %v733
        %v735 = vpop.f32.mrb[0].mxu0
        %v736 = vadd.f32 0.0, %v735
        %v737 = vpop.f32.mrb[0].mxu0
        %v738 = vadd.f32 0.0, %v737
        %739 = vmatprep.mubr.bf16.mxu0 0
        %740 = vmatmul.mubr.bf16.gmra.mrb[0].mxu0 %v642
        %v741 = vpop.f32.mrb[0].mxu0
        %v742 = vadd.f32 0.0, %v741
        %v743 = vpop.f32.mrb[0].mxu0
        %v744 = vadd.f32 0.0, %v743
        %v745 = vpop.f32.mrb[0].mxu0
        %v746 = vadd.f32 0.0, %v745
        %v747 = vpop.f32.mrb[0].mxu0
        %v748 = vadd.f32 0.0, %v747
        %749 = vmatprep.mubr.bf16.mxu0 0
        %750 = vmatmul.mubr.bf16.gmra.mrb[0].mxu0 %v645
        %v751 = vpop.f32.mrb[0].mxu0
        %v752 = vadd.f32 0.0, %v751
        %v753 = vpop.f32.mrb[0].mxu0
        %v754 = vadd.f32 0.0, %v753
        %v755 = vpop.f32.mrb[0].mxu0
        %v756 = vadd.f32 0.0, %v755
        %v757 = vpop.f32.mrb[0].mxu0
        %v758 = vadd.f32 0.0, %v757
        %759 = vdwg.mxu0
        %v764 = vunpack.c.l.b16 %v550
        %v765 = vunpack.c.h.b16 %v550
        %v766 = vunpack.c.l.b16 %v551
        %v767 = vunpack.c.h.b16 %v551
        %v768 = vunpack.c.l.b16 %v552
        %v769 = vunpack.c.h.b16 %v552
        %v770 = vunpack.c.l.b16 %v553
        %v771 = vunpack.c.h.b16 %v553
        %v772 = vpack.c.b16 %v766, %v764
        %v773 = vpack.c.b16 %v767, %v765
        %v774 = vpack.c.b16 %v770, %v768
        %v775 = vpack.c.b16 %v771, %v769
        %v781 = vsel %vm622, %v542, 0
        %v784 = vsel %vm622, %v543, 0
        %v787 = vsel %vm622, %v544, 0
        %v790 = vsel %vm622, %v545, 0
        %v793 = vsel %vm622, %v546, 0
        %v796 = vsel %vm622, %v547, 0
        %v799 = vsel %vm622, %v548, 0
        %v802 = vsel %vm622, %v549, 0
        %804 = vmatprep.subr.bf16.mxu0 %v773
        %805 = vmatpush1.bf16.msra.mxu0 %v772
        %806 = vmatprep.subr.bf16.mxu0 %v775
        %807 = vmatpush1.bf16.msra.mxu0 %v774
        %808 = vmatprep.subr.bf16.mxu0 0
        %809 = vmatpush1.bf16.msra.mxu0 0
        %810 = vmatprep.subr.bf16.mxu0 0
        %811 = vmatpush1.bf16.msra.mxu0 0
        %812 = vmatprep.subr.bf16.mxu0 0
        %813 = vmatpush1.bf16.msra.mxu0 0
        %814 = vmatprep.subr.bf16.mxu0 0
        %815 = vmatpush1.bf16.msra.mxu0 0
        %816 = vmatprep.subr.bf16.mxu0 0
        %817 = vmatpush1.bf16.msra.mxu0 0
        %818 = vmatprep.subr.bf16.mxu0 0
        %819 = vmatpush1.bf16.msra.mxu0 0
        %820 = vmatprep.subr.bf16.mxu0 0
        %821 = vmatpush1.bf16.msra.mxu0 0
        %822 = vmatprep.subr.bf16.mxu0 0
        %823 = vmatpush1.bf16.msra.mxu0 0
        %824 = vmatprep.subr.bf16.mxu0 0
        %825 = vmatpush1.bf16.msra.mxu0 0
        %826 = vmatprep.subr.bf16.mxu0 0
        %827 = vmatpush1.bf16.msra.mxu0 0
        %828 = vmatprep.subr.bf16.mxu0 0
        %829 = vmatpush1.bf16.msra.mxu0 0
        %830 = vmatprep.subr.bf16.mxu0 0
        %831 = vmatpush1.bf16.msra.mxu0 0
        %832 = vmatprep.subr.bf16.mxu0 0
        %833 = vmatpush1.bf16.msra.mxu0 0
        %834 = vmatprep.subr.bf16.mxu0 0
        %835 = vmatpush1.bf16.msra.mxu0 0
        %836 = vmatprep.mubr.bf16.mxu0 0
        %837 = vmatmul.mubr.bf16.gmra.mrb[0].mxu0 %v781
        %v838 = vpop.f32.mrb[0].mxu0
        %v839 = vadd.f32 %v682, %v838
        %v840 = vpop.f32.mrb[0].mxu0
        %v841 = vadd.f32 %v684, %v840
        %v842 = vpop.f32.mrb[0].mxu0
        %v843 = vadd.f32 %v686, %v842
        %v844 = vpop.f32.mrb[0].mxu0
        %v845 = vadd.f32 %v688, %v844
        %846 = vmatprep.mubr.bf16.mxu0 0
        %847 = vmatmul.mubr.bf16.gmra.mrb[0].mxu0 %v784
        %v848 = vpop.f32.mrb[0].mxu0
        %v849 = vadd.f32 %v692, %v848
        %v850 = vpop.f32.mrb[0].mxu0
        %v851 = vadd.f32 %v694, %v850
        %v852 = vpop.f32.mrb[0].mxu0
        %v853 = vadd.f32 %v696, %v852
        %v854 = vpop.f32.mrb[0].mxu0
        %v855 = vadd.f32 %v698, %v854
        %856 = vmatprep.mubr.bf16.mxu0 0
        %857 = vmatmul.mubr.bf16.gmra.mrb[0].mxu0 %v787
        %v858 = vpop.f32.mrb[0].mxu0
        %v859 = vadd.f32 %v702, %v858
        %v860 = vpop.f32.mrb[0].mxu0
        %v861 = vadd.f32 %v704, %v860
        %v862 = vpop.f32.mrb[0].mxu0
        %v863 = vadd.f32 %v706, %v862
        %v864 = vpop.f32.mrb[0].mxu0
        %v865 = vadd.f32 %v708, %v864
        %866 = vmatprep.mubr.bf16.mxu0 0
        %867 = vmatmul.mubr.bf16.gmra.mrb[0].mxu0 %v790
        %v868 = vpop.f32.mrb[0].mxu0
        %v869 = vadd.f32 %v712, %v868
        %v870 = vpop.f32.mrb[0].mxu0
        %v871 = vadd.f32 %v714, %v870
        %v872 = vpop.f32.mrb[0].mxu0
        %v873 = vadd.f32 %v716, %v872
        %v874 = vpop.f32.mrb[0].mxu0
        %v875 = vadd.f32 %v718, %v874
        %876 = vmatprep.mubr.bf16.mxu0 0
        %877 = vmatmul.mubr.bf16.gmra.mrb[0].mxu0 %v793
        %v878 = vpop.f32.mrb[0].mxu0
        %v879 = vadd.f32 %v722, %v878
        %v880 = vpop.f32.mrb[0].mxu0
        %v881 = vadd.f32 %v724, %v880
        %v882 = vpop.f32.mrb[0].mxu0
        %v883 = vadd.f32 %v726, %v882
        %v884 = vpop.f32.mrb[0].mxu0
        %v885 = vadd.f32 %v728, %v884
        %886 = vmatprep.mubr.bf16.mxu0 0
        %887 = vmatmul.mubr.bf16.gmra.mrb[0].mxu0 %v796
        %v888 = vpop.f32.mrb[0].mxu0
        %v889 = vadd.f32 %v732, %v888
        %v890 = vpop.f32.mrb[0].mxu0
        %v891 = vadd.f32 %v734, %v890
        %v892 = vpop.f32.mrb[0].mxu0
        %v893 = vadd.f32 %v736, %v892
        %v894 = vpop.f32.mrb[0].mxu0
        %v895 = vadd.f32 %v738, %v894
        %896 = vmatprep.mubr.bf16.mxu0 0
        %897 = vmatmul.mubr.bf16.gmra.mrb[0].mxu0 %v799
        %v898 = vpop.f32.mrb[0].mxu0
        %v899 = vadd.f32 %v742, %v898
        %v900 = vpop.f32.mrb[0].mxu0
        %v901 = vadd.f32 %v744, %v900
        %v902 = vpop.f32.mrb[0].mxu0
        %v903 = vadd.f32 %v746, %v902
        %v904 = vpop.f32.mrb[0].mxu0
        %v905 = vadd.f32 %v748, %v904
        %906 = vmatprep.mubr.bf16.mxu0 0
        %907 = vmatmul.mubr.bf16.gmra.mrb[0].mxu0 %v802
        %v908 = vpop.f32.mrb[0].mxu0
        %v909 = vadd.f32 %v752, %v908
        %v910 = vpop.f32.mrb[0].mxu0
        %v911 = vadd.f32 %v754, %v910
        %v912 = vpop.f32.mrb[0].mxu0
        %v913 = vadd.f32 %v756, %v912
        %v914 = vpop.f32.mrb[0].mxu0
        %v915 = vadd.f32 %v758, %v914
        %916 = vdwg.mxu0
        %v917 = vrot.slane %v526, 2
        %v918 = vrot.slane %v527, 2
        %v919 = vrot.slane %v528, 2
        %v920 = vrot.slane %v529, 2
        %v921 = vrot.slane %v530, 2
        %v922 = vrot.slane %v531, 2
        %v923 = vrot.slane %v532, 2
        %v924 = vrot.slane %v533, 2
        %v925 = vrot.slane %v534, 2
        %v926 = vrot.slane %v535, 2
        %v927 = vrot.slane %v536, 2
        %v928 = vrot.slane %v537, 2
        %v929 = vrot.slane %v538, 2
        %v930 = vrot.slane %v539, 2
        %v931 = vrot.slane %v540, 2
        %v932 = vrot.slane %v541, 2
        %vm933 = vcmp.lt.s32.totalorder %v571, 6
        %v934 = vsel %vm933, %v931, %v932
        %v935 = vsel %vm933, %v930, %v931
        %v936 = vsel %vm933, %v929, %v930
        %v937 = vsel %vm933, %v928, %v929
        %v938 = vsel %vm933, %v927, %v928
        %v939 = vsel %vm933, %v926, %v927
        %v940 = vsel %vm933, %v925, %v926
        %v941 = vsel %vm933, %v924, %v925
        %v942 = vsel %vm933, %v923, %v924
        %v943 = vsel %vm933, %v922, %v923
        %v944 = vsel %vm933, %v921, %v922
        %v945 = vsel %vm933, %v920, %v921
        %v946 = vsel %vm933, %v919, %v920
        %v947 = vsel %vm933, %v918, %v919
        %v948 = vsel %vm933, %v917, %v918
        %v949 = vsel %vm933, %v932, %v917
        %v950 = vpack.c.bf16 %v947, %v948
        %v951 = vpack.c.bf16 %v945, %v946
        %v952 = vpack.c.bf16 %v943, %v944
        %v953 = vpack.c.bf16 %v941, %v942
        %v954 = vpack.c.bf16 %v939, %v940
        %v955 = vpack.c.bf16 %v937, %v938
        %v956 = vpack.c.bf16 %v935, %v936
        %v957 = vpack.c.bf16 %v949, %v934
        %s958 = scalar_lea.vmem %s1, 64
        %v959 = vld [vmem:[%s958] sm:$0xff]
        %v960 = vld [vmem:[%s958 + $0x8] sm:$0xff]
        %v961 = vld [vmem:[%s958 + $0x10] sm:$0xff]
        %v962 = vld [vmem:[%s958 + $0x18] sm:$0xff]
        %v967 = vunpack.c.l.b16 %v959
        %v968 = vunpack.c.h.b16 %v959
        %v969 = vunpack.c.l.b16 %v960
        %v970 = vunpack.c.h.b16 %v960
        %v971 = vunpack.c.l.b16 %v961
        %v972 = vunpack.c.h.b16 %v961
        %v973 = vunpack.c.l.b16 %v962
        %v974 = vunpack.c.h.b16 %v962
        %v975 = vpack.c.b16 %v969, %v967
        %v976 = vpack.c.b16 %v970, %v968
        %v977 = vpack.c.b16 %v973, %v971
        %v978 = vpack.c.b16 %v974, %v972
        %v984 = vsel %vm622, %v950, 0
        %v987 = vsel %vm622, %v951, 0
        %v990 = vsel %vm622, %v952, 0
        %v993 = vsel %vm622, %v953, 0
        %v996 = vsel %vm622, %v954, 0
        %v999 = vsel %vm622, %v955, 0
        %v1002 = vsel %vm622, %v956, 0
        %v1005 = vsel %vm622, %v957, 0
        %1007 = vmatprep.subr.bf16.mxu0 %v976
        %1008 = vmatpush1.bf16.msra.mxu0 %v975
        %1009 = vmatprep.subr.bf16.mxu0 %v978
        %1010 = vmatpush1.bf16.msra.mxu0 %v977
        %1011 = vmatprep.subr.bf16.mxu0 0
        %1012 = vmatpush1.bf16.msra.mxu0 0
        %1013 = vmatprep.subr.bf16.mxu0 0
        %1014 = vmatpush1.bf16.msra.mxu0 0
        %1015 = vmatprep.subr.bf16.mxu0 0
        %1016 = vmatpush1.bf16.msra.mxu0 0
        %1017 = vmatprep.subr.bf16.mxu0 0
        %1018 = vmatpush1.bf16.msra.mxu0 0
        %1019 = vmatprep.subr.bf16.mxu0 0
        %1020 = vmatpush1.bf16.msra.mxu0 0
        %1021 = vmatprep.subr.bf16.mxu0 0
        %1022 = vmatpush1.bf16.msra.mxu0 0
        %1023 = vmatprep.subr.bf16.mxu0 0
        %1024 = vmatpush1.bf16.msra.mxu0 0
        %1025 = vmatprep.subr.bf16.mxu0 0
        %1026 = vmatpush1.bf16.msra.mxu0 0
        %1027 = vmatprep.subr.bf16.mxu0 0
        %1028 = vmatpush1.bf16.msra.mxu0 0
        %1029 = vmatprep.subr.bf16.mxu0 0
        %1030 = vmatpush1.bf16.msra.mxu0 0
        %1031 = vmatprep.subr.bf16.mxu0 0
        %1032 = vmatpush1.bf16.msra.mxu0 0
        %1033 = vmatprep.subr.bf16.mxu0 0
        %1034 = vmatpush1.bf16.msra.mxu0 0
        %1035 = vmatprep.subr.bf16.mxu0 0
        %1036 = vmatpush1.bf16.msra.mxu0 0
        %1037 = vmatprep.subr.bf16.mxu0 0
        %1038 = vmatpush1.bf16.msra.mxu0 0
        %1039 = vmatprep.mubr.bf16.mxu0 0
        %1040 = vmatmul.mubr.bf16.gmra.mrb[0].mxu0 %v984
        %v1041 = vpop.f32.mrb[0].mxu0
        %v1042 = vadd.f32 0.0, %v1041
        %v1043 = vpop.f32.mrb[0].mxu0
        %v1044 = vadd.f32 0.0, %v1043
        %v1045 = vpop.f32.mrb[0].mxu0
        %v1046 = vadd.f32 0.0, %v1045
        %v1047 = vpop.f32.mrb[0].mxu0
        %v1048 = vadd.f32 0.0, %v1047
        %1049 = vmatprep.mubr.bf16.mxu0 0
        %1050 = vmatmul.mubr.bf16.gmra.mrb[0].mxu0 %v987
        %v1051 = vpop.f32.mrb[0].mxu0
        %v1052 = vadd.f32 0.0, %v1051
        %v1053 = vpop.f32.mrb[0].mxu0
        %v1054 = vadd.f32 0.0, %v1053
        %v1055 = vpop.f32.mrb[0].mxu0
        %v1056 = vadd.f32 0.0, %v1055
        %v1057 = vpop.f32.mrb[0].mxu0
        %v1058 = vadd.f32 0.0, %v1057
        %1059 = vmatprep.mubr.bf16.mxu0 0
        %1060 = vmatmul.mubr.bf16.gmra.mrb[0].mxu0 %v990
        %v1061 = vpop.f32.mrb[0].mxu0
        %v1062 = vadd.f32 0.0, %v1061
        %v1063 = vpop.f32.mrb[0].mxu0
        %v1064 = vadd.f32 0.0, %v1063
        %v1065 = vpop.f32.mrb[0].mxu0
        %v1066 = vadd.f32 0.0, %v1065
        %v1067 = vpop.f32.mrb[0].mxu0
        %v1068 = vadd.f32 0.0, %v1067
        %1069 = vmatprep.mubr.bf16.mxu0 0
        %1070 = vmatmul.mubr.bf16.gmra.mrb[0].mxu0 %v993
        %v1071 = vpop.f32.mrb[0].mxu0
        %v1072 = vadd.f32 0.0, %v1071
        %v1073 = vpop.f32.mrb[0].mxu0
        %v1074 = vadd.f32 0.0, %v1073
        %v1075 = vpop.f32.mrb[0].mxu0
        %v1076 = vadd.f32 0.0, %v1075
        %v1077 = vpop.f32.mrb[0].mxu0
        %v1078 = vadd.f32 0.0, %v1077
        %1079 = vmatprep.mubr.bf16.mxu0 0
        %1080 = vmatmul.mubr.bf16.gmra.mrb[0].mxu0 %v996
        %v1081 = vpop.f32.mrb[0].mxu0
        %v1082 = vadd.f32 0.0, %v1081
        %v1083 = vpop.f32.mrb[0].mxu0
        %v1084 = vadd.f32 0.0, %v1083
        %v1085 = vpop.f32.mrb[0].mxu0
        %v1086 = vadd.f32 0.0, %v1085
        %v1087 = vpop.f32.mrb[0].mxu0
        %v1088 = vadd.f32 0.0, %v1087
        %1089 = vmatprep.mubr.bf16.mxu0 0
        %1090 = vmatmul.mubr.bf16.gmra.mrb[0].mxu0 %v999
        %v1091 = vpop.f32.mrb[0].mxu0
        %v1092 = vadd.f32 0.0, %v1091
        %v1093 = vpop.f32.mrb[0].mxu0
        %v1094 = vadd.f32 0.0, %v1093
        %v1095 = vpop.f32.mrb[0].mxu0
        %v1096 = vadd.f32 0.0, %v1095
        %v1097 = vpop.f32.mrb[0].mxu0
        %v1098 = vadd.f32 0.0, %v1097
        %1099 = vmatprep.mubr.bf16.mxu0 0
        %1100 = vmatmul.mubr.bf16.gmra.mrb[0].mxu0 %v1002
        %v1101 = vpop.f32.mrb[0].mxu0
        %v1102 = vadd.f32 0.0, %v1101
        %v1103 = vpop.f32.mrb[0].mxu0
        %v1104 = vadd.f32 0.0, %v1103
        %v1105 = vpop.f32.mrb[0].mxu0
        %v1106 = vadd.f32 0.0, %v1105
        %v1107 = vpop.f32.mrb[0].mxu0
        %v1108 = vadd.f32 0.0, %v1107
        %1109 = vmatprep.mubr.bf16.mxu0 0
        %1110 = vmatmul.mubr.bf16.gmra.mrb[0].mxu0 %v1005
        %v1111 = vpop.f32.mrb[0].mxu0
        %v1112 = vadd.f32 0.0, %v1111
        %v1113 = vpop.f32.mrb[0].mxu0
        %v1114 = vadd.f32 0.0, %v1113
        %v1115 = vpop.f32.mrb[0].mxu0
        %v1116 = vadd.f32 0.0, %v1115
        %v1117 = vpop.f32.mrb[0].mxu0
        %v1118 = vadd.f32 0.0, %v1117
        %1119 = vdwg.mxu0
        %v1120 = vadd.f32 %v839, %v1042
        %v1121 = vadd.f32 %v841, %v1044
        %v1122 = vadd.f32 %v843, %v1046
        %v1123 = vadd.f32 %v845, %v1048
        %v1124 = vadd.f32 %v849, %v1052
        %v1125 = vadd.f32 %v851, %v1054
        %v1126 = vadd.f32 %v853, %v1056
        %v1127 = vadd.f32 %v855, %v1058
        %v1128 = vadd.f32 %v859, %v1062
        %v1129 = vadd.f32 %v861, %v1064
        %v1130 = vadd.f32 %v863, %v1066
        %v1131 = vadd.f32 %v865, %v1068
        %v1132 = vadd.f32 %v869, %v1072
        %v1133 = vadd.f32 %v871, %v1074
        %v1134 = vadd.f32 %v873, %v1076
        %v1135 = vadd.f32 %v875, %v1078
        %v1136 = vadd.f32 %v879, %v1082
        %v1137 = vadd.f32 %v881, %v1084
        %v1138 = vadd.f32 %v883, %v1086
        %v1139 = vadd.f32 %v885, %v1088
        %v1140 = vadd.f32 %v889, %v1092
        %v1141 = vadd.f32 %v891, %v1094
        %v1142 = vadd.f32 %v893, %v1096
        %v1143 = vadd.f32 %v895, %v1098
        %v1144 = vadd.f32 %v899, %v1102
        %v1145 = vadd.f32 %v901, %v1104
        %v1146 = vadd.f32 %v903, %v1106
        %v1147 = vadd.f32 %v905, %v1108
        %v1148 = vadd.f32 %v909, %v1112
        %v1149 = vadd.f32 %v911, %v1114
        %v1150 = vadd.f32 %v913, %v1116
        %v1151 = vadd.f32 %v915, %v1118
        %v1152 = vrot.slane %v526, 3
        %v1153 = vrot.slane %v527, 3
        %v1154 = vrot.slane %v528, 3
        %v1155 = vrot.slane %v529, 3
        %v1156 = vrot.slane %v530, 3
        %v1157 = vrot.slane %v531, 3
        %v1158 = vrot.slane %v532, 3
        %v1159 = vrot.slane %v533, 3
        %v1160 = vrot.slane %v534, 3
        %v1161 = vrot.slane %v535, 3
        %v1162 = vrot.slane %v536, 3
        %v1163 = vrot.slane %v537, 3
        %v1164 = vrot.slane %v538, 3
        %v1165 = vrot.slane %v539, 3
        %v1166 = vrot.slane %v540, 3
        %v1167 = vrot.slane %v541, 3
        %vm1168 = vcmp.lt.s32.totalorder %v571, 5
        %v1169 = vsel %vm1168, %v1166, %v1167
        %v1170 = vsel %vm1168, %v1165, %v1166
        %v1171 = vsel %vm1168, %v1164, %v1165
        %v1172 = vsel %vm1168, %v1163, %v1164
        %v1173 = vsel %vm1168, %v1162, %v1163
        %v1174 = vsel %vm1168, %v1161, %v1162
        %v1175 = vsel %vm1168, %v1160, %v1161
        %v1176 = vsel %vm1168, %v1159, %v1160
        %v1177 = vsel %vm1168, %v1158, %v1159
        %v1178 = vsel %vm1168, %v1157, %v1158
        %v1179 = vsel %vm1168, %v1156, %v1157
        %v1180 = vsel %vm1168, %v1155, %v1156
        %v1181 = vsel %vm1168, %v1154, %v1155
        %v1182 = vsel %vm1168, %v1153, %v1154
        %v1183 = vsel %vm1168, %v1152, %v1153
        %v1184 = vsel %vm1168, %v1167, %v1152
        %v1185 = vpack.c.bf16 %v1182, %v1183
        %v1186 = vpack.c.bf16 %v1180, %v1181
        %v1187 = vpack.c.bf16 %v1178, %v1179
        %v1188 = vpack.c.bf16 %v1176, %v1177
        %v1189 = vpack.c.bf16 %v1174, %v1175
        %v1190 = vpack.c.bf16 %v1172, %v1173
        %v1191 = vpack.c.bf16 %v1170, %v1171
        %v1192 = vpack.c.bf16 %v1184, %v1169
        %s1193 = scalar_lea.vmem %s1, 96
        %v1194 = vld [vmem:[%s1193] sm:$0xff]
        %v1195 = vld [vmem:[%s1193 + $0x8] sm:$0xff]
        %v1196 = vld [vmem:[%s1193 + $0x10] sm:$0xff]
        %v1197 = vld [vmem:[%s1193 + $0x18] sm:$0xff]
        %v1202 = vunpack.c.l.b16 %v1194
        %v1203 = vunpack.c.h.b16 %v1194
        %v1204 = vunpack.c.l.b16 %v1195
        %v1205 = vunpack.c.h.b16 %v1195
        %v1206 = vunpack.c.l.b16 %v1196
        %v1207 = vunpack.c.h.b16 %v1196
        %v1208 = vunpack.c.l.b16 %v1197
        %v1209 = vunpack.c.h.b16 %v1197
        %v1210 = vpack.c.b16 %v1204, %v1202
        %v1211 = vpack.c.b16 %v1205, %v1203
        %v1212 = vpack.c.b16 %v1208, %v1206
        %v1213 = vpack.c.b16 %v1209, %v1207
        %v1219 = vsel %vm622, %v1185, 0
        %v1222 = vsel %vm622, %v1186, 0
        %v1225 = vsel %vm622, %v1187, 0
        %v1228 = vsel %vm622, %v1188, 0
        %v1231 = vsel %vm622, %v1189, 0
        %v1234 = vsel %vm622, %v1190, 0
        %v1237 = vsel %vm622, %v1191, 0
        %v1240 = vsel %vm622, %v1192, 0
        %1242 = vmatprep.subr.bf16.mxu0 %v1211
        %1243 = vmatpush1.bf16.msra.mxu0 %v1210
        %1244 = vmatprep.subr.bf16.mxu0 %v1213
        %1245 = vmatpush1.bf16.msra.mxu0 %v1212
        %1246 = vmatprep.subr.bf16.mxu0 0
        %1247 = vmatpush1.bf16.msra.mxu0 0
        %1248 = vmatprep.subr.bf16.mxu0 0
        %1249 = vmatpush1.bf16.msra.mxu0 0
        %1250 = vmatprep.subr.bf16.mxu0 0
        %1251 = vmatpush1.bf16.msra.mxu0 0
        %1252 = vmatprep.subr.bf16.mxu0 0
        %1253 = vmatpush1.bf16.msra.mxu0 0
        %1254 = vmatprep.subr.bf16.mxu0 0
        %1255 = vmatpush1.bf16.msra.mxu0 0
        %1256 = vmatprep.subr.bf16.mxu0 0
        %1257 = vmatpush1.bf16.msra.mxu0 0
        %1258 = vmatprep.subr.bf16.mxu0 0
        %1259 = vmatpush1.bf16.msra.mxu0 0
        %1260 = vmatprep.subr.bf16.mxu0 0
        %1261 = vmatpush1.bf16.msra.mxu0 0
        %1262 = vmatprep.subr.bf16.mxu0 0
        %1263 = vmatpush1.bf16.msra.mxu0 0
        %1264 = vmatprep.subr.bf16.mxu0 0
        %1265 = vmatpush1.bf16.msra.mxu0 0
        %1266 = vmatprep.subr.bf16.mxu0 0
        %1267 = vmatpush1.bf16.msra.mxu0 0
        %1268 = vmatprep.subr.bf16.mxu0 0
        %1269 = vmatpush1.bf16.msra.mxu0 0
        %1270 = vmatprep.subr.bf16.mxu0 0
        %1271 = vmatpush1.bf16.msra.mxu0 0
        %1272 = vmatprep.subr.bf16.mxu0 0
        %1273 = vmatpush1.bf16.msra.mxu0 0
        %1274 = vmatprep.mubr.bf16.mxu0 0
        %1275 = vmatmul.mubr.bf16.gmra.mrb[0].mxu0 %v1219
        %v1276 = vpop.f32.mrb[0].mxu0
        %v1277 = vadd.f32 0.0, %v1276
        %v1278 = vpop.f32.mrb[0].mxu0
        %v1279 = vadd.f32 0.0, %v1278
        %v1280 = vpop.f32.mrb[0].mxu0
        %v1281 = vadd.f32 0.0, %v1280
        %v1282 = vpop.f32.mrb[0].mxu0
        %v1283 = vadd.f32 0.0, %v1282
        %1284 = vmatprep.mubr.bf16.mxu0 0
        %1285 = vmatmul.mubr.bf16.gmra.mrb[0].mxu0 %v1222
        %v1286 = vpop.f32.mrb[0].mxu0
        %v1287 = vadd.f32 0.0, %v1286
        %v1288 = vpop.f32.mrb[0].mxu0
        %v1289 = vadd.f32 0.0, %v1288
        %v1290 = vpop.f32.mrb[0].mxu0
        %v1291 = vadd.f32 0.0, %v1290
        %v1292 = vpop.f32.mrb[0].mxu0
        %v1293 = vadd.f32 0.0, %v1292
        %1294 = vmatprep.mubr.bf16.mxu0 0
        %1295 = vmatmul.mubr.bf16.gmra.mrb[0].mxu0 %v1225
        %v1296 = vpop.f32.mrb[0].mxu0
        %v1297 = vadd.f32 0.0, %v1296
        %v1298 = vpop.f32.mrb[0].mxu0
        %v1299 = vadd.f32 0.0, %v1298
        %v1300 = vpop.f32.mrb[0].mxu0
        %v1301 = vadd.f32 0.0, %v1300
        %v1302 = vpop.f32.mrb[0].mxu0
        %v1303 = vadd.f32 0.0, %v1302
        %1304 = vmatprep.mubr.bf16.mxu0 0
        %1305 = vmatmul.mubr.bf16.gmra.mrb[0].mxu0 %v1228
        %v1306 = vpop.f32.mrb[0].mxu0
        %v1307 = vadd.f32 0.0, %v1306
        %v1308 = vpop.f32.mrb[0].mxu0
        %v1309 = vadd.f32 0.0, %v1308
        %v1310 = vpop.f32.mrb[0].mxu0
        %v1311 = vadd.f32 0.0, %v1310
        %v1312 = vpop.f32.mrb[0].mxu0
        %v1313 = vadd.f32 0.0, %v1312
        %1314 = vmatprep.mubr.bf16.mxu0 0
        %1315 = vmatmul.mubr.bf16.gmra.mrb[0].mxu0 %v1231
        %v1316 = vpop.f32.mrb[0].mxu0
        %v1317 = vadd.f32 0.0, %v1316
        %v1318 = vpop.f32.mrb[0].mxu0
        %v1319 = vadd.f32 0.0, %v1318
        %v1320 = vpop.f32.mrb[0].mxu0
        %v1321 = vadd.f32 0.0, %v1320
        %v1322 = vpop.f32.mrb[0].mxu0
        %v1323 = vadd.f32 0.0, %v1322
        %1324 = vmatprep.mubr.bf16.mxu0 0
        %1325 = vmatmul.mubr.bf16.gmra.mrb[0].mxu0 %v1234
        %v1326 = vpop.f32.mrb[0].mxu0
        %v1327 = vadd.f32 0.0, %v1326
        %v1328 = vpop.f32.mrb[0].mxu0
        %v1329 = vadd.f32 0.0, %v1328
        %v1330 = vpop.f32.mrb[0].mxu0
        %v1331 = vadd.f32 0.0, %v1330
        %v1332 = vpop.f32.mrb[0].mxu0
        %v1333 = vadd.f32 0.0, %v1332
        %1334 = vmatprep.mubr.bf16.mxu0 0
        %1335 = vmatmul.mubr.bf16.gmra.mrb[0].mxu0 %v1237
        %v1336 = vpop.f32.mrb[0].mxu0
        %v1337 = vadd.f32 0.0, %v1336
        %v1338 = vpop.f32.mrb[0].mxu0
        %v1339 = vadd.f32 0.0, %v1338
        %v1340 = vpop.f32.mrb[0].mxu0
        %v1341 = vadd.f32 0.0, %v1340
        %v1342 = vpop.f32.mrb[0].mxu0
        %v1343 = vadd.f32 0.0, %v1342
        %1344 = vmatprep.mubr.bf16.mxu0 0
        %1345 = vmatmul.mubr.bf16.gmra.mrb[0].mxu0 %v1240
        %v1346 = vpop.f32.mrb[0].mxu0
        %v1347 = vadd.f32 0.0, %v1346
        %v1348 = vpop.f32.mrb[0].mxu0
        %v1349 = vadd.f32 0.0, %v1348
        %v1350 = vpop.f32.mrb[0].mxu0
        %v1351 = vadd.f32 0.0, %v1350
        %v1352 = vpop.f32.mrb[0].mxu0
        %v1353 = vadd.f32 0.0, %v1352
        %1354 = vdwg.mxu0
        %v1355 = vadd.f32 %v1120, %v1277
        %v1356 = vadd.f32 %v1121, %v1279
        %v1357 = vadd.f32 %v1122, %v1281
        %v1358 = vadd.f32 %v1123, %v1283
        %v1359 = vadd.f32 %v1124, %v1287
        %v1360 = vadd.f32 %v1125, %v1289
        %v1361 = vadd.f32 %v1126, %v1291
        %v1362 = vadd.f32 %v1127, %v1293
        %v1363 = vadd.f32 %v1128, %v1297
        %v1364 = vadd.f32 %v1129, %v1299
        %v1365 = vadd.f32 %v1130, %v1301
        %v1366 = vadd.f32 %v1131, %v1303
        %v1367 = vadd.f32 %v1132, %v1307
        %v1368 = vadd.f32 %v1133, %v1309
        %v1369 = vadd.f32 %v1134, %v1311
        %v1370 = vadd.f32 %v1135, %v1313
        %v1371 = vadd.f32 %v1136, %v1317
        %v1372 = vadd.f32 %v1137, %v1319
        %v1373 = vadd.f32 %v1138, %v1321
        %v1374 = vadd.f32 %v1139, %v1323
        %v1375 = vadd.f32 %v1140, %v1327
        %v1376 = vadd.f32 %v1141, %v1329
        %v1377 = vadd.f32 %v1142, %v1331
        %v1378 = vadd.f32 %v1143, %v1333
        %v1379 = vadd.f32 %v1144, %v1337
        %v1380 = vadd.f32 %v1145, %v1339
        %v1381 = vadd.f32 %v1146, %v1341
        %v1382 = vadd.f32 %v1147, %v1343
        %v1383 = vadd.f32 %v1148, %v1347
        %v1384 = vadd.f32 %v1149, %v1349
        %v1385 = vadd.f32 %v1150, %v1351
        %v1386 = vadd.f32 %v1151, %v1353
        %v1387 = vrot.slane %v526, 4
        %v1388 = vrot.slane %v527, 4
        %v1389 = vrot.slane %v528, 4
        %v1390 = vrot.slane %v529, 4
        %v1391 = vrot.slane %v530, 4
        %v1392 = vrot.slane %v531, 4
        %v1393 = vrot.slane %v532, 4
        %v1394 = vrot.slane %v533, 4
        %v1395 = vrot.slane %v534, 4
        %v1396 = vrot.slane %v535, 4
        %v1397 = vrot.slane %v536, 4
        %v1398 = vrot.slane %v537, 4
        %v1399 = vrot.slane %v538, 4
        %v1400 = vrot.slane %v539, 4
        %v1401 = vrot.slane %v540, 4
        %v1402 = vrot.slane %v541, 4
        %vm1403 = vcmp.lt.s32.totalorder %v571, 4
        %v1404 = vsel %vm1403, %v1401, %v1402
        %v1405 = vsel %vm1403, %v1400, %v1401
        %v1406 = vsel %vm1403, %v1399, %v1400
        %v1407 = vsel %vm1403, %v1398, %v1399
        %v1408 = vsel %vm1403, %v1397, %v1398
        %v1409 = vsel %vm1403, %v1396, %v1397
        %v1410 = vsel %vm1403, %v1395, %v1396
        %v1411 = vsel %vm1403, %v1394, %v1395
        %v1412 = vsel %vm1403, %v1393, %v1394
        %v1413 = vsel %vm1403, %v1392, %v1393
        %v1414 = vsel %vm1403, %v1391, %v1392
        %v1415 = vsel %vm1403, %v1390, %v1391
        %v1416 = vsel %vm1403, %v1389, %v1390
        %v1417 = vsel %vm1403, %v1388, %v1389
        %v1418 = vsel %vm1403, %v1387, %v1388
        %v1419 = vsel %vm1403, %v1402, %v1387
        %v1420 = vpack.c.bf16 %v1417, %v1418
        %v1421 = vpack.c.bf16 %v1415, %v1416
        %v1422 = vpack.c.bf16 %v1413, %v1414
        %v1423 = vpack.c.bf16 %v1411, %v1412
        %v1424 = vpack.c.bf16 %v1409, %v1410
        %v1425 = vpack.c.bf16 %v1407, %v1408
        %v1426 = vpack.c.bf16 %v1405, %v1406
        %v1427 = vpack.c.bf16 %v1419, %v1404
        %s1428 = scalar_lea.vmem %s1, 128
        %v1429 = vld [vmem:[%s1428] sm:$0xff]
        %v1430 = vld [vmem:[%s1428 + $0x8] sm:$0xff]
        %v1431 = vld [vmem:[%s1428 + $0x10] sm:$0xff]
        %v1432 = vld [vmem:[%s1428 + $0x18] sm:$0xff]
        %v1437 = vunpack.c.l.b16 %v1429
        %v1438 = vunpack.c.h.b16 %v1429
        %v1439 = vunpack.c.l.b16 %v1430
        %v1440 = vunpack.c.h.b16 %v1430
        %v1441 = vunpack.c.l.b16 %v1431
        %v1442 = vunpack.c.h.b16 %v1431
        %v1443 = vunpack.c.l.b16 %v1432
        %v1444 = vunpack.c.h.b16 %v1432
        %v1445 = vpack.c.b16 %v1439, %v1437
        %v1446 = vpack.c.b16 %v1440, %v1438
        %v1447 = vpack.c.b16 %v1443, %v1441
        %v1448 = vpack.c.b16 %v1444, %v1442
        %v1454 = vsel %vm622, %v1420, 0
        %v1457 = vsel %vm622, %v1421, 0
        %v1460 = vsel %vm622, %v1422, 0
        %v1463 = vsel %vm622, %v1423, 0
        %v1466 = vsel %vm622, %v1424, 0
        %v1469 = vsel %vm622, %v1425, 0
        %v1472 = vsel %vm622, %v1426, 0
        %v1475 = vsel %vm622, %v1427, 0
        %1477 = vmatprep.subr.bf16.mxu0 %v1446
        %1478 = vmatpush1.bf16.msra.mxu0 %v1445
        %1479 = vmatprep.subr.bf16.mxu0 %v1448
        %1480 = vmatpush1.bf16.msra.mxu0 %v1447
        %1481 = vmatprep.subr.bf16.mxu0 0
        %1482 = vmatpush1.bf16.msra.mxu0 0
        %1483 = vmatprep.subr.bf16.mxu0 0
        %1484 = vmatpush1.bf16.msra.mxu0 0
        %1485 = vmatprep.subr.bf16.mxu0 0
        %1486 = vmatpush1.bf16.msra.mxu0 0
        %1487 = vmatprep.subr.bf16.mxu0 0
        %1488 = vmatpush1.bf16.msra.mxu0 0
        %1489 = vmatprep.subr.bf16.mxu0 0
        %1490 = vmatpush1.bf16.msra.mxu0 0
        %1491 = vmatprep.subr.bf16.mxu0 0
        %1492 = vmatpush1.bf16.msra.mxu0 0
        %1493 = vmatprep.subr.bf16.mxu0 0
        %1494 = vmatpush1.bf16.msra.mxu0 0
        %1495 = vmatprep.subr.bf16.mxu0 0
        %1496 = vmatpush1.bf16.msra.mxu0 0
        %1497 = vmatprep.subr.bf16.mxu0 0
        %1498 = vmatpush1.bf16.msra.mxu0 0
        %1499 = vmatprep.subr.bf16.mxu0 0
        %1500 = vmatpush1.bf16.msra.mxu0 0
        %1501 = vmatprep.subr.bf16.mxu0 0
        %1502 = vmatpush1.bf16.msra.mxu0 0
        %1503 = vmatprep.subr.bf16.mxu0 0
        %1504 = vmatpush1.bf16.msra.mxu0 0
        %1505 = vmatprep.subr.bf16.mxu0 0
        %1506 = vmatpush1.bf16.msra.mxu0 0
        %1507 = vmatprep.subr.bf16.mxu0 0
        %1508 = vmatpush1.bf16.msra.mxu0 0
        %1509 = vmatprep.mubr.bf16.mxu0 0
        %1510 = vmatmul.mubr.bf16.gmra.mrb[0].mxu0 %v1454
        %v1511 = vpop.f32.mrb[0].mxu0
        %v1512 = vadd.f32 0.0, %v1511
        %v1513 = vpop.f32.mrb[0].mxu0
        %v1514 = vadd.f32 0.0, %v1513
        %v1515 = vpop.f32.mrb[0].mxu0
        %v1516 = vadd.f32 0.0, %v1515
        %v1517 = vpop.f32.mrb[0].mxu0
        %v1518 = vadd.f32 0.0, %v1517
        %1519 = vmatprep.mubr.bf16.mxu0 0
        %1520 = vmatmul.mubr.bf16.gmra.mrb[0].mxu0 %v1457
        %v1521 = vpop.f32.mrb[0].mxu0
        %v1522 = vadd.f32 0.0, %v1521
        %v1523 = vpop.f32.mrb[0].mxu0
        %v1524 = vadd.f32 0.0, %v1523
        %v1525 = vpop.f32.mrb[0].mxu0
        %v1526 = vadd.f32 0.0, %v1525
        %v1527 = vpop.f32.mrb[0].mxu0
        %v1528 = vadd.f32 0.0, %v1527
        %1529 = vmatprep.mubr.bf16.mxu0 0
        %1530 = vmatmul.mubr.bf16.gmra.mrb[0].mxu0 %v1460
        %v1531 = vpop.f32.mrb[0].mxu0
        %v1532 = vadd.f32 0.0, %v1531
        %v1533 = vpop.f32.mrb[0].mxu0
        %v1534 = vadd.f32 0.0, %v1533
        %v1535 = vpop.f32.mrb[0].mxu0
        %v1536 = vadd.f32 0.0, %v1535
        %v1537 = vpop.f32.mrb[0].mxu0
        %v1538 = vadd.f32 0.0, %v1537
        %1539 = vmatprep.mubr.bf16.mxu0 0
        %1540 = vmatmul.mubr.bf16.gmra.mrb[0].mxu0 %v1463
        %v1541 = vpop.f32.mrb[0].mxu0
        %v1542 = vadd.f32 0.0, %v1541
        %v1543 = vpop.f32.mrb[0].mxu0
        %v1544 = vadd.f32 0.0, %v1543
        %v1545 = vpop.f32.mrb[0].mxu0
        %v1546 = vadd.f32 0.0, %v1545
        %v1547 = vpop.f32.mrb[0].mxu0
        %v1548 = vadd.f32 0.0, %v1547
        %1549 = vmatprep.mubr.bf16.mxu0 0
        %1550 = vmatmul.mubr.bf16.gmra.mrb[0].mxu0 %v1466
        %v1551 = vpop.f32.mrb[0].mxu0
        %v1552 = vadd.f32 0.0, %v1551
        %v1553 = vpop.f32.mrb[0].mxu0
        %v1554 = vadd.f32 0.0, %v1553
        %v1555 = vpop.f32.mrb[0].mxu0
        %v1556 = vadd.f32 0.0, %v1555
        %v1557 = vpop.f32.mrb[0].mxu0
        %v1558 = vadd.f32 0.0, %v1557
        %1559 = vmatprep.mubr.bf16.mxu0 0
        %1560 = vmatmul.mubr.bf16.gmra.mrb[0].mxu0 %v1469
        %v1561 = vpop.f32.mrb[0].mxu0
        %v1562 = vadd.f32 0.0, %v1561
        %v1563 = vpop.f32.mrb[0].mxu0
        %v1564 = vadd.f32 0.0, %v1563
        %v1565 = vpop.f32.mrb[0].mxu0
        %v1566 = vadd.f32 0.0, %v1565
        %v1567 = vpop.f32.mrb[0].mxu0
        %v1568 = vadd.f32 0.0, %v1567
        %1569 = vmatprep.mubr.bf16.mxu0 0
        %1570 = vmatmul.mubr.bf16.gmra.mrb[0].mxu0 %v1472
        %v1571 = vpop.f32.mrb[0].mxu0
        %v1572 = vadd.f32 0.0, %v1571
        %v1573 = vpop.f32.mrb[0].mxu0
        %v1574 = vadd.f32 0.0, %v1573
        %v1575 = vpop.f32.mrb[0].mxu0
        %v1576 = vadd.f32 0.0, %v1575
        %v1577 = vpop.f32.mrb[0].mxu0
        %v1578 = vadd.f32 0.0, %v1577
        %1579 = vmatprep.mubr.bf16.mxu0 0
        %1580 = vmatmul.mubr.bf16.gmra.mrb[0].mxu0 %v1475
        %v1581 = vpop.f32.mrb[0].mxu0
        %v1582 = vadd.f32 0.0, %v1581
        %v1583 = vpop.f32.mrb[0].mxu0
        %v1584 = vadd.f32 0.0, %v1583
        %v1585 = vpop.f32.mrb[0].mxu0
        %v1586 = vadd.f32 0.0, %v1585
        %v1587 = vpop.f32.mrb[0].mxu0
        %v1588 = vadd.f32 0.0, %v1587
        %1589 = vdwg.mxu0
        %v1590 = vadd.f32 %v1355, %v1512
        %v1591 = vadd.f32 %v1356, %v1514
        %v1592 = vadd.f32 %v1357, %v1516
        %v1593 = vadd.f32 %v1358, %v1518
        %v1594 = vadd.f32 %v1359, %v1522
        %v1595 = vadd.f32 %v1360, %v1524
        %v1596 = vadd.f32 %v1361, %v1526
        %v1597 = vadd.f32 %v1362, %v1528
        %v1598 = vadd.f32 %v1363, %v1532
        %v1599 = vadd.f32 %v1364, %v1534
        %v1600 = vadd.f32 %v1365, %v1536
        %v1601 = vadd.f32 %v1366, %v1538
        %v1602 = vadd.f32 %v1367, %v1542
        %v1603 = vadd.f32 %v1368, %v1544
        %v1604 = vadd.f32 %v1369, %v1546
        %v1605 = vadd.f32 %v1370, %v1548
        %v1606 = vadd.f32 %v1371, %v1552
        %v1607 = vadd.f32 %v1372, %v1554
        %v1608 = vadd.f32 %v1373, %v1556
        %v1609 = vadd.f32 %v1374, %v1558
        %v1610 = vadd.f32 %v1375, %v1562
        %v1611 = vadd.f32 %v1376, %v1564
        %v1612 = vadd.f32 %v1377, %v1566
        %v1613 = vadd.f32 %v1378, %v1568
        %v1614 = vadd.f32 %v1379, %v1572
        %v1615 = vadd.f32 %v1380, %v1574
        %v1616 = vadd.f32 %v1381, %v1576
        %v1617 = vadd.f32 %v1382, %v1578
        %v1618 = vadd.f32 %v1383, %v1582
        %v1619 = vadd.f32 %v1384, %v1584
        %v1620 = vadd.f32 %v1385, %v1586
        %v1621 = vadd.f32 %v1386, %v1588
        %v1622 = vrot.slane %v1590, 1
        %v1623 = vrot.slane %v1591, 1
        %v1624 = vrot.slane %v1592, 1
        %v1625 = vrot.slane %v1593, 1
        %v1626 = vrot.slane %v1594, 1
        %v1627 = vrot.slane %v1595, 1
        %v1628 = vrot.slane %v1596, 1
        %v1629 = vrot.slane %v1597, 1
        %v1630 = vrot.slane %v1598, 1
        %v1631 = vrot.slane %v1599, 1
        %v1632 = vrot.slane %v1600, 1
        %v1633 = vrot.slane %v1601, 1
        %v1634 = vrot.slane %v1602, 1
        %v1635 = vrot.slane %v1603, 1
        %v1636 = vrot.slane %v1604, 1
        %v1637 = vrot.slane %v1605, 1
        %v1638 = vrot.slane %v1606, 1
        %v1639 = vrot.slane %v1607, 1
        %v1640 = vrot.slane %v1608, 1
        %v1641 = vrot.slane %v1609, 1
        %v1642 = vrot.slane %v1610, 1
        %v1643 = vrot.slane %v1611, 1
        %v1644 = vrot.slane %v1612, 1
        %v1645 = vrot.slane %v1613, 1
        %v1646 = vrot.slane %v1614, 1
        %v1647 = vrot.slane %v1615, 1
        %v1648 = vrot.slane %v1616, 1
        %v1649 = vrot.slane %v1617, 1
        %v1650 = vrot.slane %v1618, 1
        %v1651 = vrot.slane %v1619, 1
        %v1652 = vrot.slane %v1620, 1
        %v1653 = vrot.slane %v1621, 1
        %v1654 = vsel %vm572, %v1650, %v1652
        %v1655 = vsel %vm572, %v1651, %v1653
        %v1656 = vsel %vm572, %v1648, %v1650
        %v1657 = vsel %vm572, %v1649, %v1651
        %v1658 = vsel %vm572, %v1646, %v1648
        %v1659 = vsel %vm572, %v1647, %v1649
        %v1660 = vsel %vm572, %v1644, %v1646
        %v1661 = vsel %vm572, %v1645, %v1647
        %v1662 = vsel %vm572, %v1642, %v1644
        %v1663 = vsel %vm572, %v1643, %v1645
        %v1664 = vsel %vm572, %v1640, %v1642
        %v1665 = vsel %vm572, %v1641, %v1643
        %v1666 = vsel %vm572, %v1638, %v1640
        %v1667 = vsel %vm572, %v1639, %v1641
        %v1668 = vsel %vm572, %v1636, %v1638
        %v1669 = vsel %vm572, %v1637, %v1639
        %v1670 = vsel %vm572, %v1634, %v1636
        %v1671 = vsel %vm572, %v1635, %v1637
        %v1672 = vsel %vm572, %v1632, %v1634
        %v1673 = vsel %vm572, %v1633, %v1635
        %v1674 = vsel %vm572, %v1630, %v1632
        %v1675 = vsel %vm572, %v1631, %v1633
        %v1676 = vsel %vm572, %v1628, %v1630
        %v1677 = vsel %vm572, %v1629, %v1631
        %v1678 = vsel %vm572, %v1626, %v1628
        %v1679 = vsel %vm572, %v1627, %v1629
        %v1680 = vsel %vm572, %v1624, %v1626
        %v1681 = vsel %vm572, %v1625, %v1627
        %v1682 = vsel %vm572, %v1622, %v1624
        %v1683 = vsel %vm572, %v1623, %v1625
        %v1684 = vsel %vm572, %v1652, %v1622
        %v1685 = vsel %vm572, %v1653, %v1623
        %v1686 = vmax.f32 %v1590, %v1682
        %v1687 = vmax.f32 %v1591, %v1683
        %v1688 = vmax.f32 %v1592, %v1680
        %v1689 = vmax.f32 %v1593, %v1681
        %v1690 = vmax.f32 %v1594, %v1678
        %v1691 = vmax.f32 %v1595, %v1679
        %v1692 = vmax.f32 %v1596, %v1676
        %v1693 = vmax.f32 %v1597, %v1677
        %v1694 = vmax.f32 %v1598, %v1674
        %v1695 = vmax.f32 %v1599, %v1675
        %v1696 = vmax.f32 %v1600, %v1672
        %v1697 = vmax.f32 %v1601, %v1673
        %v1698 = vmax.f32 %v1602, %v1670
        %v1699 = vmax.f32 %v1603, %v1671
        %v1700 = vmax.f32 %v1604, %v1668
        %v1701 = vmax.f32 %v1605, %v1669
        %v1702 = vmax.f32 %v1606, %v1666
        %v1703 = vmax.f32 %v1607, %v1667
        %v1704 = vmax.f32 %v1608, %v1664
        %v1705 = vmax.f32 %v1609, %v1665
        %v1706 = vmax.f32 %v1610, %v1662
        %v1707 = vmax.f32 %v1611, %v1663
        %v1708 = vmax.f32 %v1612, %v1660
        %v1709 = vmax.f32 %v1613, %v1661
        %v1710 = vmax.f32 %v1614, %v1658
        %v1711 = vmax.f32 %v1615, %v1659
        %v1712 = vmax.f32 %v1616, %v1656
        %v1713 = vmax.f32 %v1617, %v1657
        %v1714 = vmax.f32 %v1618, %v1654
        %v1715 = vmax.f32 %v1619, %v1655
        %v1716 = vmax.f32 %v1620, %v1684
        %v1717 = vmax.f32 %v1621, %v1685
        %1718 = vrot.lane.b32.xlu0 %v1686, 122
        %v1719 = vpop.permute.xlu0 %1718
        %1720 = vrot.lane.b32.xlu0 %v1688, 122
        %v1721 = vpop.permute.xlu0 %1720
        %1722 = vrot.lane.b32.xlu0 %v1690, 122
        %v1723 = vpop.permute.xlu0 %1722
        %1724 = vrot.lane.b32.xlu0 %v1692, 122
        %v1725 = vpop.permute.xlu0 %1724
        %1726 = vrot.lane.b32.xlu0 %v1694, 122
        %v1727 = vpop.permute.xlu0 %1726
        %1728 = vrot.lane.b32.xlu0 %v1696, 122
        %v1729 = vpop.permute.xlu0 %1728
        %1730 = vrot.lane.b32.xlu0 %v1698, 122
        %v1731 = vpop.permute.xlu0 %1730
        %1732 = vrot.lane.b32.xlu0 %v1700, 122
        %v1733 = vpop.permute.xlu0 %1732
        %1734 = vrot.lane.b32.xlu0 %v1702, 122
        %v1735 = vpop.permute.xlu0 %1734
        %1736 = vrot.lane.b32.xlu0 %v1704, 122
        %v1737 = vpop.permute.xlu0 %1736
        %1738 = vrot.lane.b32.xlu0 %v1706, 122
        %v1739 = vpop.permute.xlu0 %1738
        %1740 = vrot.lane.b32.xlu0 %v1708, 122
        %v1741 = vpop.permute.xlu0 %1740
        %1742 = vrot.lane.b32.xlu0 %v1710, 122
        %v1743 = vpop.permute.xlu0 %1742
        %1744 = vrot.lane.b32.xlu0 %v1712, 122
        %v1745 = vpop.permute.xlu0 %1744
        %1746 = vrot.lane.b32.xlu0 %v1714, 122
        %v1747 = vpop.permute.xlu0 %1746
        %1748 = vrot.lane.b32.xlu0 %v1716, 122
        %v1749 = vpop.permute.xlu0 %1748
        %1750 = vrot.lane.b32.xlu0 %v1687, 122
        %v1751 = vpop.permute.xlu0 %1750
        %1752 = vrot.lane.b32.xlu0 %v1689, 122
        %v1753 = vpop.permute.xlu0 %1752
        %1754 = vrot.lane.b32.xlu0 %v1691, 122
        %v1755 = vpop.permute.xlu0 %1754
        %1756 = vrot.lane.b32.xlu0 %v1693, 122
        %v1757 = vpop.permute.xlu0 %1756
        %1758 = vrot.lane.b32.xlu0 %v1695, 122
        %v1759 = vpop.permute.xlu0 %1758
        %1760 = vrot.lane.b32.xlu0 %v1697, 122
        %v1761 = vpop.permute.xlu0 %1760
        %1762 = vrot.lane.b32.xlu0 %v1699, 122
        %v1763 = vpop.permute.xlu0 %1762
        %1764 = vrot.lane.b32.xlu0 %v1701, 122
        %v1765 = vpop.permute.xlu0 %1764
        %1766 = vrot.lane.b32.xlu0 %v1703, 122
        %v1767 = vpop.permute.xlu0 %1766
        %1768 = vrot.lane.b32.xlu0 %v1705, 122
        %v1769 = vpop.permute.xlu0 %1768
        %1770 = vrot.lane.b32.xlu0 %v1707, 122
        %v1771 = vpop.permute.xlu0 %1770
        %1772 = vrot.lane.b32.xlu0 %v1709, 122
        %v1773 = vpop.permute.xlu0 %1772
        %1774 = vrot.lane.b32.xlu0 %v1711, 122
        %v1775 = vpop.permute.xlu0 %1774
        %1776 = vrot.lane.b32.xlu0 %v1713, 122
        %v1777 = vpop.permute.xlu0 %1776
        %1778 = vrot.lane.b32.xlu0 %v1715, 122
        %v1779 = vpop.permute.xlu0 %1778
        %1780 = vrot.lane.b32.xlu0 %v1717, 122
        %v1781 = vpop.permute.xlu0 %1780
        %v1782 = vlaneseq
        %v1783 = vand.u32 %v1782, 127
        %vm1784 = vcmp.lt.s32.totalorder %v1783, 122
        %v1785 = vsel %vm1784, %v1719, %v1751
        %v1786 = vsel %vm1784, %v1721, %v1753
        %v1787 = vsel %vm1784, %v1723, %v1755
        %v1788 = vsel %vm1784, %v1725, %v1757
        %v1789 = vsel %vm1784, %v1727, %v1759
        %v1790 = vsel %vm1784, %v1729, %v1761
        %v1791 = vsel %vm1784, %v1731, %v1763
        %v1792 = vsel %vm1784, %v1733, %v1765
        %v1793 = vsel %vm1784, %v1735, %v1767
        %v1794 = vsel %vm1784, %v1737, %v1769
        %v1795 = vsel %vm1784, %v1739, %v1771
        %v1796 = vsel %vm1784, %v1741, %v1773
        %v1797 = vsel %vm1784, %v1743, %v1775
        %v1798 = vsel %vm1784, %v1745, %v1777
        %v1799 = vsel %vm1784, %v1747, %v1779
        %v1800 = vsel %vm1784, %v1749, %v1781
        %v1801 = vsel %vm1784, %v1751, %v1719
        %v1802 = vsel %vm1784, %v1753, %v1721
        %v1803 = vsel %vm1784, %v1755, %v1723
        %v1804 = vsel %vm1784, %v1757, %v1725
        %v1805 = vsel %vm1784, %v1759, %v1727
        %v1806 = vsel %vm1784, %v1761, %v1729
        %v1807 = vsel %vm1784, %v1763, %v1731
        %v1808 = vsel %vm1784, %v1765, %v1733
        %v1809 = vsel %vm1784, %v1767, %v1735
        %v1810 = vsel %vm1784, %v1769, %v1737
        %v1811 = vsel %vm1784, %v1771, %v1739
        %v1812 = vsel %vm1784, %v1773, %v1741
        %v1813 = vsel %vm1784, %v1775, %v1743
        %v1814 = vsel %vm1784, %v1777, %v1745
        %v1815 = vsel %vm1784, %v1779, %v1747
        %v1816 = vsel %vm1784, %v1781, %v1749
        %v1817 = vmax.f32 %v1686, %v1785
        %v1818 = vmax.f32 %v1687, %v1801
        %v1819 = vmax.f32 %v1688, %v1786
        %v1820 = vmax.f32 %v1689, %v1802
        %v1821 = vmax.f32 %v1690, %v1787
        %v1822 = vmax.f32 %v1691, %v1803
        %v1823 = vmax.f32 %v1692, %v1788
        %v1824 = vmax.f32 %v1693, %v1804
        %v1825 = vmax.f32 %v1694, %v1789
        %v1826 = vmax.f32 %v1695, %v1805
        %v1827 = vmax.f32 %v1696, %v1790
        %v1828 = vmax.f32 %v1697, %v1806
        %v1829 = vmax.f32 %v1698, %v1791
        %v1830 = vmax.f32 %v1699, %v1807
        %v1831 = vmax.f32 %v1700, %v1792
        %v1832 = vmax.f32 %v1701, %v1808
        %v1833 = vmax.f32 %v1702, %v1793
        %v1834 = vmax.f32 %v1703, %v1809
        %v1835 = vmax.f32 %v1704, %v1794
        %v1836 = vmax.f32 %v1705, %v1810
        %v1837 = vmax.f32 %v1706, %v1795
        %v1838 = vmax.f32 %v1707, %v1811
        %v1839 = vmax.f32 %v1708, %v1796
        %v1840 = vmax.f32 %v1709, %v1812
        %v1841 = vmax.f32 %v1710, %v1797
        %v1842 = vmax.f32 %v1711, %v1813
        %v1843 = vmax.f32 %v1712, %v1798
        %v1844 = vmax.f32 %v1713, %v1814
        %v1845 = vmax.f32 %v1714, %v1799
        %v1846 = vmax.f32 %v1715, %v1815
        %v1847 = vmax.f32 %v1716, %v1800
        %v1848 = vmax.f32 %v1717, %v1816
        %v1849 = vpack.c.bf16 %v1819, %v1817
        %v1850 = vpack.c.bf16 %v1820, %v1818
        %v1851 = vpack.c.bf16 %v1823, %v1821
        %v1852 = vpack.c.bf16 %v1824, %v1822
        %v1853 = vpack.c.bf16 %v1827, %v1825
        %v1854 = vpack.c.bf16 %v1828, %v1826
        %v1855 = vpack.c.bf16 %v1831, %v1829
        %v1856 = vpack.c.bf16 %v1832, %v1830
        %v1857 = vpack.c.bf16 %v1835, %v1833
        %v1858 = vpack.c.bf16 %v1836, %v1834
        %v1859 = vpack.c.bf16 %v1839, %v1837
        %v1860 = vpack.c.bf16 %v1840, %v1838
        %v1861 = vpack.c.bf16 %v1843, %v1841
        %v1862 = vpack.c.bf16 %v1844, %v1842
        %v1863 = vpack.c.bf16 %v1847, %v1845
        %v1864 = vpack.c.bf16 %v1848, %v1846
        %v1865 = vld [vmem:[#allocation3] sm:$0xf]
        %v1866 = vld [vmem:[#allocation3 + $0x4] sm:$0xf]
        %v1867 = vld [vmem:[#allocation3 + $0x8] sm:$0xf]
        %v1868 = vld [vmem:[#allocation3 + $0xc] sm:$0xf]
        %v1869 = vld [vmem:[#allocation3 + $0x10] sm:$0xf]
        %v1870 = vld [vmem:[#allocation3 + $0x14] sm:$0xf]
        %v1871 = vld [vmem:[#allocation3 + $0x18] sm:$0xf]
        %v1872 = vld [vmem:[#allocation3 + $0x1c] sm:$0xf]
        %v1873 = vld [vmem:[#allocation3 + $0x20] sm:$0xf]
        %v1874 = vld [vmem:[#allocation3 + $0x24] sm:$0xf]
        %v1875 = vld [vmem:[#allocation3 + $0x28] sm:$0xf]
        %v1876 = vld [vmem:[#allocation3 + $0x2c] sm:$0xf]
        %v1877 = vld [vmem:[#allocation3 + $0x30] sm:$0xf]
        %v1878 = vld [vmem:[#allocation3 + $0x34] sm:$0xf]
        %v1879 = vld [vmem:[#allocation3 + $0x38] sm:$0xf]
        %v1880 = vld [vmem:[#allocation3 + $0x3c] sm:$0xf]
        %v1881 = vld [vmem:[#allocation3 + $0x40] sm:$0xf]
        %v1882 = vld [vmem:[#allocation3 + $0x44] sm:$0xf]
        %v1883 = vld [vmem:[#allocation3 + $0x48] sm:$0xf]
        %v1884 = vld [vmem:[#allocation3 + $0x4c] sm:$0xf]
        %v1885 = vld [vmem:[#allocation3 + $0x50] sm:$0xf]
        %v1886 = vld [vmem:[#allocation3 + $0x54] sm:$0xf]
        %v1887 = vld [vmem:[#allocation3 + $0x58] sm:$0xf]
        %v1888 = vld [vmem:[#allocation3 + $0x5c] sm:$0xf]
        %v1889 = vld [vmem:[#allocation3 + $0x60] sm:$0xf]
        %v1890 = vld [vmem:[#allocation3 + $0x64] sm:$0xf]
        %v1891 = vld [vmem:[#allocation3 + $0x68] sm:$0xf]
        %v1892 = vld [vmem:[#allocation3 + $0x6c] sm:$0xf]
        %v1893 = vld [vmem:[#allocation3 + $0x70] sm:$0xf]
        %v1894 = vld [vmem:[#allocation3 + $0x74] sm:$0xf]
        %v1895 = vld [vmem:[#allocation3 + $0x78] sm:$0xf]
        %v1896 = vld [vmem:[#allocation3 + $0x7c] sm:$0xf]
        %v1897 = vld [vmem:[%s3] sm:$0x1]
        %v1899 = vlaneseq
        %v1900 = vshrl.u32 %v1899, 7
        %v1901 = vsub.s32 0, %v1900
        %v1902 = vrot.slane %v1897, %v1901
        %v1936 = vunpack.c.l.b16 %v1865
        %v1937 = vunpack.c.l.b16 %v1866
        %v1938 = vunpack.c.l.b16 %v1867
        %v1939 = vunpack.c.l.b16 %v1868
        %v1940 = vunpack.c.l.b16 %v1869
        %v1941 = vunpack.c.l.b16 %v1870
        %v1942 = vunpack.c.l.b16 %v1871
        %v1943 = vunpack.c.l.b16 %v1872
        %v1944 = vunpack.c.l.b16 %v1873
        %v1945 = vunpack.c.l.b16 %v1874
        %v1946 = vunpack.c.l.b16 %v1875
        %v1947 = vunpack.c.l.b16 %v1876
        %v1948 = vunpack.c.l.b16 %v1877
        %v1949 = vunpack.c.l.b16 %v1878
        %v1950 = vunpack.c.l.b16 %v1879
        %v1951 = vunpack.c.l.b16 %v1880
        %v1952 = vunpack.c.l.b16 %v1881
        %v1953 = vunpack.c.l.b16 %v1882
        %v1954 = vunpack.c.l.b16 %v1883
        %v1955 = vunpack.c.l.b16 %v1884
        %v1956 = vunpack.c.l.b16 %v1885
        %v1957 = vunpack.c.l.b16 %v1886
        %v1958 = vunpack.c.l.b16 %v1887
        %v1959 = vunpack.c.l.b16 %v1888
        %v1960 = vunpack.c.l.b16 %v1889
        %v1961 = vunpack.c.l.b16 %v1890
        %v1962 = vunpack.c.l.b16 %v1891
        %v1963 = vunpack.c.l.b16 %v1892
        %v1964 = vunpack.c.l.b16 %v1893
        %v1965 = vunpack.c.l.b16 %v1894
        %v1966 = vunpack.c.l.b16 %v1895
        %v1967 = vunpack.c.l.b16 %v1896
        %v1968 = vpack.c.b16 %v1937, %v1936
        %v1969 = vpack.c.b16 %v1939, %v1938
        %v1970 = vpack.c.b16 %v1941, %v1940
        %v1971 = vpack.c.b16 %v1943, %v1942
        %v1972 = vpack.c.b16 %v1945, %v1944
        %v1973 = vpack.c.b16 %v1947, %v1946
        %v1974 = vpack.c.b16 %v1949, %v1948
        %v1975 = vpack.c.b16 %v1951, %v1950
        %v1976 = vpack.c.b16 %v1953, %v1952
        %v1977 = vpack.c.b16 %v1955, %v1954
        %v1978 = vpack.c.b16 %v1957, %v1956
        %v1979 = vpack.c.b16 %v1959, %v1958
        %v1980 = vpack.c.b16 %v1961, %v1960
        %v1981 = vpack.c.b16 %v1963, %v1962
        %v1982 = vpack.c.b16 %v1965, %v1964
        %v1983 = vpack.c.b16 %v1967, %v1966
        %2000 = vmatprep.subr.bf16.mxu0 0
        %2001 = vmatpush1.bf16.msra.mxu0 %v1968
        %2002 = vmatprep.subr.bf16.mxu0 0
        %2003 = vmatpush1.bf16.msra.mxu0 %v1969
        %2004 = vmatprep.subr.bf16.mxu0 0
        %2005 = vmatpush1.bf16.msra.mxu0 %v1970
        %2006 = vmatprep.subr.bf16.mxu0 0
        %2007 = vmatpush1.bf16.msra.mxu0 %v1971
        %2008 = vmatprep.subr.bf16.mxu0 0
        %2009 = vmatpush1.bf16.msra.mxu0 %v1972
        %2010 = vmatprep.subr.bf16.mxu0 0
        %2011 = vmatpush1.bf16.msra.mxu0 %v1973
        %2012 = vmatprep.subr.bf16.mxu0 0
        %2013 = vmatpush1.bf16.msra.mxu0 %v1974
        %2014 = vmatprep.subr.bf16.mxu0 0
        %2015 = vmatpush1.bf16.msra.mxu0 %v1975
        %2016 = vmatprep.subr.bf16.mxu0 0
        %2017 = vmatpush1.bf16.msra.mxu0 %v1976
        %2018 = vmatprep.subr.bf16.mxu0 0
        %2019 = vmatpush1.bf16.msra.mxu0 %v1977
        %2020 = vmatprep.subr.bf16.mxu0 0
        %2021 = vmatpush1.bf16.msra.mxu0 %v1978
        %2022 = vmatprep.subr.bf16.mxu0 0
        %2023 = vmatpush1.bf16.msra.mxu0 %v1979
        %2024 = vmatprep.subr.bf16.mxu0 0
        %2025 = vmatpush1.bf16.msra.mxu0 %v1980
        %2026 = vmatprep.subr.bf16.mxu0 0
        %2027 = vmatpush1.bf16.msra.mxu0 %v1981
        %2028 = vmatprep.subr.bf16.mxu0 0
        %2029 = vmatpush1.bf16.msra.mxu0 %v1982
        %2030 = vmatprep.subr.bf16.mxu0 0
        %2031 = vmatpush1.bf16.msra.mxu0 %v1983
        %2032 = vmatprep.mubr.bf16.mxu0 %v1850
        %2033 = vmatmul.mubr.bf16.gmra.mrb[0].mxu0 %v1849
        %v2034 = vpop.f32.mrb[0].mxu0
        %v2035 = vadd.f32 %v1902, %v2034
        %v2036 = vpop.f32.mrb[0].mxu0
        %v2037 = vpop.f32.mrb[0].mxu0
        %v2038 = vadd.f32 %v1902, %v2037
        %v2039 = vpop.f32.mrb[0].mxu0
        %2040 = vmatprep.mubr.bf16.mxu0 %v1852
        %2041 = vmatmul.mubr.bf16.gmra.mrb[0].mxu0 %v1851
        %v2042 = vpop.f32.mrb[0].mxu0
        %v2043 = vadd.f32 %v1902, %v2042
        %v2044 = vpop.f32.mrb[0].mxu0
        %v2045 = vpop.f32.mrb[0].mxu0
        %v2046 = vadd.f32 %v1902, %v2045
        %v2047 = vpop.f32.mrb[0].mxu0
        %2048 = vmatprep.mubr.bf16.mxu0 %v1854
        %2049 = vmatmul.mubr.bf16.gmra.mrb[0].mxu0 %v1853
        %v2050 = vpop.f32.mrb[0].mxu0
        %v2051 = vadd.f32 %v1902, %v2050
        %v2052 = vpop.f32.mrb[0].mxu0
        %v2053 = vpop.f32.mrb[0].mxu0
        %v2054 = vadd.f32 %v1902, %v2053
        %v2055 = vpop.f32.mrb[0].mxu0
        %2056 = vmatprep.mubr.bf16.mxu0 %v1856
        %2057 = vmatmul.mubr.bf16.gmra.mrb[0].mxu0 %v1855
        %v2058 = vpop.f32.mrb[0].mxu0
        %v2059 = vadd.f32 %v1902, %v2058
        %v2060 = vpop.f32.mrb[0].mxu0
        %v2061 = vpop.f32.mrb[0].mxu0
        %v2062 = vadd.f32 %v1902, %v2061
        %v2063 = vpop.f32.mrb[0].mxu0
        %2064 = vmatprep.mubr.bf16.mxu0 %v1858
        %2065 = vmatmul.mubr.bf16.gmra.mrb[0].mxu0 %v1857
        %v2066 = vpop.f32.mrb[0].mxu0
        %v2067 = vadd.f32 %v1902, %v2066
        %v2068 = vpop.f32.mrb[0].mxu0
        %v2069 = vpop.f32.mrb[0].mxu0
        %v2070 = vadd.f32 %v1902, %v2069
        %v2071 = vpop.f32.mrb[0].mxu0
        %2072 = vmatprep.mubr.bf16.mxu0 %v1860
        %2073 = vmatmul.mubr.bf16.gmra.mrb[0].mxu0 %v1859
        %v2074 = vpop.f32.mrb[0].mxu0
        %v2075 = vadd.f32 %v1902, %v2074
        %v2076 = vpop.f32.mrb[0].mxu0
        %v2077 = vpop.f32.mrb[0].mxu0
        %v2078 = vadd.f32 %v1902, %v2077
        %v2079 = vpop.f32.mrb[0].mxu0
        %2080 = vmatprep.mubr.bf16.mxu0 %v1862
        %2081 = vmatmul.mubr.bf16.gmra.mrb[0].mxu0 %v1861
        %v2082 = vpop.f32.mrb[0].mxu0
        %v2083 = vadd.f32 %v1902, %v2082
        %v2084 = vpop.f32.mrb[0].mxu0
        %v2085 = vpop.f32.mrb[0].mxu0
        %v2086 = vadd.f32 %v1902, %v2085
        %v2087 = vpop.f32.mrb[0].mxu0
        %2088 = vmatprep.mubr.bf16.mxu0 %v1864
        %2089 = vmatmul.mubr.bf16.gmra.mrb[0].mxu0 %v1863
        %v2090 = vpop.f32.mrb[0].mxu0
        %v2091 = vadd.f32 %v1902, %v2090
        %v2092 = vpop.f32.mrb[0].mxu0
        %v2093 = vpop.f32.mrb[0].mxu0
        %v2094 = vadd.f32 %v1902, %v2093
        %v2095 = vpop.f32.mrb[0].mxu0
        %2096 = vdwg.mxu0
        %v2097 = vmax.f32 %v2035, 0.0
        %v2098 = vmax.f32 %v2038, 0.0
        %v2099 = vmax.f32 %v2043, 0.0
        %v2100 = vmax.f32 %v2046, 0.0
        %v2101 = vmax.f32 %v2051, 0.0
        %v2102 = vmax.f32 %v2054, 0.0
        %v2103 = vmax.f32 %v2059, 0.0
        %v2104 = vmax.f32 %v2062, 0.0
        %v2105 = vmax.f32 %v2067, 0.0
        %v2106 = vmax.f32 %v2070, 0.0
        %v2107 = vmax.f32 %v2075, 0.0
        %v2108 = vmax.f32 %v2078, 0.0
        %v2109 = vmax.f32 %v2083, 0.0
        %v2110 = vmax.f32 %v2086, 0.0
        %v2111 = vmax.f32 %v2091, 0.0
        %v2112 = vmax.f32 %v2094, 0.0
        %v2113 = vpack.c.bf16 %v2098, %v2097
        %v2114 = vpack.c.bf16 %v2100, %v2099
        %v2115 = vpack.c.bf16 %v2102, %v2101
        %v2116 = vpack.c.bf16 %v2104, %v2103
        %v2117 = vpack.c.bf16 %v2106, %v2105
        %v2118 = vpack.c.bf16 %v2108, %v2107
        %v2119 = vpack.c.bf16 %v2110, %v2109
        %v2120 = vpack.c.bf16 %v2112, %v2111
        %v2121 = vld [vmem:[#allocation5] sm:$0xff]
        %v2122 = vld [vmem:[#allocation5 + $0x8] sm:$0xff]
        %v2123 = vld [vmem:[#allocation5 + $0x10] sm:$0xff]
        %v2124 = vld [vmem:[#allocation5 + $0x18] sm:$0xff]
        %v2125 = vld [vmem:[#allocation5 + $0x20] sm:$0xff]
        %v2126 = vld [vmem:[#allocation5 + $0x28] sm:$0xff]
        %v2127 = vld [vmem:[#allocation5 + $0x30] sm:$0xff]
        %v2128 = vld [vmem:[#allocation5 + $0x38] sm:$0xff]
        %v2129 = vld [vmem:[#allocation5 + $0x40] sm:$0xff]
        %v2130 = vld [vmem:[#allocation5 + $0x48] sm:$0xff]
        %v2131 = vld [vmem:[#allocation5 + $0x50] sm:$0xff]
        %v2132 = vld [vmem:[#allocation5 + $0x58] sm:$0xff]
        %v2133 = vld [vmem:[#allocation5 + $0x60] sm:$0xff]
        %v2134 = vld [vmem:[#allocation5 + $0x68] sm:$0xff]
        %v2135 = vld [vmem:[#allocation5 + $0x70] sm:$0xff]
        %v2136 = vld [vmem:[#allocation5 + $0x78] sm:$0xff]
        %v2137 = vrot.slane %v2097, 2
        %v2138 = vrot.slane %v2098, 2
        %v2139 = vrot.slane %v2099, 2
        %v2140 = vrot.slane %v2100, 2
        %v2141 = vrot.slane %v2101, 2
        %v2142 = vrot.slane %v2102, 2
        %v2143 = vrot.slane %v2103, 2
        %v2144 = vrot.slane %v2104, 2
        %v2145 = vrot.slane %v2105, 2
        %v2146 = vrot.slane %v2106, 2
        %v2147 = vrot.slane %v2107, 2
        %v2148 = vrot.slane %v2108, 2
        %v2149 = vrot.slane %v2109, 2
        %v2150 = vrot.slane %v2110, 2
        %v2151 = vrot.slane %v2111, 2
        %v2152 = vrot.slane %v2112, 2
        %v2153 = vsel %vm933, %v2151, %v2152
        %v2154 = vsel %vm933, %v2150, %v2151
        %v2155 = vsel %vm933, %v2149, %v2150
        %v2156 = vsel %vm933, %v2148, %v2149
        %v2157 = vsel %vm933, %v2147, %v2148
        %v2158 = vsel %vm933, %v2146, %v2147
        %v2159 = vsel %vm933, %v2145, %v2146
        %v2160 = vsel %vm933, %v2144, %v2145
        %v2161 = vsel %vm933, %v2143, %v2144
        %v2162 = vsel %vm933, %v2142, %v2143
        %v2163 = vsel %vm933, %v2141, %v2142
        %v2164 = vsel %vm933, %v2140, %v2141
        %v2165 = vsel %vm933, %v2139, %v2140
        %v2166 = vsel %vm933, %v2138, %v2139
        %v2167 = vsel %vm933, %v2137, %v2138
        %v2168 = vsel %vm933, %v2152, %v2137
        %v2169 = vpack.c.bf16 %v2166, %v2167
        %v2170 = vpack.c.bf16 %v2164, %v2165
        %v2171 = vpack.c.bf16 %v2162, %v2163
        %v2172 = vpack.c.bf16 %v2160, %v2161
        %v2173 = vpack.c.bf16 %v2158, %v2159
        %v2174 = vpack.c.bf16 %v2156, %v2157
        %v2175 = vpack.c.bf16 %v2154, %v2155
        %v2176 = vpack.c.bf16 %v2168, %v2153
        %s2177 = scalar_lea.vmem [#allocation5], 128
        %v2178 = vld [vmem:[%s2177] sm:$0xff]
        %v2179 = vld [vmem:[%s2177 + $0x8] sm:$0xff]
        %v2180 = vld [vmem:[%s2177 + $0x10] sm:$0xff]
        %v2181 = vld [vmem:[%s2177 + $0x18] sm:$0xff]
        %v2182 = vld [vmem:[%s2177 + $0x20] sm:$0xff]
        %v2183 = vld [vmem:[%s2177 + $0x28] sm:$0xff]
        %v2184 = vld [vmem:[%s2177 + $0x30] sm:$0xff]
        %v2185 = vld [vmem:[%s2177 + $0x38] sm:$0xff]
        %v2186 = vld [vmem:[%s2177 + $0x40] sm:$0xff]
        %v2187 = vld [vmem:[%s2177 + $0x48] sm:$0xff]
        %v2188 = vld [vmem:[%s2177 + $0x50] sm:$0xff]
        %v2189 = vld [vmem:[%s2177 + $0x58] sm:$0xff]
        %v2190 = vld [vmem:[%s2177 + $0x60] sm:$0xff]
        %v2191 = vld [vmem:[%s2177 + $0x68] sm:$0xff]
        %v2192 = vld [vmem:[%s2177 + $0x70] sm:$0xff]
        %v2193 = vld [vmem:[%s2177 + $0x78] sm:$0xff]
        %v2210 = vunpack.c.l.b16 %v2178
        %v2211 = vunpack.c.h.b16 %v2178
        %v2212 = vunpack.c.l.b16 %v2179
        %v2213 = vunpack.c.h.b16 %v2179
        %v2214 = vunpack.c.l.b16 %v2180
        %v2215 = vunpack.c.h.b16 %v2180
        %v2216 = vunpack.c.l.b16 %v2181
        %v2217 = vunpack.c.h.b16 %v2181
        %v2218 = vunpack.c.l.b16 %v2182
        %v2219 = vunpack.c.h.b16 %v2182
        %v2220 = vunpack.c.l.b16 %v2183
        %v2221 = vunpack.c.h.b16 %v2183
        %v2222 = vunpack.c.l.b16 %v2184
        %v2223 = vunpack.c.h.b16 %v2184
        %v2224 = vunpack.c.l.b16 %v2185
        %v2225 = vunpack.c.h.b16 %v2185
        %v2226 = vunpack.c.l.b16 %v2186
        %v2227 = vunpack.c.h.b16 %v2186
        %v2228 = vunpack.c.l.b16 %v2187
        %v2229 = vunpack.c.h.b16 %v2187
        %v2230 = vunpack.c.l.b16 %v2188
        %v2231 = vunpack.c.h.b16 %v2188
        %v2232 = vunpack.c.l.b16 %v2189
        %v2233 = vunpack.c.h.b16 %v2189
        %v2234 = vunpack.c.l.b16 %v2190
        %v2235 = vunpack.c.h.b16 %v2190
        %v2236 = vunpack.c.l.b16 %v2191
        %v2237 = vunpack.c.h.b16 %v2191
        %v2238 = vunpack.c.l.b16 %v2192
        %v2239 = vunpack.c.h.b16 %v2192
        %v2240 = vunpack.c.l.b16 %v2193
        %v2241 = vunpack.c.h.b16 %v2193
        %v2242 = vpack.c.b16 %v2212, %v2210
        %v2243 = vpack.c.b16 %v2213, %v2211
        %v2244 = vpack.c.b16 %v2216, %v2214
        %v2245 = vpack.c.b16 %v2217, %v2215
        %v2246 = vpack.c.b16 %v2220, %v2218
        %v2247 = vpack.c.b16 %v2221, %v2219
        %v2248 = vpack.c.b16 %v2224, %v2222
        %v2249 = vpack.c.b16 %v2225, %v2223
        %v2250 = vpack.c.b16 %v2228, %v2226
        %v2251 = vpack.c.b16 %v2229, %v2227
        %v2252 = vpack.c.b16 %v2232, %v2230
        %v2253 = vpack.c.b16 %v2233, %v2231
        %v2254 = vpack.c.b16 %v2236, %v2234
        %v2255 = vpack.c.b16 %v2237, %v2235
        %v2256 = vpack.c.b16 %v2240, %v2238
        %v2257 = vpack.c.b16 %v2241, %v2239
        %2274 = vmatprep.subr.bf16.mxu0 %v2243
        %2275 = vmatpush1.bf16.msra.mxu0 %v2242
        %2276 = vmatprep.subr.bf16.mxu0 %v2245
        %2277 = vmatpush1.bf16.msra.mxu0 %v2244
        %2278 = vmatprep.subr.bf16.mxu0 %v2247
        %2279 = vmatpush1.bf16.msra.mxu0 %v2246
        %2280 = vmatprep.subr.bf16.mxu0 %v2249
        %2281 = vmatpush1.bf16.msra.mxu0 %v2248
        %2282 = vmatprep.subr.bf16.mxu0 %v2251
        %2283 = vmatpush1.bf16.msra.mxu0 %v2250
        %2284 = vmatprep.subr.bf16.mxu0 %v2253
        %2285 = vmatpush1.bf16.msra.mxu0 %v2252
        %2286 = vmatprep.subr.bf16.mxu0 %v2255
        %2287 = vmatpush1.bf16.msra.mxu0 %v2254
        %2288 = vmatprep.subr.bf16.mxu0 %v2257
        %2289 = vmatpush1.bf16.msra.mxu0 %v2256
        %2290 = vmatprep.subr.bf16.mxu0 0
        %2291 = vmatpush1.bf16.msra.mxu0 0
        %2292 = vmatprep.subr.bf16.mxu0 0
        %2293 = vmatpush1.bf16.msra.mxu0 0
        %2294 = vmatprep.subr.bf16.mxu0 0
        %2295 = vmatpush1.bf16.msra.mxu0 0
        %2296 = vmatprep.subr.bf16.mxu0 0
        %2297 = vmatpush1.bf16.msra.mxu0 0
        %2298 = vmatprep.subr.bf16.mxu0 0
        %2299 = vmatpush1.bf16.msra.mxu0 0
        %2300 = vmatprep.subr.bf16.mxu0 0
        %2301 = vmatpush1.bf16.msra.mxu0 0
        %2302 = vmatprep.subr.bf16.mxu0 0
        %2303 = vmatpush1.bf16.msra.mxu0 0
        %2304 = vmatprep.subr.bf16.mxu0 0
        %2305 = vmatpush1.bf16.msra.mxu0 0
        %2306 = vmatprep.mubr.bf16.mxu0 0
        %2307 = vmatmul.mubr.bf16.gmra.mrb[0].mxu0 %v2169
        %v2308 = vpop.f32.mrb[0].mxu0
        %v2309 = vadd.f32 0.0, %v2308
        %v2310 = vpop.f32.mrb[0].mxu0
        %v2311 = vadd.f32 0.0, %v2310
        %v2312 = vpop.f32.mrb[0].mxu0
        %v2313 = vadd.f32 0.0, %v2312
        %v2314 = vpop.f32.mrb[0].mxu0
        %v2315 = vadd.f32 0.0, %v2314
        %2316 = vmatprep.mubr.bf16.mxu0 0
        %2317 = vmatmul.mubr.bf16.gmra.mrb[0].mxu0 %v2170
        %v2318 = vpop.f32.mrb[0].mxu0
        %v2319 = vadd.f32 0.0, %v2318
        %v2320 = vpop.f32.mrb[0].mxu0
        %v2321 = vadd.f32 0.0, %v2320
        %v2322 = vpop.f32.mrb[0].mxu0
        %v2323 = vadd.f32 0.0, %v2322
        %v2324 = vpop.f32.mrb[0].mxu0
        %v2325 = vadd.f32 0.0, %v2324
        %2326 = vmatprep.mubr.bf16.mxu0 0
        %2327 = vmatmul.mubr.bf16.gmra.mrb[0].mxu0 %v2171
        %v2328 = vpop.f32.mrb[0].mxu0
        %v2329 = vadd.f32 0.0, %v2328
        %v2330 = vpop.f32.mrb[0].mxu0
        %v2331 = vadd.f32 0.0, %v2330
        %v2332 = vpop.f32.mrb[0].mxu0
        %v2333 = vadd.f32 0.0, %v2332
        %v2334 = vpop.f32.mrb[0].mxu0
        %v2335 = vadd.f32 0.0, %v2334
        %2336 = vmatprep.mubr.bf16.mxu0 0
        %2337 = vmatmul.mubr.bf16.gmra.mrb[0].mxu0 %v2172
        %v2338 = vpop.f32.mrb[0].mxu0
        %v2339 = vadd.f32 0.0, %v2338
        %v2340 = vpop.f32.mrb[0].mxu0
        %v2341 = vadd.f32 0.0, %v2340
        %v2342 = vpop.f32.mrb[0].mxu0
        %v2343 = vadd.f32 0.0, %v2342
        %v2344 = vpop.f32.mrb[0].mxu0
        %v2345 = vadd.f32 0.0, %v2344
        %2346 = vmatprep.mubr.bf16.mxu0 0
        %2347 = vmatmul.mubr.bf16.gmra.mrb[0].mxu0 %v2173
        %v2348 = vpop.f32.mrb[0].mxu0
        %v2349 = vadd.f32 0.0, %v2348
        %v2350 = vpop.f32.mrb[0].mxu0
        %v2351 = vadd.f32 0.0, %v2350
        %v2352 = vpop.f32.mrb[0].mxu0
        %v2353 = vadd.f32 0.0, %v2352
        %v2354 = vpop.f32.mrb[0].mxu0
        %v2355 = vadd.f32 0.0, %v2354
        %2356 = vmatprep.mubr.bf16.mxu0 0
        %2357 = vmatmul.mubr.bf16.gmra.mrb[0].mxu0 %v2174
        %v2358 = vpop.f32.mrb[0].mxu0
        %v2359 = vadd.f32 0.0, %v2358
        %v2360 = vpop.f32.mrb[0].mxu0
        %v2361 = vadd.f32 0.0, %v2360
        %v2362 = vpop.f32.mrb[0].mxu0
        %v2363 = vadd.f32 0.0, %v2362
        %v2364 = vpop.f32.mrb[0].mxu0
        %v2365 = vadd.f32 0.0, %v2364
        %2366 = vmatprep.mubr.bf16.mxu0 0
        %2367 = vmatmul.mubr.bf16.gmra.mrb[0].mxu0 %v2175
        %v2368 = vpop.f32.mrb[0].mxu0
        %v2369 = vadd.f32 0.0, %v2368
        %v2370 = vpop.f32.mrb[0].mxu0
        %v2371 = vadd.f32 0.0, %v2370
        %v2372 = vpop.f32.mrb[0].mxu0
        %v2373 = vadd.f32 0.0, %v2372
        %v2374 = vpop.f32.mrb[0].mxu0
        %v2375 = vadd.f32 0.0, %v2374
        %2376 = vmatprep.mubr.bf16.mxu0 0
        %2377 = vmatmul.mubr.bf16.gmra.mrb[0].mxu0 %v2176
        %v2378 = vpop.f32.mrb[0].mxu0
        %v2379 = vadd.f32 0.0, %v2378
        %v2380 = vpop.f32.mrb[0].mxu0
        %v2381 = vadd.f32 0.0, %v2380
        %v2382 = vpop.f32.mrb[0].mxu0
        %v2383 = vadd.f32 0.0, %v2382
        %v2384 = vpop.f32.mrb[0].mxu0
        %v2385 = vadd.f32 0.0, %v2384
        %2386 = vdwg.mxu0
        %v2403 = vunpack.c.l.b16 %v2121
        %v2404 = vunpack.c.h.b16 %v2121
        %v2405 = vunpack.c.l.b16 %v2122
        %v2406 = vunpack.c.h.b16 %v2122
        %v2407 = vunpack.c.l.b16 %v2123
        %v2408 = vunpack.c.h.b16 %v2123
        %v2409 = vunpack.c.l.b16 %v2124
        %v2410 = vunpack.c.h.b16 %v2124
        %v2411 = vunpack.c.l.b16 %v2125
        %v2412 = vunpack.c.h.b16 %v2125
        %v2413 = vunpack.c.l.b16 %v2126
        %v2414 = vunpack.c.h.b16 %v2126
        %v2415 = vunpack.c.l.b16 %v2127
        %v2416 = vunpack.c.h.b16 %v2127
        %v2417 = vunpack.c.l.b16 %v2128
        %v2418 = vunpack.c.h.b16 %v2128
        %v2419 = vunpack.c.l.b16 %v2129
        %v2420 = vunpack.c.h.b16 %v2129
        %v2421 = vunpack.c.l.b16 %v2130
        %v2422 = vunpack.c.h.b16 %v2130
        %v2423 = vunpack.c.l.b16 %v2131
        %v2424 = vunpack.c.h.b16 %v2131
        %v2425 = vunpack.c.l.b16 %v2132
        %v2426 = vunpack.c.h.b16 %v2132
        %v2427 = vunpack.c.l.b16 %v2133
        %v2428 = vunpack.c.h.b16 %v2133
        %v2429 = vunpack.c.l.b16 %v2134
        %v2430 = vunpack.c.h.b16 %v2134
        %v2431 = vunpack.c.l.b16 %v2135
        %v2432 = vunpack.c.h.b16 %v2135
        %v2433 = vunpack.c.l.b16 %v2136
        %v2434 = vunpack.c.h.b16 %v2136
        %v2435 = vpack.c.b16 %v2405, %v2403
        %v2436 = vpack.c.b16 %v2406, %v2404
        %v2437 = vpack.c.b16 %v2409, %v2407
        %v2438 = vpack.c.b16 %v2410, %v2408
        %v2439 = vpack.c.b16 %v2413, %v2411
        %v2440 = vpack.c.b16 %v2414, %v2412
        %v2441 = vpack.c.b16 %v2417, %v2415
        %v2442 = vpack.c.b16 %v2418, %v2416
        %v2443 = vpack.c.b16 %v2421, %v2419
        %v2444 = vpack.c.b16 %v2422, %v2420
        %v2445 = vpack.c.b16 %v2425, %v2423
        %v2446 = vpack.c.b16 %v2426, %v2424
        %v2447 = vpack.c.b16 %v2429, %v2427
        %v2448 = vpack.c.b16 %v2430, %v2428
        %v2449 = vpack.c.b16 %v2433, %v2431
        %v2450 = vpack.c.b16 %v2434, %v2432
        %2467 = vmatprep.subr.bf16.mxu0 %v2436
        %2468 = vmatpush1.bf16.msra.mxu0 %v2435
        %2469 = vmatprep.subr.bf16.mxu0 %v2438
        %2470 = vmatpush1.bf16.msra.mxu0 %v2437
        %2471 = vmatprep.subr.bf16.mxu0 %v2440
        %2472 = vmatpush1.bf16.msra.mxu0 %v2439
        %2473 = vmatprep.subr.bf16.mxu0 %v2442
        %2474 = vmatpush1.bf16.msra.mxu0 %v2441
        %2475 = vmatprep.subr.bf16.mxu0 %v2444
        %2476 = vmatpush1.bf16.msra.mxu0 %v2443
        %2477 = vmatprep.subr.bf16.mxu0 %v2446
        %2478 = vmatpush1.bf16.msra.mxu0 %v2445
        %2479 = vmatprep.subr.bf16.mxu0 %v2448
        %2480 = vmatpush1.bf16.msra.mxu0 %v2447
        %2481 = vmatprep.subr.bf16.mxu0 %v2450
        %2482 = vmatpush1.bf16.msra.mxu0 %v2449
        %2483 = vmatprep.subr.bf16.mxu0 0
        %2484 = vmatpush1.bf16.msra.mxu0 0
        %2485 = vmatprep.subr.bf16.mxu0 0
        %2486 = vmatpush1.bf16.msra.mxu0 0
        %2487 = vmatprep.subr.bf16.mxu0 0
        %2488 = vmatpush1.bf16.msra.mxu0 0
        %2489 = vmatprep.subr.bf16.mxu0 0
        %2490 = vmatpush1.bf16.msra.mxu0 0
        %2491 = vmatprep.subr.bf16.mxu0 0
        %2492 = vmatpush1.bf16.msra.mxu0 0
        %2493 = vmatprep.subr.bf16.mxu0 0
        %2494 = vmatpush1.bf16.msra.mxu0 0
        %2495 = vmatprep.subr.bf16.mxu0 0
        %2496 = vmatpush1.bf16.msra.mxu0 0
        %2497 = vmatprep.subr.bf16.mxu0 0
        %2498 = vmatpush1.bf16.msra.mxu0 0
        %2499 = vmatprep.mubr.bf16.mxu0 0
        %2500 = vmatmul.mubr.bf16.gmra.mrb[0].mxu0 %v2113
        %v2501 = vpop.f32.mrb[0].mxu0
        %v2502 = vadd.f32 %v2309, %v2501
        %v2503 = vpop.f32.mrb[0].mxu0
        %v2504 = vadd.f32 %v2311, %v2503
        %v2505 = vpop.f32.mrb[0].mxu0
        %v2506 = vadd.f32 %v2313, %v2505
        %v2507 = vpop.f32.mrb[0].mxu0
        %v2508 = vadd.f32 %v2315, %v2507
        %2509 = vmatprep.mubr.bf16.mxu0 0
        %2510 = vmatmul.mubr.bf16.gmra.mrb[0].mxu0 %v2114
        %v2511 = vpop.f32.mrb[0].mxu0
        %v2512 = vadd.f32 %v2319, %v2511
        %v2513 = vpop.f32.mrb[0].mxu0
        %v2514 = vadd.f32 %v2321, %v2513
        %v2515 = vpop.f32.mrb[0].mxu0
        %v2516 = vadd.f32 %v2323, %v2515
        %v2517 = vpop.f32.mrb[0].mxu0
        %v2518 = vadd.f32 %v2325, %v2517
        %2519 = vmatprep.mubr.bf16.mxu0 0
        %2520 = vmatmul.mubr.bf16.gmra.mrb[0].mxu0 %v2115
        %v2521 = vpop.f32.mrb[0].mxu0
        %v2522 = vadd.f32 %v2329, %v2521
        %v2523 = vpop.f32.mrb[0].mxu0
        %v2524 = vadd.f32 %v2331, %v2523
        %v2525 = vpop.f32.mrb[0].mxu0
        %v2526 = vadd.f32 %v2333, %v2525
        %v2527 = vpop.f32.mrb[0].mxu0
        %v2528 = vadd.f32 %v2335, %v2527
        %2529 = vmatprep.mubr.bf16.mxu0 0
        %2530 = vmatmul.mubr.bf16.gmra.mrb[0].mxu0 %v2116
        %v2531 = vpop.f32.mrb[0].mxu0
        %v2532 = vadd.f32 %v2339, %v2531
        %v2533 = vpop.f32.mrb[0].mxu0
        %v2534 = vadd.f32 %v2341, %v2533
        %v2535 = vpop.f32.mrb[0].mxu0
        %v2536 = vadd.f32 %v2343, %v2535
        %v2537 = vpop.f32.mrb[0].mxu0
        %v2538 = vadd.f32 %v2345, %v2537
        %2539 = vmatprep.mubr.bf16.mxu0 0
        %2540 = vmatmul.mubr.bf16.gmra.mrb[0].mxu0 %v2117
        %v2541 = vpop.f32.mrb[0].mxu0
        %v2542 = vadd.f32 %v2349, %v2541
        %v2543 = vpop.f32.mrb[0].mxu0
        %v2544 = vadd.f32 %v2351, %v2543
        %v2545 = vpop.f32.mrb[0].mxu0
        %v2546 = vadd.f32 %v2353, %v2545
        %v2547 = vpop.f32.mrb[0].mxu0
        %v2548 = vadd.f32 %v2355, %v2547
        %2549 = vmatprep.mubr.bf16.mxu0 0
        %2550 = vmatmul.mubr.bf16.gmra.mrb[0].mxu0 %v2118
        %v2551 = vpop.f32.mrb[0].mxu0
        %v2552 = vadd.f32 %v2359, %v2551
        %v2553 = vpop.f32.mrb[0].mxu0
        %v2554 = vadd.f32 %v2361, %v2553
        %v2555 = vpop.f32.mrb[0].mxu0
        %v2556 = vadd.f32 %v2363, %v2555
        %v2557 = vpop.f32.mrb[0].mxu0
        %v2558 = vadd.f32 %v2365, %v2557
        %2559 = vmatprep.mubr.bf16.mxu0 0
        %2560 = vmatmul.mubr.bf16.gmra.mrb[0].mxu0 %v2119
        %v2561 = vpop.f32.mrb[0].mxu0
        %v2562 = vadd.f32 %v2369, %v2561
        %v2563 = vpop.f32.mrb[0].mxu0
        %v2564 = vadd.f32 %v2371, %v2563
        %v2565 = vpop.f32.mrb[0].mxu0
        %v2566 = vadd.f32 %v2373, %v2565
        %v2567 = vpop.f32.mrb[0].mxu0
        %v2568 = vadd.f32 %v2375, %v2567
        %2569 = vmatprep.mubr.bf16.mxu0 0
        %2570 = vmatmul.mubr.bf16.gmra.mrb[0].mxu0 %v2120
        %v2571 = vpop.f32.mrb[0].mxu0
        %v2572 = vadd.f32 %v2379, %v2571
        %v2573 = vpop.f32.mrb[0].mxu0
        %v2574 = vadd.f32 %v2381, %v2573
        %v2575 = vpop.f32.mrb[0].mxu0
        %v2576 = vadd.f32 %v2383, %v2575
        %v2577 = vpop.f32.mrb[0].mxu0
        %v2578 = vadd.f32 %v2385, %v2577
        %2579 = vdwg.mxu0
        %v2580 = vrot.slane %v2097, 4
        %v2581 = vrot.slane %v2098, 4
        %v2582 = vrot.slane %v2099, 4
        %v2583 = vrot.slane %v2100, 4
        %v2584 = vrot.slane %v2101, 4
        %v2585 = vrot.slane %v2102, 4
        %v2586 = vrot.slane %v2103, 4
        %v2587 = vrot.slane %v2104, 4
        %v2588 = vrot.slane %v2105, 4
        %v2589 = vrot.slane %v2106, 4
        %v2590 = vrot.slane %v2107, 4
        %v2591 = vrot.slane %v2108, 4
        %v2592 = vrot.slane %v2109, 4
        %v2593 = vrot.slane %v2110, 4
        %v2594 = vrot.slane %v2111, 4
        %v2595 = vrot.slane %v2112, 4
        %v2596 = vsel %vm1403, %v2594, %v2595
        %v2597 = vsel %vm1403, %v2593, %v2594
        %v2598 = vsel %vm1403, %v2592, %v2593
        %v2599 = vsel %vm1403, %v2591, %v2592
        %v2600 = vsel %vm1403, %v2590, %v2591
        %v2601 = vsel %vm1403, %v2589, %v2590
        %v2602 = vsel %vm1403, %v2588, %v2589
        %v2603 = vsel %vm1403, %v2587, %v2588
        %v2604 = vsel %vm1403, %v2586, %v2587
        %v2605 = vsel %vm1403, %v2585, %v2586
        %v2606 = vsel %vm1403, %v2584, %v2585
        %v2607 = vsel %vm1403, %v2583, %v2584
        %v2608 = vsel %vm1403, %v2582, %v2583
        %v2609 = vsel %vm1403, %v2581, %v2582
        %v2610 = vsel %vm1403, %v2580, %v2581
        %v2611 = vsel %vm1403, %v2595, %v2580
        %v2612 = vpack.c.bf16 %v2609, %v2610
        %v2613 = vpack.c.bf16 %v2607, %v2608
        %v2614 = vpack.c.bf16 %v2605, %v2606
        %v2615 = vpack.c.bf16 %v2603, %v2604
        %v2616 = vpack.c.bf16 %v2601, %v2602
        %v2617 = vpack.c.bf16 %v2599, %v2600
        %v2618 = vpack.c.bf16 %v2597, %v2598
        %v2619 = vpack.c.bf16 %v2611, %v2596
        %s2620 = scalar_lea.vmem [#allocation5], 256
        %v2621 = vld [vmem:[%s2620] sm:$0xff]
        %v2622 = vld [vmem:[%s2620 + $0x8] sm:$0xff]
        %v2623 = vld [vmem:[%s2620 + $0x10] sm:$0xff]
        %v2624 = vld [vmem:[%s2620 + $0x18] sm:$0xff]
        %v2625 = vld [vmem:[%s2620 + $0x20] sm:$0xff]
        %v2626 = vld [vmem:[%s2620 + $0x28] sm:$0xff]
        %v2627 = vld [vmem:[%s2620 + $0x30] sm:$0xff]
        %v2628 = vld [vmem:[%s2620 + $0x38] sm:$0xff]
        %v2629 = vld [vmem:[%s2620 + $0x40] sm:$0xff]
        %v2630 = vld [vmem:[%s2620 + $0x48] sm:$0xff]
        %v2631 = vld [vmem:[%s2620 + $0x50] sm:$0xff]
        %v2632 = vld [vmem:[%s2620 + $0x58] sm:$0xff]
        %v2633 = vld [vmem:[%s2620 + $0x60] sm:$0xff]
        %v2634 = vld [vmem:[%s2620 + $0x68] sm:$0xff]
        %v2635 = vld [vmem:[%s2620 + $0x70] sm:$0xff]
        %v2636 = vld [vmem:[%s2620 + $0x78] sm:$0xff]
        %v2653 = vunpack.c.l.b16 %v2621
        %v2654 = vunpack.c.h.b16 %v2621
        %v2655 = vunpack.c.l.b16 %v2622
        %v2656 = vunpack.c.h.b16 %v2622
        %v2657 = vunpack.c.l.b16 %v2623
        %v2658 = vunpack.c.h.b16 %v2623
        %v2659 = vunpack.c.l.b16 %v2624
        %v2660 = vunpack.c.h.b16 %v2624
        %v2661 = vunpack.c.l.b16 %v2625
        %v2662 = vunpack.c.h.b16 %v2625
        %v2663 = vunpack.c.l.b16 %v2626
        %v2664 = vunpack.c.h.b16 %v2626
        %v2665 = vunpack.c.l.b16 %v2627
        %v2666 = vunpack.c.h.b16 %v2627
        %v2667 = vunpack.c.l.b16 %v2628
        %v2668 = vunpack.c.h.b16 %v2628
        %v2669 = vunpack.c.l.b16 %v2629
        %v2670 = vunpack.c.h.b16 %v2629
        %v2671 = vunpack.c.l.b16 %v2630
        %v2672 = vunpack.c.h.b16 %v2630
        %v2673 = vunpack.c.l.b16 %v2631
        %v2674 = vunpack.c.h.b16 %v2631
        %v2675 = vunpack.c.l.b16 %v2632
        %v2676 = vunpack.c.h.b16 %v2632
        %v2677 = vunpack.c.l.b16 %v2633
        %v2678 = vunpack.c.h.b16 %v2633
        %v2679 = vunpack.c.l.b16 %v2634
        %v2680 = vunpack.c.h.b16 %v2634
        %v2681 = vunpack.c.l.b16 %v2635
        %v2682 = vunpack.c.h.b16 %v2635
        %v2683 = vunpack.c.l.b16 %v2636
        %v2684 = vunpack.c.h.b16 %v2636
        %v2685 = vpack.c.b16 %v2655, %v2653
        %v2686 = vpack.c.b16 %v2656, %v2654
        %v2687 = vpack.c.b16 %v2659, %v2657
        %v2688 = vpack.c.b16 %v2660, %v2658
        %v2689 = vpack.c.b16 %v2663, %v2661
        %v2690 = vpack.c.b16 %v2664, %v2662
        %v2691 = vpack.c.b16 %v2667, %v2665
        %v2692 = vpack.c.b16 %v2668, %v2666
        %v2693 = vpack.c.b16 %v2671, %v2669
        %v2694 = vpack.c.b16 %v2672, %v2670
        %v2695 = vpack.c.b16 %v2675, %v2673
        %v2696 = vpack.c.b16 %v2676, %v2674
        %v2697 = vpack.c.b16 %v2679, %v2677
        %v2698 = vpack.c.b16 %v2680, %v2678
        %v2699 = vpack.c.b16 %v2683, %v2681
        %v2700 = vpack.c.b16 %v2684, %v2682
        %2717 = vmatprep.subr.bf16.mxu0 %v2686
        %2718 = vmatpush1.bf16.msra.mxu0 %v2685
        %2719 = vmatprep.subr.bf16.mxu0 %v2688
        %2720 = vmatpush1.bf16.msra.mxu0 %v2687
        %2721 = vmatprep.subr.bf16.mxu0 %v2690
        %2722 = vmatpush1.bf16.msra.mxu0 %v2689
        %2723 = vmatprep.subr.bf16.mxu0 %v2692
        %2724 = vmatpush1.bf16.msra.mxu0 %v2691
        %2725 = vmatprep.subr.bf16.mxu0 %v2694
        %2726 = vmatpush1.bf16.msra.mxu0 %v2693
        %2727 = vmatprep.subr.bf16.mxu0 %v2696
        %2728 = vmatpush1.bf16.msra.mxu0 %v2695
        %2729 = vmatprep.subr.bf16.mxu0 %v2698
        %2730 = vmatpush1.bf16.msra.mxu0 %v2697
        %2731 = vmatprep.subr.bf16.mxu0 %v2700
        %2732 = vmatpush1.bf16.msra.mxu0 %v2699
        %2733 = vmatprep.subr.bf16.mxu0 0
        %2734 = vmatpush1.bf16.msra.mxu0 0
        %2735 = vmatprep.subr.bf16.mxu0 0
        %2736 = vmatpush1.bf16.msra.mxu0 0
        %2737 = vmatprep.subr.bf16.mxu0 0
        %2738 = vmatpush1.bf16.msra.mxu0 0
        %2739 = vmatprep.subr.bf16.mxu0 0
        %2740 = vmatpush1.bf16.msra.mxu0 0
        %2741 = vmatprep.subr.bf16.mxu0 0
        %2742 = vmatpush1.bf16.msra.mxu0 0
        %2743 = vmatprep.subr.bf16.mxu0 0
        %2744 = vmatpush1.bf16.msra.mxu0 0
        %2745 = vmatprep.subr.bf16.mxu0 0
        %2746 = vmatpush1.bf16.msra.mxu0 0
        %2747 = vmatprep.subr.bf16.mxu0 0
        %2748 = vmatpush1.bf16.msra.mxu0 0
        %2749 = vmatprep.mubr.bf16.mxu0 0
        %2750 = vmatmul.mubr.bf16.gmra.mrb[0].mxu0 %v2612
        %v2751 = vpop.f32.mrb[0].mxu0
        %v2752 = vadd.f32 0.0, %v2751
        %v2753 = vpop.f32.mrb[0].mxu0
        %v2754 = vadd.f32 0.0, %v2753
        %v2755 = vpop.f32.mrb[0].mxu0
        %v2756 = vadd.f32 0.0, %v2755
        %v2757 = vpop.f32.mrb[0].mxu0
        %v2758 = vadd.f32 0.0, %v2757
        %2759 = vmatprep.mubr.bf16.mxu0 0
        %2760 = vmatmul.mubr.bf16.gmra.mrb[0].mxu0 %v2613
        %v2761 = vpop.f32.mrb[0].mxu0
        %v2762 = vadd.f32 0.0, %v2761
        %v2763 = vpop.f32.mrb[0].mxu0
        %v2764 = vadd.f32 0.0, %v2763
        %v2765 = vpop.f32.mrb[0].mxu0
        %v2766 = vadd.f32 0.0, %v2765
        %v2767 = vpop.f32.mrb[0].mxu0
        %v2768 = vadd.f32 0.0, %v2767
        %2769 = vmatprep.mubr.bf16.mxu0 0
        %2770 = vmatmul.mubr.bf16.gmra.mrb[0].mxu0 %v2614
        %v2771 = vpop.f32.mrb[0].mxu0
        %v2772 = vadd.f32 0.0, %v2771
        %v2773 = vpop.f32.mrb[0].mxu0
        %v2774 = vadd.f32 0.0, %v2773
        %v2775 = vpop.f32.mrb[0].mxu0
        %v2776 = vadd.f32 0.0, %v2775
        %v2777 = vpop.f32.mrb[0].mxu0
        %v2778 = vadd.f32 0.0, %v2777
        %2779 = vmatprep.mubr.bf16.mxu0 0
        %2780 = vmatmul.mubr.bf16.gmra.mrb[0].mxu0 %v2615
        %v2781 = vpop.f32.mrb[0].mxu0
        %v2782 = vadd.f32 0.0, %v2781
        %v2783 = vpop.f32.mrb[0].mxu0
        %v2784 = vadd.f32 0.0, %v2783
        %v2785 = vpop.f32.mrb[0].mxu0
        %v2786 = vadd.f32 0.0, %v2785
        %v2787 = vpop.f32.mrb[0].mxu0
        %v2788 = vadd.f32 0.0, %v2787
        %2789 = vmatprep.mubr.bf16.mxu0 0
        %2790 = vmatmul.mubr.bf16.gmra.mrb[0].mxu0 %v2616
        %v2791 = vpop.f32.mrb[0].mxu0
        %v2792 = vadd.f32 0.0, %v2791
        %v2793 = vpop.f32.mrb[0].mxu0
        %v2794 = vadd.f32 0.0, %v2793
        %v2795 = vpop.f32.mrb[0].mxu0
        %v2796 = vadd.f32 0.0, %v2795
        %v2797 = vpop.f32.mrb[0].mxu0
        %v2798 = vadd.f32 0.0, %v2797
        %2799 = vmatprep.mubr.bf16.mxu0 0
        %2800 = vmatmul.mubr.bf16.gmra.mrb[0].mxu0 %v2617
        %v2801 = vpop.f32.mrb[0].mxu0
        %v2802 = vadd.f32 0.0, %v2801
        %v2803 = vpop.f32.mrb[0].mxu0
        %v2804 = vadd.f32 0.0, %v2803
        %v2805 = vpop.f32.mrb[0].mxu0
        %v2806 = vadd.f32 0.0, %v2805
        %v2807 = vpop.f32.mrb[0].mxu0
        %v2808 = vadd.f32 0.0, %v2807
        %2809 = vmatprep.mubr.bf16.mxu0 0
        %2810 = vmatmul.mubr.bf16.gmra.mrb[0].mxu0 %v2618
        %v2811 = vpop.f32.mrb[0].mxu0
        %v2812 = vadd.f32 0.0, %v2811
        %v2813 = vpop.f32.mrb[0].mxu0
        %v2814 = vadd.f32 0.0, %v2813
        %v2815 = vpop.f32.mrb[0].mxu0
        %v2816 = vadd.f32 0.0, %v2815
        %v2817 = vpop.f32.mrb[0].mxu0
        %v2818 = vadd.f32 0.0, %v2817
        %2819 = vmatprep.mubr.bf16.mxu0 0
        %2820 = vmatmul.mubr.bf16.gmra.mrb[0].mxu0 %v2619
        %v2821 = vpop.f32.mrb[0].mxu0
        %v2822 = vadd.f32 0.0, %v2821
        %v2823 = vpop.f32.mrb[0].mxu0
        %v2824 = vadd.f32 0.0, %v2823
        %v2825 = vpop.f32.mrb[0].mxu0
        %v2826 = vadd.f32 0.0, %v2825
        %v2827 = vpop.f32.mrb[0].mxu0
        %v2828 = vadd.f32 0.0, %v2827
        %2829 = vdwg.mxu0
        %v2830 = vadd.f32 %v2502, %v2752
        %v2831 = vadd.f32 %v2504, %v2754
        %v2832 = vadd.f32 %v2506, %v2756
        %v2833 = vadd.f32 %v2508, %v2758
        %v2834 = vadd.f32 %v2512, %v2762
        %v2835 = vadd.f32 %v2514, %v2764
        %v2836 = vadd.f32 %v2516, %v2766
        %v2837 = vadd.f32 %v2518, %v2768
        %v2838 = vadd.f32 %v2522, %v2772
        %v2839 = vadd.f32 %v2524, %v2774
        %v2840 = vadd.f32 %v2526, %v2776
        %v2841 = vadd.f32 %v2528, %v2778
        %v2842 = vadd.f32 %v2532, %v2782
        %v2843 = vadd.f32 %v2534, %v2784
        %v2844 = vadd.f32 %v2536, %v2786
        %v2845 = vadd.f32 %v2538, %v2788
        %v2846 = vadd.f32 %v2542, %v2792
        %v2847 = vadd.f32 %v2544, %v2794
        %v2848 = vadd.f32 %v2546, %v2796
        %v2849 = vadd.f32 %v2548, %v2798
        %v2850 = vadd.f32 %v2552, %v2802
        %v2851 = vadd.f32 %v2554, %v2804
        %v2852 = vadd.f32 %v2556, %v2806
        %v2853 = vadd.f32 %v2558, %v2808
        %v2854 = vadd.f32 %v2562, %v2812
        %v2855 = vadd.f32 %v2564, %v2814
        %v2856 = vadd.f32 %v2566, %v2816
        %v2857 = vadd.f32 %v2568, %v2818
        %v2858 = vadd.f32 %v2572, %v2822
        %v2859 = vadd.f32 %v2574, %v2824
        %v2860 = vadd.f32 %v2576, %v2826
        %v2861 = vadd.f32 %v2578, %v2828
        %v2862 = vrot.slane %v2097, 6
        %v2863 = vrot.slane %v2098, 6
        %v2864 = vrot.slane %v2099, 6
        %v2865 = vrot.slane %v2100, 6
        %v2866 = vrot.slane %v2101, 6
        %v2867 = vrot.slane %v2102, 6
        %v2868 = vrot.slane %v2103, 6
        %v2869 = vrot.slane %v2104, 6
        %v2870 = vrot.slane %v2105, 6
        %v2871 = vrot.slane %v2106, 6
        %v2872 = vrot.slane %v2107, 6
        %v2873 = vrot.slane %v2108, 6
        %v2874 = vrot.slane %v2109, 6
        %v2875 = vrot.slane %v2110, 6
        %v2876 = vrot.slane %v2111, 6
        %v2877 = vrot.slane %v2112, 6
        %vm2878 = vcmp.lt.s32.totalorder %v571, 2
        %v2879 = vsel %vm2878, %v2876, %v2877
        %v2880 = vsel %vm2878, %v2875, %v2876
        %v2881 = vsel %vm2878, %v2874, %v2875
        %v2882 = vsel %vm2878, %v2873, %v2874
        %v2883 = vsel %vm2878, %v2872, %v2873
        %v2884 = vsel %vm2878, %v2871, %v2872
        %v2885 = vsel %vm2878, %v2870, %v2871
        %v2886 = vsel %vm2878, %v2869, %v2870
        %v2887 = vsel %vm2878, %v2868, %v2869
        %v2888 = vsel %vm2878, %v2867, %v2868
        %v2889 = vsel %vm2878, %v2866, %v2867
        %v2890 = vsel %vm2878, %v2865, %v2866
        %v2891 = vsel %vm2878, %v2864, %v2865
        %v2892 = vsel %vm2878, %v2863, %v2864
        %v2893 = vsel %vm2878, %v2862, %v2863
        %v2894 = vsel %vm2878, %v2877, %v2862
        %v2895 = vpack.c.bf16 %v2892, %v2893
        %v2896 = vpack.c.bf16 %v2890, %v2891
        %v2897 = vpack.c.bf16 %v2888, %v2889
        %v2898 = vpack.c.bf16 %v2886, %v2887
        %v2899 = vpack.c.bf16 %v2884, %v2885
        %v2900 = vpack.c.bf16 %v2882, %v2883
        %v2901 = vpack.c.bf16 %v2880, %v2881
        %v2902 = vpack.c.bf16 %v2894, %v2879
        %s2903 = scalar_lea.vmem [#allocation5], 384
        %v2904 = vld [vmem:[%s2903] sm:$0xff]
        %v2905 = vld [vmem:[%s2903 + $0x8] sm:$0xff]
        %v2906 = vld [vmem:[%s2903 + $0x10] sm:$0xff]
        %v2907 = vld [vmem:[%s2903 + $0x18] sm:$0xff]
        %v2908 = vld [vmem:[%s2903 + $0x20] sm:$0xff]
        %v2909 = vld [vmem:[%s2903 + $0x28] sm:$0xff]
        %v2910 = vld [vmem:[%s2903 + $0x30] sm:$0xff]
        %v2911 = vld [vmem:[%s2903 + $0x38] sm:$0xff]
        %v2912 = vld [vmem:[%s2903 + $0x40] sm:$0xff]
        %v2913 = vld [vmem:[%s2903 + $0x48] sm:$0xff]
        %v2914 = vld [vmem:[%s2903 + $0x50] sm:$0xff]
        %v2915 = vld [vmem:[%s2903 + $0x58] sm:$0xff]
        %v2916 = vld [vmem:[%s2903 + $0x60] sm:$0xff]
        %v2917 = vld [vmem:[%s2903 + $0x68] sm:$0xff]
        %v2918 = vld [vmem:[%s2903 + $0x70] sm:$0xff]
        %v2919 = vld [vmem:[%s2903 + $0x78] sm:$0xff]
        %v2936 = vunpack.c.l.b16 %v2904
        %v2937 = vunpack.c.h.b16 %v2904
        %v2938 = vunpack.c.l.b16 %v2905
        %v2939 = vunpack.c.h.b16 %v2905
        %v2940 = vunpack.c.l.b16 %v2906
        %v2941 = vunpack.c.h.b16 %v2906
        %v2942 = vunpack.c.l.b16 %v2907
        %v2943 = vunpack.c.h.b16 %v2907
        %v2944 = vunpack.c.l.b16 %v2908
        %v2945 = vunpack.c.h.b16 %v2908
        %v2946 = vunpack.c.l.b16 %v2909
        %v2947 = vunpack.c.h.b16 %v2909
        %v2948 = vunpack.c.l.b16 %v2910
        %v2949 = vunpack.c.h.b16 %v2910
        %v2950 = vunpack.c.l.b16 %v2911
        %v2951 = vunpack.c.h.b16 %v2911
        %v2952 = vunpack.c.l.b16 %v2912
        %v2953 = vunpack.c.h.b16 %v2912
        %v2954 = vunpack.c.l.b16 %v2913
        %v2955 = vunpack.c.h.b16 %v2913
        %v2956 = vunpack.c.l.b16 %v2914
        %v2957 = vunpack.c.h.b16 %v2914
        %v2958 = vunpack.c.l.b16 %v2915
        %v2959 = vunpack.c.h.b16 %v2915
        %v2960 = vunpack.c.l.b16 %v2916
        %v2961 = vunpack.c.h.b16 %v2916
        %v2962 = vunpack.c.l.b16 %v2917
        %v2963 = vunpack.c.h.b16 %v2917
        %v2964 = vunpack.c.l.b16 %v2918
        %v2965 = vunpack.c.h.b16 %v2918
        %v2966 = vunpack.c.l.b16 %v2919
        %v2967 = vunpack.c.h.b16 %v2919
        %v2968 = vpack.c.b16 %v2938, %v2936
        %v2969 = vpack.c.b16 %v2939, %v2937
        %v2970 = vpack.c.b16 %v2942, %v2940
        %v2971 = vpack.c.b16 %v2943, %v2941
        %v2972 = vpack.c.b16 %v2946, %v2944
        %v2973 = vpack.c.b16 %v2947, %v2945
        %v2974 = vpack.c.b16 %v2950, %v2948
        %v2975 = vpack.c.b16 %v2951, %v2949
        %v2976 = vpack.c.b16 %v2954, %v2952
        %v2977 = vpack.c.b16 %v2955, %v2953
        %v2978 = vpack.c.b16 %v2958, %v2956
        %v2979 = vpack.c.b16 %v2959, %v2957
        %v2980 = vpack.c.b16 %v2962, %v2960
        %v2981 = vpack.c.b16 %v2963, %v2961
        %v2982 = vpack.c.b16 %v2966, %v2964
        %v2983 = vpack.c.b16 %v2967, %v2965
        %3000 = vmatprep.subr.bf16.mxu0 %v2969
        %3001 = vmatpush1.bf16.msra.mxu0 %v2968
        %3002 = vmatprep.subr.bf16.mxu0 %v2971
        %3003 = vmatpush1.bf16.msra.mxu0 %v2970
        %3004 = vmatprep.subr.bf16.mxu0 %v2973
        %3005 = vmatpush1.bf16.msra.mxu0 %v2972
        %3006 = vmatprep.subr.bf16.mxu0 %v2975
        %3007 = vmatpush1.bf16.msra.mxu0 %v2974
        %3008 = vmatprep.subr.bf16.mxu0 %v2977
        %3009 = vmatpush1.bf16.msra.mxu0 %v2976
        %3010 = vmatprep.subr.bf16.mxu0 %v2979
        %3011 = vmatpush1.bf16.msra.mxu0 %v2978
        %3012 = vmatprep.subr.bf16.mxu0 %v2981
        %3013 = vmatpush1.bf16.msra.mxu0 %v2980
        %3014 = vmatprep.subr.bf16.mxu0 %v2983
        %3015 = vmatpush1.bf16.msra.mxu0 %v2982
        %3016 = vmatprep.subr.bf16.mxu0 0
        %3017 = vmatpush1.bf16.msra.mxu0 0
        %3018 = vmatprep.subr.bf16.mxu0 0
        %3019 = vmatpush1.bf16.msra.mxu0 0
        %3020 = vmatprep.subr.bf16.mxu0 0
        %3021 = vmatpush1.bf16.msra.mxu0 0
        %3022 = vmatprep.subr.bf16.mxu0 0
        %3023 = vmatpush1.bf16.msra.mxu0 0
        %3024 = vmatprep.subr.bf16.mxu0 0
        %3025 = vmatpush1.bf16.msra.mxu0 0
        %3026 = vmatprep.subr.bf16.mxu0 0
        %3027 = vmatpush1.bf16.msra.mxu0 0
        %3028 = vmatprep.subr.bf16.mxu0 0
        %3029 = vmatpush1.bf16.msra.mxu0 0
        %3030 = vmatprep.subr.bf16.mxu0 0
        %3031 = vmatpush1.bf16.msra.mxu0 0
        %3032 = vmatprep.mubr.bf16.mxu0 0
        %3033 = vmatmul.mubr.bf16.gmra.mrb[0].mxu0 %v2895
        %v3034 = vpop.f32.mrb[0].mxu0
        %v3035 = vadd.f32 0.0, %v3034
        %v3036 = vpop.f32.mrb[0].mxu0
        %v3037 = vadd.f32 0.0, %v3036
        %v3038 = vpop.f32.mrb[0].mxu0
        %v3039 = vadd.f32 0.0, %v3038
        %v3040 = vpop.f32.mrb[0].mxu0
        %v3041 = vadd.f32 0.0, %v3040
        %3042 = vmatprep.mubr.bf16.mxu0 0
        %3043 = vmatmul.mubr.bf16.gmra.mrb[0].mxu0 %v2896
        %v3044 = vpop.f32.mrb[0].mxu0
        %v3045 = vadd.f32 0.0, %v3044
        %v3046 = vpop.f32.mrb[0].mxu0
        %v3047 = vadd.f32 0.0, %v3046
        %v3048 = vpop.f32.mrb[0].mxu0
        %v3049 = vadd.f32 0.0, %v3048
        %v3050 = vpop.f32.mrb[0].mxu0
        %v3051 = vadd.f32 0.0, %v3050
        %3052 = vmatprep.mubr.bf16.mxu0 0
        %3053 = vmatmul.mubr.bf16.gmra.mrb[0].mxu0 %v2897
        %v3054 = vpop.f32.mrb[0].mxu0
        %v3055 = vadd.f32 0.0, %v3054
        %v3056 = vpop.f32.mrb[0].mxu0
        %v3057 = vadd.f32 0.0, %v3056
        %v3058 = vpop.f32.mrb[0].mxu0
        %v3059 = vadd.f32 0.0, %v3058
        %v3060 = vpop.f32.mrb[0].mxu0
        %v3061 = vadd.f32 0.0, %v3060
        %3062 = vmatprep.mubr.bf16.mxu0 0
        %3063 = vmatmul.mubr.bf16.gmra.mrb[0].mxu0 %v2898
        %v3064 = vpop.f32.mrb[0].mxu0
        %v3065 = vadd.f32 0.0, %v3064
        %v3066 = vpop.f32.mrb[0].mxu0
        %v3067 = vadd.f32 0.0, %v3066
        %v3068 = vpop.f32.mrb[0].mxu0
        %v3069 = vadd.f32 0.0, %v3068
        %v3070 = vpop.f32.mrb[0].mxu0
        %v3071 = vadd.f32 0.0, %v3070
        %3072 = vmatprep.mubr.bf16.mxu0 0
        %3073 = vmatmul.mubr.bf16.gmra.mrb[0].mxu0 %v2899
        %v3074 = vpop.f32.mrb[0].mxu0
        %v3075 = vadd.f32 0.0, %v3074
        %v3076 = vpop.f32.mrb[0].mxu0
        %v3077 = vadd.f32 0.0, %v3076
        %v3078 = vpop.f32.mrb[0].mxu0
        %v3079 = vadd.f32 0.0, %v3078
        %v3080 = vpop.f32.mrb[0].mxu0
        %v3081 = vadd.f32 0.0, %v3080
        %3082 = vmatprep.mubr.bf16.mxu0 0
        %3083 = vmatmul.mubr.bf16.gmra.mrb[0].mxu0 %v2900
        %v3084 = vpop.f32.mrb[0].mxu0
        %v3085 = vadd.f32 0.0, %v3084
        %v3086 = vpop.f32.mrb[0].mxu0
        %v3087 = vadd.f32 0.0, %v3086
        %v3088 = vpop.f32.mrb[0].mxu0
        %v3089 = vadd.f32 0.0, %v3088
        %v3090 = vpop.f32.mrb[0].mxu0
        %v3091 = vadd.f32 0.0, %v3090
        %3092 = vmatprep.mubr.bf16.mxu0 0
        %3093 = vmatmul.mubr.bf16.gmra.mrb[0].mxu0 %v2901
        %v3094 = vpop.f32.mrb[0].mxu0
        %v3095 = vadd.f32 0.0, %v3094
        %v3096 = vpop.f32.mrb[0].mxu0
        %v3097 = vadd.f32 0.0, %v3096
        %v3098 = vpop.f32.mrb[0].mxu0
        %v3099 = vadd.f32 0.0, %v3098
        %v3100 = vpop.f32.mrb[0].mxu0
        %v3101 = vadd.f32 0.0, %v3100
        %3102 = vmatprep.mubr.bf16.mxu0 0
        %3103 = vmatmul.mubr.bf16.gmra.mrb[0].mxu0 %v2902
        %v3104 = vpop.f32.mrb[0].mxu0
        %v3105 = vadd.f32 0.0, %v3104
        %v3106 = vpop.f32.mrb[0].mxu0
        %v3107 = vadd.f32 0.0, %v3106
        %v3108 = vpop.f32.mrb[0].mxu0
        %v3109 = vadd.f32 0.0, %v3108
        %v3110 = vpop.f32.mrb[0].mxu0
        %v3111 = vadd.f32 0.0, %v3110
        %3112 = vdwg.mxu0
        %v3113 = vadd.f32 %v2830, %v3035
        %v3114 = vadd.f32 %v2831, %v3037
        %v3115 = vadd.f32 %v2832, %v3039
        %v3116 = vadd.f32 %v2833, %v3041
        %v3117 = vadd.f32 %v2834, %v3045
        %v3118 = vadd.f32 %v2835, %v3047
        %v3119 = vadd.f32 %v2836, %v3049
        %v3120 = vadd.f32 %v2837, %v3051
        %v3121 = vadd.f32 %v2838, %v3055
        %v3122 = vadd.f32 %v2839, %v3057
        %v3123 = vadd.f32 %v2840, %v3059
        %v3124 = vadd.f32 %v2841, %v3061
        %v3125 = vadd.f32 %v2842, %v3065
        %v3126 = vadd.f32 %v2843, %v3067
        %v3127 = vadd.f32 %v2844, %v3069
        %v3128 = vadd.f32 %v2845, %v3071
        %v3129 = vadd.f32 %v2846, %v3075
        %v3130 = vadd.f32 %v2847, %v3077
        %v3131 = vadd.f32 %v2848, %v3079
        %v3132 = vadd.f32 %v2849, %v3081
        %v3133 = vadd.f32 %v2850, %v3085
        %v3134 = vadd.f32 %v2851, %v3087
        %v3135 = vadd.f32 %v2852, %v3089
        %v3136 = vadd.f32 %v2853, %v3091
        %v3137 = vadd.f32 %v2854, %v3095
        %v3138 = vadd.f32 %v2855, %v3097
        %v3139 = vadd.f32 %v2856, %v3099
        %v3140 = vadd.f32 %v2857, %v3101
        %v3141 = vadd.f32 %v2858, %v3105
        %v3142 = vadd.f32 %v2859, %v3107
        %v3143 = vadd.f32 %v2860, %v3109
        %v3144 = vadd.f32 %v2861, %v3111
        %v3145 = vpack.c.bf16 %v2099, %v2098
        %v3146 = vpack.c.bf16 %v2101, %v2100
        %v3147 = vpack.c.bf16 %v2103, %v2102
        %v3148 = vpack.c.bf16 %v2105, %v2104
        %v3149 = vpack.c.bf16 %v2107, %v2106
        %v3150 = vpack.c.bf16 %v2109, %v2108
        %v3151 = vpack.c.bf16 %v2111, %v2110
        %v3152 = vpack.c.bf16 %v2097, %v2112
        %s3153 = scalar_lea.vmem [#allocation5], 512
        %v3154 = vld [vmem:[%s3153] sm:$0xff]
        %v3155 = vld [vmem:[%s3153 + $0x8] sm:$0xff]
        %v3156 = vld [vmem:[%s3153 + $0x10] sm:$0xff]
        %v3157 = vld [vmem:[%s3153 + $0x18] sm:$0xff]
        %v3158 = vld [vmem:[%s3153 + $0x20] sm:$0xff]
        %v3159 = vld [vmem:[%s3153 + $0x28] sm:$0xff]
        %v3160 = vld [vmem:[%s3153 + $0x30] sm:$0xff]
        %v3161 = vld [vmem:[%s3153 + $0x38] sm:$0xff]
        %v3162 = vld [vmem:[%s3153 + $0x40] sm:$0xff]
        %v3163 = vld [vmem:[%s3153 + $0x48] sm:$0xff]
        %v3164 = vld [vmem:[%s3153 + $0x50] sm:$0xff]
        %v3165 = vld [vmem:[%s3153 + $0x58] sm:$0xff]
        %v3166 = vld [vmem:[%s3153 + $0x60] sm:$0xff]
        %v3167 = vld [vmem:[%s3153 + $0x68] sm:$0xff]
        %v3168 = vld [vmem:[%s3153 + $0x70] sm:$0xff]
        %v3169 = vld [vmem:[%s3153 + $0x78] sm:$0xff]
        %v3186 = vunpack.c.l.b16 %v3154
        %v3187 = vunpack.c.h.b16 %v3154
        %v3188 = vunpack.c.l.b16 %v3155
        %v3189 = vunpack.c.h.b16 %v3155
        %v3190 = vunpack.c.l.b16 %v3156
        %v3191 = vunpack.c.h.b16 %v3156
        %v3192 = vunpack.c.l.b16 %v3157
        %v3193 = vunpack.c.h.b16 %v3157
        %v3194 = vunpack.c.l.b16 %v3158
        %v3195 = vunpack.c.h.b16 %v3158
        %v3196 = vunpack.c.l.b16 %v3159
        %v3197 = vunpack.c.h.b16 %v3159
        %v3198 = vunpack.c.l.b16 %v3160
        %v3199 = vunpack.c.h.b16 %v3160
        %v3200 = vunpack.c.l.b16 %v3161
        %v3201 = vunpack.c.h.b16 %v3161
        %v3202 = vunpack.c.l.b16 %v3162
        %v3203 = vunpack.c.h.b16 %v3162
        %v3204 = vunpack.c.l.b16 %v3163
        %v3205 = vunpack.c.h.b16 %v3163
        %v3206 = vunpack.c.l.b16 %v3164
        %v3207 = vunpack.c.h.b16 %v3164
        %v3208 = vunpack.c.l.b16 %v3165
        %v3209 = vunpack.c.h.b16 %v3165
        %v3210 = vunpack.c.l.b16 %v3166
        %v3211 = vunpack.c.h.b16 %v3166
        %v3212 = vunpack.c.l.b16 %v3167
        %v3213 = vunpack.c.h.b16 %v3167
        %v3214 = vunpack.c.l.b16 %v3168
        %v3215 = vunpack.c.h.b16 %v3168
        %v3216 = vunpack.c.l.b16 %v3169
        %v3217 = vunpack.c.h.b16 %v3169
        %v3218 = vpack.c.b16 %v3188, %v3186
        %v3219 = vpack.c.b16 %v3189, %v3187
        %v3220 = vpack.c.b16 %v3192, %v3190
        %v3221 = vpack.c.b16 %v3193, %v3191
        %v3222 = vpack.c.b16 %v3196, %v3194
        %v3223 = vpack.c.b16 %v3197, %v3195
        %v3224 = vpack.c.b16 %v3200, %v3198
        %v3225 = vpack.c.b16 %v3201, %v3199
        %v3226 = vpack.c.b16 %v3204, %v3202
        %v3227 = vpack.c.b16 %v3205, %v3203
        %v3228 = vpack.c.b16 %v3208, %v3206
        %v3229 = vpack.c.b16 %v3209, %v3207
        %v3230 = vpack.c.b16 %v3212, %v3210
        %v3231 = vpack.c.b16 %v3213, %v3211
        %v3232 = vpack.c.b16 %v3216, %v3214
        %v3233 = vpack.c.b16 %v3217, %v3215
        %3250 = vmatprep.subr.bf16.mxu0 %v3219
        %3251 = vmatpush1.bf16.msra.mxu0 %v3218
        %3252 = vmatprep.subr.bf16.mxu0 %v3221
        %3253 = vmatpush1.bf16.msra.mxu0 %v3220
        %3254 = vmatprep.subr.bf16.mxu0 %v3223
        %3255 = vmatpush1.bf16.msra.mxu0 %v3222
        %3256 = vmatprep.subr.bf16.mxu0 %v3225
        %3257 = vmatpush1.bf16.msra.mxu0 %v3224
        %3258 = vmatprep.subr.bf16.mxu0 %v3227
        %3259 = vmatpush1.bf16.msra.mxu0 %v3226
        %3260 = vmatprep.subr.bf16.mxu0 %v3229
        %3261 = vmatpush1.bf16.msra.mxu0 %v3228
        %3262 = vmatprep.subr.bf16.mxu0 %v3231
        %3263 = vmatpush1.bf16.msra.mxu0 %v3230
        %3264 = vmatprep.subr.bf16.mxu0 %v3233
        %3265 = vmatpush1.bf16.msra.mxu0 %v3232
        %3266 = vmatprep.subr.bf16.mxu0 0
        %3267 = vmatpush1.bf16.msra.mxu0 0
        %3268 = vmatprep.subr.bf16.mxu0 0
        %3269 = vmatpush1.bf16.msra.mxu0 0
        %3270 = vmatprep.subr.bf16.mxu0 0
        %3271 = vmatpush1.bf16.msra.mxu0 0
        %3272 = vmatprep.subr.bf16.mxu0 0
        %3273 = vmatpush1.bf16.msra.mxu0 0
        %3274 = vmatprep.subr.bf16.mxu0 0
        %3275 = vmatpush1.bf16.msra.mxu0 0
        %3276 = vmatprep.subr.bf16.mxu0 0
        %3277 = vmatpush1.bf16.msra.mxu0 0
        %3278 = vmatprep.subr.bf16.mxu0 0
        %3279 = vmatpush1.bf16.msra.mxu0 0
        %3280 = vmatprep.subr.bf16.mxu0 0
        %3281 = vmatpush1.bf16.msra.mxu0 0
        %3282 = vmatprep.mubr.bf16.mxu0 0
        %3283 = vmatmul.mubr.bf16.gmra.mrb[0].mxu0 %v3145
        %v3284 = vpop.f32.mrb[0].mxu0
        %v3285 = vadd.f32 0.0, %v3284
        %v3286 = vpop.f32.mrb[0].mxu0
        %v3287 = vadd.f32 0.0, %v3286
        %v3288 = vpop.f32.mrb[0].mxu0
        %v3289 = vadd.f32 0.0, %v3288
        %v3290 = vpop.f32.mrb[0].mxu0
        %v3291 = vadd.f32 0.0, %v3290
        %3292 = vmatprep.mubr.bf16.mxu0 0
        %3293 = vmatmul.mubr.bf16.gmra.mrb[0].mxu0 %v3146
        %v3294 = vpop.f32.mrb[0].mxu0
        %v3295 = vadd.f32 0.0, %v3294
        %v3296 = vpop.f32.mrb[0].mxu0
        %v3297 = vadd.f32 0.0, %v3296
        %v3298 = vpop.f32.mrb[0].mxu0
        %v3299 = vadd.f32 0.0, %v3298
        %v3300 = vpop.f32.mrb[0].mxu0
        %v3301 = vadd.f32 0.0, %v3300
        %3302 = vmatprep.mubr.bf16.mxu0 0
        %3303 = vmatmul.mubr.bf16.gmra.mrb[0].mxu0 %v3147
        %v3304 = vpop.f32.mrb[0].mxu0
        %v3305 = vadd.f32 0.0, %v3304
        %v3306 = vpop.f32.mrb[0].mxu0
        %v3307 = vadd.f32 0.0, %v3306
        %v3308 = vpop.f32.mrb[0].mxu0
        %v3309 = vadd.f32 0.0, %v3308
        %v3310 = vpop.f32.mrb[0].mxu0
        %v3311 = vadd.f32 0.0, %v3310
        %3312 = vmatprep.mubr.bf16.mxu0 0
        %3313 = vmatmul.mubr.bf16.gmra.mrb[0].mxu0 %v3148
        %v3314 = vpop.f32.mrb[0].mxu0
        %v3315 = vadd.f32 0.0, %v3314
        %v3316 = vpop.f32.mrb[0].mxu0
        %v3317 = vadd.f32 0.0, %v3316
        %v3318 = vpop.f32.mrb[0].mxu0
        %v3319 = vadd.f32 0.0, %v3318
        %v3320 = vpop.f32.mrb[0].mxu0
        %v3321 = vadd.f32 0.0, %v3320
        %3322 = vmatprep.mubr.bf16.mxu0 0
        %3323 = vmatmul.mubr.bf16.gmra.mrb[0].mxu0 %v3149
        %v3324 = vpop.f32.mrb[0].mxu0
        %v3325 = vadd.f32 0.0, %v3324
        %v3326 = vpop.f32.mrb[0].mxu0
        %v3327 = vadd.f32 0.0, %v3326
        %v3328 = vpop.f32.mrb[0].mxu0
        %v3329 = vadd.f32 0.0, %v3328
        %v3330 = vpop.f32.mrb[0].mxu0
        %v3331 = vadd.f32 0.0, %v3330
        %3332 = vmatprep.mubr.bf16.mxu0 0
        %3333 = vmatmul.mubr.bf16.gmra.mrb[0].mxu0 %v3150
        %v3334 = vpop.f32.mrb[0].mxu0
        %v3335 = vadd.f32 0.0, %v3334
        %v3336 = vpop.f32.mrb[0].mxu0
        %v3337 = vadd.f32 0.0, %v3336
        %v3338 = vpop.f32.mrb[0].mxu0
        %v3339 = vadd.f32 0.0, %v3338
        %v3340 = vpop.f32.mrb[0].mxu0
        %v3341 = vadd.f32 0.0, %v3340
        %3342 = vmatprep.mubr.bf16.mxu0 0
        %3343 = vmatmul.mubr.bf16.gmra.mrb[0].mxu0 %v3151
        %v3344 = vpop.f32.mrb[0].mxu0
        %v3345 = vadd.f32 0.0, %v3344
        %v3346 = vpop.f32.mrb[0].mxu0
        %v3347 = vadd.f32 0.0, %v3346
        %v3348 = vpop.f32.mrb[0].mxu0
        %v3349 = vadd.f32 0.0, %v3348
        %v3350 = vpop.f32.mrb[0].mxu0
        %v3351 = vadd.f32 0.0, %v3350
        %3352 = vmatprep.mubr.bf16.mxu0 0
        %3353 = vmatmul.mubr.bf16.gmra.mrb[0].mxu0 %v3152
        %v3354 = vpop.f32.mrb[0].mxu0
        %v3355 = vadd.f32 0.0, %v3354
        %v3356 = vpop.f32.mrb[0].mxu0
        %v3357 = vadd.f32 0.0, %v3356
        %v3358 = vpop.f32.mrb[0].mxu0
        %v3359 = vadd.f32 0.0, %v3358
        %v3360 = vpop.f32.mrb[0].mxu0
        %v3361 = vadd.f32 0.0, %v3360
        %3362 = vdwg.mxu0
        %v3363 = vadd.f32 %v3113, %v3285
        %v3364 = vadd.f32 %v3114, %v3287
        %v3365 = vadd.f32 %v3115, %v3289
        %v3366 = vadd.f32 %v3116, %v3291
        %v3367 = vadd.f32 %v3117, %v3295
        %v3368 = vadd.f32 %v3118, %v3297
        %v3369 = vadd.f32 %v3119, %v3299
        %v3370 = vadd.f32 %v3120, %v3301
        %v3371 = vadd.f32 %v3121, %v3305
        %v3372 = vadd.f32 %v3122, %v3307
        %v3373 = vadd.f32 %v3123, %v3309
        %v3374 = vadd.f32 %v3124, %v3311
        %v3375 = vadd.f32 %v3125, %v3315
        %v3376 = vadd.f32 %v3126, %v3317
        %v3377 = vadd.f32 %v3127, %v3319
        %v3378 = vadd.f32 %v3128, %v3321
        %v3379 = vadd.f32 %v3129, %v3325
        %v3380 = vadd.f32 %v3130, %v3327
        %v3381 = vadd.f32 %v3131, %v3329
        %v3382 = vadd.f32 %v3132, %v3331
        %v3383 = vadd.f32 %v3133, %v3335
        %v3384 = vadd.f32 %v3134, %v3337
        %v3385 = vadd.f32 %v3135, %v3339
        %v3386 = vadd.f32 %v3136, %v3341
        %v3387 = vadd.f32 %v3137, %v3345
        %v3388 = vadd.f32 %v3138, %v3347
        %v3389 = vadd.f32 %v3139, %v3349
        %v3390 = vadd.f32 %v3140, %v3351
        %v3391 = vadd.f32 %v3141, %v3355
        %v3392 = vadd.f32 %v3142, %v3357
        %v3393 = vadd.f32 %v3143, %v3359
        %v3394 = vadd.f32 %v3144, %v3361
        %v3395 = vrot.slane %v3363, 2
        %v3396 = vrot.slane %v3364, 2
        %v3397 = vrot.slane %v3365, 2
        %v3398 = vrot.slane %v3366, 2
        %v3399 = vrot.slane %v3367, 2
        %v3400 = vrot.slane %v3368, 2
        %v3401 = vrot.slane %v3369, 2
        %v3402 = vrot.slane %v3370, 2
        %v3403 = vrot.slane %v3371, 2
        %v3404 = vrot.slane %v3372, 2
        %v3405 = vrot.slane %v3373, 2
        %v3406 = vrot.slane %v3374, 2
        %v3407 = vrot.slane %v3375, 2
        %v3408 = vrot.slane %v3376, 2
        %v3409 = vrot.slane %v3377, 2
        %v3410 = vrot.slane %v3378, 2
        %v3411 = vrot.slane %v3379, 2
        %v3412 = vrot.slane %v3380, 2
        %v3413 = vrot.slane %v3381, 2
        %v3414 = vrot.slane %v3382, 2
        %v3415 = vrot.slane %v3383, 2
        %v3416 = vrot.slane %v3384, 2
        %v3417 = vrot.slane %v3385, 2
        %v3418 = vrot.slane %v3386, 2
        %v3419 = vrot.slane %v3387, 2
        %v3420 = vrot.slane %v3388, 2
        %v3421 = vrot.slane %v3389, 2
        %v3422 = vrot.slane %v3390, 2
        %v3423 = vrot.slane %v3391, 2
        %v3424 = vrot.slane %v3392, 2
        %v3425 = vrot.slane %v3393, 2
        %v3426 = vrot.slane %v3394, 2
        %v3427 = vsel %vm933, %v3423, %v3425
        %v3428 = vsel %vm933, %v3424, %v3426
        %v3429 = vsel %vm933, %v3421, %v3423
        %v3430 = vsel %vm933, %v3422, %v3424
        %v3431 = vsel %vm933, %v3419, %v3421
        %v3432 = vsel %vm933, %v3420, %v3422
        %v3433 = vsel %vm933, %v3417, %v3419
        %v3434 = vsel %vm933, %v3418, %v3420
        %v3435 = vsel %vm933, %v3415, %v3417
        %v3436 = vsel %vm933, %v3416, %v3418
        %v3437 = vsel %vm933, %v3413, %v3415
        %v3438 = vsel %vm933, %v3414, %v3416
        %v3439 = vsel %vm933, %v3411, %v3413
        %v3440 = vsel %vm933, %v3412, %v3414
        %v3441 = vsel %vm933, %v3409, %v3411
        %v3442 = vsel %vm933, %v3410, %v3412
        %v3443 = vsel %vm933, %v3407, %v3409
        %v3444 = vsel %vm933, %v3408, %v3410
        %v3445 = vsel %vm933, %v3405, %v3407
        %v3446 = vsel %vm933, %v3406, %v3408
        %v3447 = vsel %vm933, %v3403, %v3405
        %v3448 = vsel %vm933, %v3404, %v3406
        %v3449 = vsel %vm933, %v3401, %v3403
        %v3450 = vsel %vm933, %v3402, %v3404
        %v3451 = vsel %vm933, %v3399, %v3401
        %v3452 = vsel %vm933, %v3400, %v3402
        %v3453 = vsel %vm933, %v3397, %v3399
        %v3454 = vsel %vm933, %v3398, %v3400
        %v3455 = vsel %vm933, %v3395, %v3397
        %v3456 = vsel %vm933, %v3396, %v3398
        %v3457 = vsel %vm933, %v3425, %v3395
        %v3458 = vsel %vm933, %v3426, %v3396
        %v3459 = vmax.f32 %v3363, %v3455
        %v3460 = vmax.f32 %v3364, %v3456
        %v3461 = vmax.f32 %v3365, %v3453
        %v3462 = vmax.f32 %v3366, %v3454
        %v3463 = vmax.f32 %v3367, %v3451
        %v3464 = vmax.f32 %v3368, %v3452
        %v3465 = vmax.f32 %v3369, %v3449
        %v3466 = vmax.f32 %v3370, %v3450
        %v3467 = vmax.f32 %v3371, %v3447
        %v3468 = vmax.f32 %v3372, %v3448
        %v3469 = vmax.f32 %v3373, %v3445
        %v3470 = vmax.f32 %v3374, %v3446
        %v3471 = vmax.f32 %v3375, %v3443
        %v3472 = vmax.f32 %v3376, %v3444
        %v3473 = vmax.f32 %v3377, %v3441
        %v3474 = vmax.f32 %v3378, %v3442
        %v3475 = vmax.f32 %v3379, %v3439
        %v3476 = vmax.f32 %v3380, %v3440
        %v3477 = vmax.f32 %v3381, %v3437
        %v3478 = vmax.f32 %v3382, %v3438
        %v3479 = vmax.f32 %v3383, %v3435
        %v3480 = vmax.f32 %v3384, %v3436
        %v3481 = vmax.f32 %v3385, %v3433
        %v3482 = vmax.f32 %v3386, %v3434
        %v3483 = vmax.f32 %v3387, %v3431
        %v3484 = vmax.f32 %v3388, %v3432
        %v3485 = vmax.f32 %v3389, %v3429
        %v3486 = vmax.f32 %v3390, %v3430
        %v3487 = vmax.f32 %v3391, %v3427
        %v3488 = vmax.f32 %v3392, %v3428
        %v3489 = vmax.f32 %v3393, %v3457
        %v3490 = vmax.f32 %v3394, %v3458
        %3491 = vrot.lane.b32.xlu0 %v3459, 112
        %v3492 = vpop.permute.xlu0 %3491
        %3493 = vrot.lane.b32.xlu0 %v3461, 112
        %v3494 = vpop.permute.xlu0 %3493
        %3495 = vrot.lane.b32.xlu0 %v3463, 112
        %v3496 = vpop.permute.xlu0 %3495
        %3497 = vrot.lane.b32.xlu0 %v3465, 112
        %v3498 = vpop.permute.xlu0 %3497
        %3499 = vrot.lane.b32.xlu0 %v3467, 112
        %v3500 = vpop.permute.xlu0 %3499
        %3501 = vrot.lane.b32.xlu0 %v3469, 112
        %v3502 = vpop.permute.xlu0 %3501
        %3503 = vrot.lane.b32.xlu0 %v3471, 112
        %v3504 = vpop.permute.xlu0 %3503
        %3505 = vrot.lane.b32.xlu0 %v3473, 112
        %v3506 = vpop.permute.xlu0 %3505
        %3507 = vrot.lane.b32.xlu0 %v3475, 112
        %v3508 = vpop.permute.xlu0 %3507
        %3509 = vrot.lane.b32.xlu0 %v3477, 112
        %v3510 = vpop.permute.xlu0 %3509
        %3511 = vrot.lane.b32.xlu0 %v3479, 112
        %v3512 = vpop.permute.xlu0 %3511
        %3513 = vrot.lane.b32.xlu0 %v3481, 112
        %v3514 = vpop.permute.xlu0 %3513
        %3515 = vrot.lane.b32.xlu0 %v3483, 112
        %v3516 = vpop.permute.xlu0 %3515
        %3517 = vrot.lane.b32.xlu0 %v3485, 112
        %v3518 = vpop.permute.xlu0 %3517
        %3519 = vrot.lane.b32.xlu0 %v3487, 112
        %v3520 = vpop.permute.xlu0 %3519
        %3521 = vrot.lane.b32.xlu0 %v3489, 112
        %v3522 = vpop.permute.xlu0 %3521
        %3523 = vrot.lane.b32.xlu0 %v3460, 112
        %v3524 = vpop.permute.xlu0 %3523
        %3525 = vrot.lane.b32.xlu0 %v3462, 112
        %v3526 = vpop.permute.xlu0 %3525
        %3527 = vrot.lane.b32.xlu0 %v3464, 112
        %v3528 = vpop.permute.xlu0 %3527
        %3529 = vrot.lane.b32.xlu0 %v3466, 112
        %v3530 = vpop.permute.xlu0 %3529
        %3531 = vrot.lane.b32.xlu0 %v3468, 112
        %v3532 = vpop.permute.xlu0 %3531
        %3533 = vrot.lane.b32.xlu0 %v3470, 112
        %v3534 = vpop.permute.xlu0 %3533
        %3535 = vrot.lane.b32.xlu0 %v3472, 112
        %v3536 = vpop.permute.xlu0 %3535
        %3537 = vrot.lane.b32.xlu0 %v3474, 112
        %v3538 = vpop.permute.xlu0 %3537
        %3539 = vrot.lane.b32.xlu0 %v3476, 112
        %v3540 = vpop.permute.xlu0 %3539
        %3541 = vrot.lane.b32.xlu0 %v3478, 112
        %v3542 = vpop.permute.xlu0 %3541
        %3543 = vrot.lane.b32.xlu0 %v3480, 112
        %v3544 = vpop.permute.xlu0 %3543
        %3545 = vrot.lane.b32.xlu0 %v3482, 112
        %v3546 = vpop.permute.xlu0 %3545
        %3547 = vrot.lane.b32.xlu0 %v3484, 112
        %v3548 = vpop.permute.xlu0 %3547
        %3549 = vrot.lane.b32.xlu0 %v3486, 112
        %v3550 = vpop.permute.xlu0 %3549
        %3551 = vrot.lane.b32.xlu0 %v3488, 112
        %v3552 = vpop.permute.xlu0 %3551
        %3553 = vrot.lane.b32.xlu0 %v3490, 112
        %v3554 = vpop.permute.xlu0 %3553
        %vm3555 = vcmp.lt.s32.totalorder %v1783, 112
        %v3556 = vsel %vm3555, %v3492, %v3524
        %v3557 = vsel %vm3555, %v3494, %v3526
        %v3558 = vsel %vm3555, %v3496, %v3528
        %v3559 = vsel %vm3555, %v3498, %v3530
        %v3560 = vsel %vm3555, %v3500, %v3532
        %v3561 = vsel %vm3555, %v3502, %v3534
        %v3562 = vsel %vm3555, %v3504, %v3536
        %v3563 = vsel %vm3555, %v3506, %v3538
        %v3564 = vsel %vm3555, %v3508, %v3540
        %v3565 = vsel %vm3555, %v3510, %v3542
        %v3566 = vsel %vm3555, %v3512, %v3544
        %v3567 = vsel %vm3555, %v3514, %v3546
        %v3568 = vsel %vm3555, %v3516, %v3548
        %v3569 = vsel %vm3555, %v3518, %v3550
        %v3570 = vsel %vm3555, %v3520, %v3552
        %v3571 = vsel %vm3555, %v3522, %v3554
        %v3572 = vsel %vm3555, %v3524, %v3492
        %v3573 = vsel %vm3555, %v3526, %v3494
        %v3574 = vsel %vm3555, %v3528, %v3496
        %v3575 = vsel %vm3555, %v3530, %v3498
        %v3576 = vsel %vm3555, %v3532, %v3500
        %v3577 = vsel %vm3555, %v3534, %v3502
        %v3578 = vsel %vm3555, %v3536, %v3504
        %v3579 = vsel %vm3555, %v3538, %v3506
        %v3580 = vsel %vm3555, %v3540, %v3508
        %v3581 = vsel %vm3555, %v3542, %v3510
        %v3582 = vsel %vm3555, %v3544, %v3512
        %v3583 = vsel %vm3555, %v3546, %v3514
        %v3584 = vsel %vm3555, %v3548, %v3516
        %v3585 = vsel %vm3555, %v3550, %v3518
        %v3586 = vsel %vm3555, %v3552, %v3520
        %v3587 = vsel %vm3555, %v3554, %v3522
        %v3588 = vmax.f32 %v3459, %v3556
        %v3589 = vmax.f32 %v3460, %v3572
        %v3590 = vmax.f32 %v3461, %v3557
        %v3591 = vmax.f32 %v3462, %v3573
        %v3592 = vmax.f32 %v3463, %v3558
        %v3593 = vmax.f32 %v3464, %v3574
        %v3594 = vmax.f32 %v3465, %v3559
        %v3595 = vmax.f32 %v3466, %v3575
        %v3596 = vmax.f32 %v3467, %v3560
        %v3597 = vmax.f32 %v3468, %v3576
        %v3598 = vmax.f32 %v3469, %v3561
        %v3599 = vmax.f32 %v3470, %v3577
        %v3600 = vmax.f32 %v3471, %v3562
        %v3601 = vmax.f32 %v3472, %v3578
        %v3602 = vmax.f32 %v3473, %v3563
        %v3603 = vmax.f32 %v3474, %v3579
        %v3604 = vmax.f32 %v3475, %v3564
        %v3605 = vmax.f32 %v3476, %v3580
        %v3606 = vmax.f32 %v3477, %v3565
        %v3607 = vmax.f32 %v3478, %v3581
        %v3608 = vmax.f32 %v3479, %v3566
        %v3609 = vmax.f32 %v3480, %v3582
        %v3610 = vmax.f32 %v3481, %v3567
        %v3611 = vmax.f32 %v3482, %v3583
        %v3612 = vmax.f32 %v3483, %v3568
        %v3613 = vmax.f32 %v3484, %v3584
        %v3614 = vmax.f32 %v3485, %v3569
        %v3615 = vmax.f32 %v3486, %v3585
        %v3616 = vmax.f32 %v3487, %v3570
        %v3617 = vmax.f32 %v3488, %v3586
        %v3618 = vmax.f32 %v3489, %v3571
        %v3619 = vmax.f32 %v3490, %v3587
        %v3620 = vpack.c.bf16 %v3590, %v3588
        %v3621 = vpack.c.bf16 %v3591, %v3589
        %v3622 = vpack.c.bf16 %v3594, %v3592
        %v3623 = vpack.c.bf16 %v3595, %v3593
        %v3624 = vpack.c.bf16 %v3598, %v3596
        %v3625 = vpack.c.bf16 %v3599, %v3597
        %v3626 = vpack.c.bf16 %v3602, %v3600
        %v3627 = vpack.c.bf16 %v3603, %v3601
        %v3628 = vpack.c.bf16 %v3606, %v3604
        %v3629 = vpack.c.bf16 %v3607, %v3605
        %v3630 = vpack.c.bf16 %v3610, %v3608
        %v3631 = vpack.c.bf16 %v3611, %v3609
        %v3632 = vpack.c.bf16 %v3614, %v3612
        %v3633 = vpack.c.bf16 %v3615, %v3613
        %v3634 = vpack.c.bf16 %v3618, %v3616
        %v3635 = vpack.c.bf16 %v3619, %v3617
        %v3636 = vld [vmem:[#allocation7] sm:$0xf]
        %v3637 = vld [vmem:[#allocation7 + $0x4] sm:$0xf]
        %v3638 = vld [vmem:[#allocation7 + $0x8] sm:$0xf]
        %v3639 = vld [vmem:[#allocation7 + $0xc] sm:$0xf]
        %v3640 = vld [vmem:[#allocation7 + $0x10] sm:$0xf]
        %v3641 = vld [vmem:[#allocation7 + $0x14] sm:$0xf]
        %v3642 = vld [vmem:[#allocation7 + $0x18] sm:$0xf]
        %v3643 = vld [vmem:[#allocation7 + $0x1c] sm:$0xf]
        %v3644 = vld [vmem:[#allocation7 + $0x20] sm:$0xf]
        %v3645 = vld [vmem:[#allocation7 + $0x24] sm:$0xf]
        %v3646 = vld [vmem:[#allocation7 + $0x28] sm:$0xf]
        %v3647 = vld [vmem:[#allocation7 + $0x2c] sm:$0xf]
        %v3648 = vld [vmem:[#allocation7 + $0x30] sm:$0xf]
        %v3649 = vld [vmem:[#allocation7 + $0x34] sm:$0xf]
        %v3650 = vld [vmem:[#allocation7 + $0x38] sm:$0xf]
        %v3651 = vld [vmem:[#allocation7 + $0x3c] sm:$0xf]
        %v3652 = vld [vmem:[#allocation7 + $0x40] sm:$0xf]
        %v3653 = vld [vmem:[#allocation7 + $0x44] sm:$0xf]
        %v3654 = vld [vmem:[#allocation7 + $0x48] sm:$0xf]
        %v3655 = vld [vmem:[#allocation7 + $0x4c] sm:$0xf]
        %v3656 = vld [vmem:[#allocation7 + $0x50] sm:$0xf]
        %v3657 = vld [vmem:[#allocation7 + $0x54] sm:$0xf]
        %v3658 = vld [vmem:[#allocation7 + $0x58] sm:$0xf]
        %v3659 = vld [vmem:[#allocation7 + $0x5c] sm:$0xf]
        %v3660 = vld [vmem:[#allocation7 + $0x60] sm:$0xf]
        %v3661 = vld [vmem:[#allocation7 + $0x64] sm:$0xf]
        %v3662 = vld [vmem:[#allocation7 + $0x68] sm:$0xf]
        %v3663 = vld [vmem:[#allocation7 + $0x6c] sm:$0xf]
        %v3664 = vld [vmem:[#allocation7 + $0x70] sm:$0xf]
        %v3665 = vld [vmem:[#allocation7 + $0x74] sm:$0xf]
        %v3666 = vld [vmem:[#allocation7 + $0x78] sm:$0xf]
        %v3667 = vld [vmem:[#allocation7 + $0x7c] sm:$0xf]
        %v3668 = vld [vmem:[%s6] sm:$0x1]
        %v3670 = vlaneseq
        %v3671 = vshrl.u32 %v3670, 7
        %v3672 = vsub.s32 0, %v3671
        %v3673 = vrot.slane %v3668, %v3672
        %v3707 = vunpack.c.l.b16 %v3636
        %v3708 = vunpack.c.l.b16 %v3637
        %v3709 = vunpack.c.l.b16 %v3638
        %v3710 = vunpack.c.l.b16 %v3639
        %v3711 = vunpack.c.l.b16 %v3640
        %v3712 = vunpack.c.l.b16 %v3641
        %v3713 = vunpack.c.l.b16 %v3642
        %v3714 = vunpack.c.l.b16 %v3643
        %v3715 = vunpack.c.l.b16 %v3644
        %v3716 = vunpack.c.l.b16 %v3645
        %v3717 = vunpack.c.l.b16 %v3646
        %v3718 = vunpack.c.l.b16 %v3647
        %v3719 = vunpack.c.l.b16 %v3648
        %v3720 = vunpack.c.l.b16 %v3649
        %v3721 = vunpack.c.l.b16 %v3650
        %v3722 = vunpack.c.l.b16 %v3651
        %v3723 = vunpack.c.l.b16 %v3652
        %v3724 = vunpack.c.l.b16 %v3653
        %v3725 = vunpack.c.l.b16 %v3654
        %v3726 = vunpack.c.l.b16 %v3655
        %v3727 = vunpack.c.l.b16 %v3656
        %v3728 = vunpack.c.l.b16 %v3657
        %v3729 = vunpack.c.l.b16 %v3658
        %v3730 = vunpack.c.l.b16 %v3659
        %v3731 = vunpack.c.l.b16 %v3660
        %v3732 = vunpack.c.l.b16 %v3661
        %v3733 = vunpack.c.l.b16 %v3662
        %v3734 = vunpack.c.l.b16 %v3663
        %v3735 = vunpack.c.l.b16 %v3664
        %v3736 = vunpack.c.l.b16 %v3665
        %v3737 = vunpack.c.l.b16 %v3666
        %v3738 = vunpack.c.l.b16 %v3667
        %v3739 = vpack.c.b16 %v3708, %v3707
        %v3740 = vpack.c.b16 %v3710, %v3709
        %v3741 = vpack.c.b16 %v3712, %v3711
        %v3742 = vpack.c.b16 %v3714, %v3713
        %v3743 = vpack.c.b16 %v3716, %v3715
        %v3744 = vpack.c.b16 %v3718, %v3717
        %v3745 = vpack.c.b16 %v3720, %v3719
        %v3746 = vpack.c.b16 %v3722, %v3721
        %v3747 = vpack.c.b16 %v3724, %v3723
        %v3748 = vpack.c.b16 %v3726, %v3725
        %v3749 = vpack.c.b16 %v3728, %v3727
        %v3750 = vpack.c.b16 %v3730, %v3729
        %v3751 = vpack.c.b16 %v3732, %v3731
        %v3752 = vpack.c.b16 %v3734, %v3733
        %v3753 = vpack.c.b16 %v3736, %v3735
        %v3754 = vpack.c.b16 %v3738, %v3737
        %3771 = vmatprep.subr.bf16.mxu0 0
        %3772 = vmatpush1.bf16.msra.mxu0 %v3739
        %3773 = vmatprep.subr.bf16.mxu0 0
        %3774 = vmatpush1.bf16.msra.mxu0 %v3740
        %3775 = vmatprep.subr.bf16.mxu0 0
        %3776 = vmatpush1.bf16.msra.mxu0 %v3741
        %3777 = vmatprep.subr.bf16.mxu0 0
        %3778 = vmatpush1.bf16.msra.mxu0 %v3742
        %3779 = vmatprep.subr.bf16.mxu0 0
        %3780 = vmatpush1.bf16.msra.mxu0 %v3743
        %3781 = vmatprep.subr.bf16.mxu0 0
        %3782 = vmatpush1.bf16.msra.mxu0 %v3744
        %3783 = vmatprep.subr.bf16.mxu0 0
        %3784 = vmatpush1.bf16.msra.mxu0 %v3745
        %3785 = vmatprep.subr.bf16.mxu0 0
        %3786 = vmatpush1.bf16.msra.mxu0 %v3746
        %3787 = vmatprep.subr.bf16.mxu0 0
        %3788 = vmatpush1.bf16.msra.mxu0 %v3747
        %3789 = vmatprep.subr.bf16.mxu0 0
        %3790 = vmatpush1.bf16.msra.mxu0 %v3748
        %3791 = vmatprep.subr.bf16.mxu0 0
        %3792 = vmatpush1.bf16.msra.mxu0 %v3749
        %3793 = vmatprep.subr.bf16.mxu0 0
        %3794 = vmatpush1.bf16.msra.mxu0 %v3750
        %3795 = vmatprep.subr.bf16.mxu0 0
        %3796 = vmatpush1.bf16.msra.mxu0 %v3751
        %3797 = vmatprep.subr.bf16.mxu0 0
        %3798 = vmatpush1.bf16.msra.mxu0 %v3752
        %3799 = vmatprep.subr.bf16.mxu0 0
        %3800 = vmatpush1.bf16.msra.mxu0 %v3753
        %3801 = vmatprep.subr.bf16.mxu0 0
        %3802 = vmatpush1.bf16.msra.mxu0 %v3754
        %3803 = vmatprep.mubr.bf16.mxu0 %v3621
        %3804 = vmatmul.mubr.bf16.gmra.mrb[0].mxu0 %v3620
        %v3805 = vpop.f32.mrb[0].mxu0
        %v3806 = vadd.f32 %v3673, %v3805
        %v3807 = vpop.f32.mrb[0].mxu0
        %v3808 = vpop.f32.mrb[0].mxu0
        %v3809 = vadd.f32 %v3673, %v3808
        %v3810 = vpop.f32.mrb[0].mxu0
        %3811 = vmatprep.mubr.bf16.mxu0 %v3623
        %3812 = vmatmul.mubr.bf16.gmra.mrb[0].mxu0 %v3622
        %v3813 = vpop.f32.mrb[0].mxu0
        %v3814 = vadd.f32 %v3673, %v3813
        %v3815 = vpop.f32.mrb[0].mxu0
        %v3816 = vpop.f32.mrb[0].mxu0
        %v3817 = vadd.f32 %v3673, %v3816
        %v3818 = vpop.f32.mrb[0].mxu0
        %3819 = vmatprep.mubr.bf16.mxu0 %v3625
        %3820 = vmatmul.mubr.bf16.gmra.mrb[0].mxu0 %v3624
        %v3821 = vpop.f32.mrb[0].mxu0
        %v3822 = vadd.f32 %v3673, %v3821
        %v3823 = vpop.f32.mrb[0].mxu0
        %v3824 = vpop.f32.mrb[0].mxu0
        %v3825 = vadd.f32 %v3673, %v3824
        %v3826 = vpop.f32.mrb[0].mxu0
        %3827 = vmatprep.mubr.bf16.mxu0 %v3627
        %3828 = vmatmul.mubr.bf16.gmra.mrb[0].mxu0 %v3626
        %v3829 = vpop.f32.mrb[0].mxu0
        %v3830 = vadd.f32 %v3673, %v3829
        %v3831 = vpop.f32.mrb[0].mxu0
        %v3832 = vpop.f32.mrb[0].mxu0
        %v3833 = vadd.f32 %v3673, %v3832
        %v3834 = vpop.f32.mrb[0].mxu0
        %3835 = vmatprep.mubr.bf16.mxu0 %v3629
        %3836 = vmatmul.mubr.bf16.gmra.mrb[0].mxu0 %v3628
        %v3837 = vpop.f32.mrb[0].mxu0
        %v3838 = vadd.f32 %v3673, %v3837
        %v3839 = vpop.f32.mrb[0].mxu0
        %v3840 = vpop.f32.mrb[0].mxu0
        %v3841 = vadd.f32 %v3673, %v3840
        %v3842 = vpop.f32.mrb[0].mxu0
        %3843 = vmatprep.mubr.bf16.mxu0 %v3631
        %3844 = vmatmul.mubr.bf16.gmra.mrb[0].mxu0 %v3630
        %v3845 = vpop.f32.mrb[0].mxu0
        %v3846 = vadd.f32 %v3673, %v3845
        %v3847 = vpop.f32.mrb[0].mxu0
        %v3848 = vpop.f32.mrb[0].mxu0
        %v3849 = vadd.f32 %v3673, %v3848
        %v3850 = vpop.f32.mrb[0].mxu0
        %3851 = vmatprep.mubr.bf16.mxu0 %v3633
        %3852 = vmatmul.mubr.bf16.gmra.mrb[0].mxu0 %v3632
        %v3853 = vpop.f32.mrb[0].mxu0
        %v3854 = vadd.f32 %v3673, %v3853
        %v3855 = vpop.f32.mrb[0].mxu0
        %v3856 = vpop.f32.mrb[0].mxu0
        %v3857 = vadd.f32 %v3673, %v3856
        %v3858 = vpop.f32.mrb[0].mxu0
        %3859 = vmatprep.mubr.bf16.mxu0 %v3635
        %3860 = vmatmul.mubr.bf16.gmra.mrb[0].mxu0 %v3634
        %v3861 = vpop.f32.mrb[0].mxu0
        %v3862 = vadd.f32 %v3673, %v3861
        %v3863 = vpop.f32.mrb[0].mxu0
        %v3864 = vpop.f32.mrb[0].mxu0
        %v3865 = vadd.f32 %v3673, %v3864
        %v3866 = vpop.f32.mrb[0].mxu0
        %3867 = vdwg.mxu0
        %v3868 = vmax.f32 %v3806, 0.0
        %v3869 = vmax.f32 %v3809, 0.0
        %v3870 = vmax.f32 %v3814, 0.0
        %v3871 = vmax.f32 %v3817, 0.0
        %v3872 = vmax.f32 %v3822, 0.0
        %v3873 = vmax.f32 %v3825, 0.0
        %v3874 = vmax.f32 %v3830, 0.0
        %v3875 = vmax.f32 %v3833, 0.0
        %v3876 = vmax.f32 %v3838, 0.0
        %v3877 = vmax.f32 %v3841, 0.0
        %v3878 = vmax.f32 %v3846, 0.0
        %v3879 = vmax.f32 %v3849, 0.0
        %v3880 = vmax.f32 %v3854, 0.0
        %v3881 = vmax.f32 %v3857, 0.0
        %v3882 = vmax.f32 %v3862, 0.0
        %v3883 = vmax.f32 %v3865, 0.0
        %v3884 = vpack.c.bf16 %v3869, %v3868
        %v3885 = vpack.c.bf16 %v3871, %v3870
        %v3886 = vpack.c.bf16 %v3873, %v3872
        %v3887 = vpack.c.bf16 %v3875, %v3874
        %v3888 = vpack.c.bf16 %v3877, %v3876
        %v3889 = vpack.c.bf16 %v3879, %v3878
        %v3890 = vpack.c.bf16 %v3881, %v3880
        %v3891 = vpack.c.bf16 %v3883, %v3882
        %v3892 = vld [vmem:[%s7] sm:$0xf]
        %v3893 = vld [vmem:[%s7 + $0x4] sm:$0xf]
        %v3894 = vld [vmem:[%s7 + $0x8] sm:$0xf]
        %v3895 = vld [vmem:[%s7 + $0xc] sm:$0xf]
        %v3896 = vld [vmem:[%s7 + $0x10] sm:$0xf]
        %v3897 = vld [vmem:[%s7 + $0x14] sm:$0xf]
        %v3898 = vld [vmem:[%s7 + $0x18] sm:$0xf]
        %v3899 = vld [vmem:[%s7 + $0x1c] sm:$0xf]
        %v3900 = vld [vmem:[%s7 + $0x20] sm:$0xf]
        %v3901 = vld [vmem:[%s7 + $0x24] sm:$0xf]
        %v3902 = vld [vmem:[%s7 + $0x28] sm:$0xf]
        %v3903 = vld [vmem:[%s7 + $0x2c] sm:$0xf]
        %v3904 = vld [vmem:[%s7 + $0x30] sm:$0xf]
        %v3905 = vld [vmem:[%s7 + $0x34] sm:$0xf]
        %v3906 = vld [vmem:[%s7 + $0x38] sm:$0xf]
        %v3907 = vld [vmem:[%s7 + $0x3c] sm:$0xf]
        %v3908 = vrot.slane %v3868, 4
        %v3909 = vrot.slane %v3869, 4
        %v3910 = vrot.slane %v3870, 4
        %v3911 = vrot.slane %v3871, 4
        %v3912 = vrot.slane %v3872, 4
        %v3913 = vrot.slane %v3873, 4
        %v3914 = vrot.slane %v3874, 4
        %v3915 = vrot.slane %v3875, 4
        %v3916 = vrot.slane %v3876, 4
        %v3917 = vrot.slane %v3877, 4
        %v3918 = vrot.slane %v3878, 4
        %v3919 = vrot.slane %v3879, 4
        %v3920 = vrot.slane %v3880, 4
        %v3921 = vrot.slane %v3881, 4
        %v3922 = vrot.slane %v3882, 4
        %v3923 = vrot.slane %v3883, 4
        %v3924 = vsel %vm1403, %v3922, %v3923
        %v3925 = vsel %vm1403, %v3921, %v3922
        %v3926 = vsel %vm1403, %v3920, %v3921
        %v3927 = vsel %vm1403, %v3919, %v3920
        %v3928 = vsel %vm1403, %v3918, %v3919
        %v3929 = vsel %vm1403, %v3917, %v3918
        %v3930 = vsel %vm1403, %v3916, %v3917
        %v3931 = vsel %vm1403, %v3915, %v3916
        %v3932 = vsel %vm1403, %v3914, %v3915
        %v3933 = vsel %vm1403, %v3913, %v3914
        %v3934 = vsel %vm1403, %v3912, %v3913
        %v3935 = vsel %vm1403, %v3911, %v3912
        %v3936 = vsel %vm1403, %v3910, %v3911
        %v3937 = vsel %vm1403, %v3909, %v3910
        %v3938 = vsel %vm1403, %v3908, %v3909
        %v3939 = vsel %vm1403, %v3923, %v3908
        %v3940 = vpack.c.bf16 %v3937, %v3938
        %v3941 = vpack.c.bf16 %v3935, %v3936
        %v3942 = vpack.c.bf16 %v3933, %v3934
        %v3943 = vpack.c.bf16 %v3931, %v3932
        %v3944 = vpack.c.bf16 %v3929, %v3930
        %v3945 = vpack.c.bf16 %v3927, %v3928
        %v3946 = vpack.c.bf16 %v3925, %v3926
        %v3947 = vpack.c.bf16 %v3939, %v3924
        %s3948 = scalar_lea.vmem %s7, 64
        %v3949 = vld [vmem:[%s3948] sm:$0xf]
        %v3950 = vld [vmem:[%s3948 + $0x4] sm:$0xf]
        %v3951 = vld [vmem:[%s3948 + $0x8] sm:$0xf]
        %v3952 = vld [vmem:[%s3948 + $0xc] sm:$0xf]
        %v3953 = vld [vmem:[%s3948 + $0x10] sm:$0xf]
        %v3954 = vld [vmem:[%s3948 + $0x14] sm:$0xf]
        %v3955 = vld [vmem:[%s3948 + $0x18] sm:$0xf]
        %v3956 = vld [vmem:[%s3948 + $0x1c] sm:$0xf]
        %v3957 = vld [vmem:[%s3948 + $0x20] sm:$0xf]
        %v3958 = vld [vmem:[%s3948 + $0x24] sm:$0xf]
        %v3959 = vld [vmem:[%s3948 + $0x28] sm:$0xf]
        %v3960 = vld [vmem:[%s3948 + $0x2c] sm:$0xf]
        %v3961 = vld [vmem:[%s3948 + $0x30] sm:$0xf]
        %v3962 = vld [vmem:[%s3948 + $0x34] sm:$0xf]
        %v3963 = vld [vmem:[%s3948 + $0x38] sm:$0xf]
        %v3964 = vld [vmem:[%s3948 + $0x3c] sm:$0xf]
        %v3981 = vunpack.c.l.b16 %v3949
        %v3982 = vunpack.c.l.b16 %v3950
        %v3983 = vunpack.c.l.b16 %v3951
        %v3984 = vunpack.c.l.b16 %v3952
        %v3985 = vunpack.c.l.b16 %v3953
        %v3986 = vunpack.c.l.b16 %v3954
        %v3987 = vunpack.c.l.b16 %v3955
        %v3988 = vunpack.c.l.b16 %v3956
        %v3989 = vunpack.c.l.b16 %v3957
        %v3990 = vunpack.c.l.b16 %v3958
        %v3991 = vunpack.c.l.b16 %v3959
        %v3992 = vunpack.c.l.b16 %v3960
        %v3993 = vunpack.c.l.b16 %v3961
        %v3994 = vunpack.c.l.b16 %v3962
        %v3995 = vunpack.c.l.b16 %v3963
        %v3996 = vunpack.c.l.b16 %v3964
        %v3997 = vpack.c.b16 %v3982, %v3981
        %v3998 = vpack.c.b16 %v3984, %v3983
        %v3999 = vpack.c.b16 %v3986, %v3985
        %v4000 = vpack.c.b16 %v3988, %v3987
        %v4001 = vpack.c.b16 %v3990, %v3989
        %v4002 = vpack.c.b16 %v3992, %v3991
        %v4003 = vpack.c.b16 %v3994, %v3993
        %v4004 = vpack.c.b16 %v3996, %v3995
        %4013 = vmatprep.subr.bf16.mxu0 0
        %4014 = vmatpush1.bf16.msra.mxu0 %v3997
        %4015 = vmatprep.subr.bf16.mxu0 0
        %4016 = vmatpush1.bf16.msra.mxu0 %v3998
        %4017 = vmatprep.subr.bf16.mxu0 0
        %4018 = vmatpush1.bf16.msra.mxu0 %v3999
        %4019 = vmatprep.subr.bf16.mxu0 0
        %4020 = vmatpush1.bf16.msra.mxu0 %v4000
        %4021 = vmatprep.subr.bf16.mxu0 0
        %4022 = vmatpush1.bf16.msra.mxu0 %v4001
        %4023 = vmatprep.subr.bf16.mxu0 0
        %4024 = vmatpush1.bf16.msra.mxu0 %v4002
        %4025 = vmatprep.subr.bf16.mxu0 0
        %4026 = vmatpush1.bf16.msra.mxu0 %v4003
        %4027 = vmatprep.subr.bf16.mxu0 0
        %4028 = vmatpush1.bf16.msra.mxu0 %v4004
        %4029 = vmatprep.subr.bf16.mxu0 0
        %4030 = vmatpush1.bf16.msra.mxu0 0
        %4031 = vmatprep.subr.bf16.mxu0 0
        %4032 = vmatpush1.bf16.msra.mxu0 0
        %4033 = vmatprep.subr.bf16.mxu0 0
        %4034 = vmatpush1.bf16.msra.mxu0 0
        %4035 = vmatprep.subr.bf16.mxu0 0
        %4036 = vmatpush1.bf16.msra.mxu0 0
        %4037 = vmatprep.subr.bf16.mxu0 0
        %4038 = vmatpush1.bf16.msra.mxu0 0
        %4039 = vmatprep.subr.bf16.mxu0 0
        %4040 = vmatpush1.bf16.msra.mxu0 0
        %4041 = vmatprep.subr.bf16.mxu0 0
        %4042 = vmatpush1.bf16.msra.mxu0 0
        %4043 = vmatprep.subr.bf16.mxu0 0
        %4044 = vmatpush1.bf16.msra.mxu0 0
        %4045 = vmatprep.mubr.bf16.mxu0 0
        %4046 = vmatmul.mubr.bf16.gmra.mrb[0].mxu0 %v3940
        %v4047 = vpop.f32.mrb[0].mxu0
        %v4048 = vadd.f32 0.0, %v4047
        %v4049 = vpop.f32.mrb[0].mxu0
        %v4050 = vpop.f32.mrb[0].mxu0
        %v4051 = vadd.f32 0.0, %v4050
        %v4052 = vpop.f32.mrb[0].mxu0
        %4053 = vmatprep.mubr.bf16.mxu0 0
        %4054 = vmatmul.mubr.bf16.gmra.mrb[0].mxu0 %v3941
        %v4055 = vpop.f32.mrb[0].mxu0
        %v4056 = vadd.f32 0.0, %v4055
        %v4057 = vpop.f32.mrb[0].mxu0
        %v4058 = vpop.f32.mrb[0].mxu0
        %v4059 = vadd.f32 0.0, %v4058
        %v4060 = vpop.f32.mrb[0].mxu0
        %4061 = vmatprep.mubr.bf16.mxu0 0
        %4062 = vmatmul.mubr.bf16.gmra.mrb[0].mxu0 %v3942
        %v4063 = vpop.f32.mrb[0].mxu0
        %v4064 = vadd.f32 0.0, %v4063
        %v4065 = vpop.f32.mrb[0].mxu0
        %v4066 = vpop.f32.mrb[0].mxu0
        %v4067 = vadd.f32 0.0, %v4066
        %v4068 = vpop.f32.mrb[0].mxu0
        %4069 = vmatprep.mubr.bf16.mxu0 0
        %4070 = vmatmul.mubr.bf16.gmra.mrb[0].mxu0 %v3943
        %v4071 = vpop.f32.mrb[0].mxu0
        %v4072 = vadd.f32 0.0, %v4071
        %v4073 = vpop.f32.mrb[0].mxu0
        %v4074 = vpop.f32.mrb[0].mxu0
        %v4075 = vadd.f32 0.0, %v4074
        %v4076 = vpop.f32.mrb[0].mxu0
        %4077 = vmatprep.mubr.bf16.mxu0 0
        %4078 = vmatmul.mubr.bf16.gmra.mrb[0].mxu0 %v3944
        %v4079 = vpop.f32.mrb[0].mxu0
        %v4080 = vadd.f32 0.0, %v4079
        %v4081 = vpop.f32.mrb[0].mxu0
        %v4082 = vpop.f32.mrb[0].mxu0
        %v4083 = vadd.f32 0.0, %v4082
        %v4084 = vpop.f32.mrb[0].mxu0
        %4085 = vmatprep.mubr.bf16.mxu0 0
        %4086 = vmatmul.mubr.bf16.gmra.mrb[0].mxu0 %v3945
        %v4087 = vpop.f32.mrb[0].mxu0
        %v4088 = vadd.f32 0.0, %v4087
        %v4089 = vpop.f32.mrb[0].mxu0
        %v4090 = vpop.f32.mrb[0].mxu0
        %v4091 = vadd.f32 0.0, %v4090
        %v4092 = vpop.f32.mrb[0].mxu0
        %4093 = vmatprep.mubr.bf16.mxu0 0
        %4094 = vmatmul.mubr.bf16.gmra.mrb[0].mxu0 %v3946
        %v4095 = vpop.f32.mrb[0].mxu0
        %v4096 = vadd.f32 0.0, %v4095
        %v4097 = vpop.f32.mrb[0].mxu0
        %v4098 = vpop.f32.mrb[0].mxu0
        %v4099 = vadd.f32 0.0, %v4098
        %v4100 = vpop.f32.mrb[0].mxu0
        %4101 = vmatprep.mubr.bf16.mxu0 0
        %4102 = vmatmul.mubr.bf16.gmra.mrb[0].mxu0 %v3947
        %v4103 = vpop.f32.mrb[0].mxu0
        %v4104 = vadd.f32 0.0, %v4103
        %v4105 = vpop.f32.mrb[0].mxu0
        %v4106 = vpop.f32.mrb[0].mxu0
        %v4107 = vadd.f32 0.0, %v4106
        %v4108 = vpop.f32.mrb[0].mxu0
        %4109 = vdwg.mxu0
        %v4126 = vunpack.c.l.b16 %v3892
        %v4127 = vunpack.c.l.b16 %v3893
        %v4128 = vunpack.c.l.b16 %v3894
        %v4129 = vunpack.c.l.b16 %v3895
        %v4130 = vunpack.c.l.b16 %v3896
        %v4131 = vunpack.c.l.b16 %v3897
        %v4132 = vunpack.c.l.b16 %v3898
        %v4133 = vunpack.c.l.b16 %v3899
        %v4134 = vunpack.c.l.b16 %v3900
        %v4135 = vunpack.c.l.b16 %v3901
        %v4136 = vunpack.c.l.b16 %v3902
        %v4137 = vunpack.c.l.b16 %v3903
        %v4138 = vunpack.c.l.b16 %v3904
        %v4139 = vunpack.c.l.b16 %v3905
        %v4140 = vunpack.c.l.b16 %v3906
        %v4141 = vunpack.c.l.b16 %v3907
        %v4142 = vpack.c.b16 %v4127, %v4126
        %v4143 = vpack.c.b16 %v4129, %v4128
        %v4144 = vpack.c.b16 %v4131, %v4130
        %v4145 = vpack.c.b16 %v4133, %v4132
        %v4146 = vpack.c.b16 %v4135, %v4134
        %v4147 = vpack.c.b16 %v4137, %v4136
        %v4148 = vpack.c.b16 %v4139, %v4138
        %v4149 = vpack.c.b16 %v4141, %v4140
        %4158 = vmatprep.subr.bf16.mxu0 0
        %4159 = vmatpush1.bf16.msra.mxu0 %v4142
        %4160 = vmatprep.subr.bf16.mxu0 0
        %4161 = vmatpush1.bf16.msra.mxu0 %v4143
        %4162 = vmatprep.subr.bf16.mxu0 0
        %4163 = vmatpush1.bf16.msra.mxu0 %v4144
        %4164 = vmatprep.subr.bf16.mxu0 0
        %4165 = vmatpush1.bf16.msra.mxu0 %v4145
        %4166 = vmatprep.subr.bf16.mxu0 0
        %4167 = vmatpush1.bf16.msra.mxu0 %v4146
        %4168 = vmatprep.subr.bf16.mxu0 0
        %4169 = vmatpush1.bf16.msra.mxu0 %v4147
        %4170 = vmatprep.subr.bf16.mxu0 0
        %4171 = vmatpush1.bf16.msra.mxu0 %v4148
        %4172 = vmatprep.subr.bf16.mxu0 0
        %4173 = vmatpush1.bf16.msra.mxu0 %v4149
        %4174 = vmatprep.subr.bf16.mxu0 0
        %4175 = vmatpush1.bf16.msra.mxu0 0
        %4176 = vmatprep.subr.bf16.mxu0 0
        %4177 = vmatpush1.bf16.msra.mxu0 0
        %4178 = vmatprep.subr.bf16.mxu0 0
        %4179 = vmatpush1.bf16.msra.mxu0 0
        %4180 = vmatprep.subr.bf16.mxu0 0
        %4181 = vmatpush1.bf16.msra.mxu0 0
        %4182 = vmatprep.subr.bf16.mxu0 0
        %4183 = vmatpush1.bf16.msra.mxu0 0
        %4184 = vmatprep.subr.bf16.mxu0 0
        %4185 = vmatpush1.bf16.msra.mxu0 0
        %4186 = vmatprep.subr.bf16.mxu0 0
        %4187 = vmatpush1.bf16.msra.mxu0 0
        %4188 = vmatprep.subr.bf16.mxu0 0
        %4189 = vmatpush1.bf16.msra.mxu0 0
        %4190 = vmatprep.mubr.bf16.mxu0 0
        %4191 = vmatmul.mubr.bf16.gmra.mrb[0].mxu0 %v3884
        %v4192 = vpop.f32.mrb[0].mxu0
        %v4193 = vadd.f32 %v4048, %v4192
        %v4194 = vpop.f32.mrb[0].mxu0
        %v4195 = vpop.f32.mrb[0].mxu0
        %v4196 = vadd.f32 %v4051, %v4195
        %v4197 = vpop.f32.mrb[0].mxu0
        %4198 = vmatprep.mubr.bf16.mxu0 0
        %4199 = vmatmul.mubr.bf16.gmra.mrb[0].mxu0 %v3885
        %v4200 = vpop.f32.mrb[0].mxu0
        %v4201 = vadd.f32 %v4056, %v4200
        %v4202 = vpop.f32.mrb[0].mxu0
        %v4203 = vpop.f32.mrb[0].mxu0
        %v4204 = vadd.f32 %v4059, %v4203
        %v4205 = vpop.f32.mrb[0].mxu0
        %4206 = vmatprep.mubr.bf16.mxu0 0
        %4207 = vmatmul.mubr.bf16.gmra.mrb[0].mxu0 %v3886
        %v4208 = vpop.f32.mrb[0].mxu0
        %v4209 = vadd.f32 %v4064, %v4208
        %v4210 = vpop.f32.mrb[0].mxu0
        %v4211 = vpop.f32.mrb[0].mxu0
        %v4212 = vadd.f32 %v4067, %v4211
        %v4213 = vpop.f32.mrb[0].mxu0
        %4214 = vmatprep.mubr.bf16.mxu0 0
        %4215 = vmatmul.mubr.bf16.gmra.mrb[0].mxu0 %v3887
        %v4216 = vpop.f32.mrb[0].mxu0
        %v4217 = vadd.f32 %v4072, %v4216
        %v4218 = vpop.f32.mrb[0].mxu0
        %v4219 = vpop.f32.mrb[0].mxu0
        %v4220 = vadd.f32 %v4075, %v4219
        %v4221 = vpop.f32.mrb[0].mxu0
        %4222 = vmatprep.mubr.bf16.mxu0 0
        %4223 = vmatmul.mubr.bf16.gmra.mrb[0].mxu0 %v3888
        %v4224 = vpop.f32.mrb[0].mxu0
        %v4225 = vadd.f32 %v4080, %v4224
        %v4226 = vpop.f32.mrb[0].mxu0
        %v4227 = vpop.f32.mrb[0].mxu0
        %v4228 = vadd.f32 %v4083, %v4227
        %v4229 = vpop.f32.mrb[0].mxu0
        %4230 = vmatprep.mubr.bf16.mxu0 0
        %4231 = vmatmul.mubr.bf16.gmra.mrb[0].mxu0 %v3889
        %v4232 = vpop.f32.mrb[0].mxu0
        %v4233 = vadd.f32 %v4088, %v4232
        %v4234 = vpop.f32.mrb[0].mxu0
        %v4235 = vpop.f32.mrb[0].mxu0
        %v4236 = vadd.f32 %v4091, %v4235
        %v4237 = vpop.f32.mrb[0].mxu0
        %4238 = vmatprep.mubr.bf16.mxu0 0
        %4239 = vmatmul.mubr.bf16.gmra.mrb[0].mxu0 %v3890
        %v4240 = vpop.f32.mrb[0].mxu0
        %v4241 = vadd.f32 %v4096, %v4240
        %v4242 = vpop.f32.mrb[0].mxu0
        %v4243 = vpop.f32.mrb[0].mxu0
        %v4244 = vadd.f32 %v4099, %v4243
        %v4245 = vpop.f32.mrb[0].mxu0
        %4246 = vmatprep.mubr.bf16.mxu0 0
        %4247 = vmatmul.mubr.bf16.gmra.mrb[0].mxu0 %v3891
        %v4248 = vpop.f32.mrb[0].mxu0
        %v4249 = vadd.f32 %v4104, %v4248
        %v4250 = vpop.f32.mrb[0].mxu0
        %v4251 = vpop.f32.mrb[0].mxu0
        %v4252 = vadd.f32 %v4107, %v4251
        %v4253 = vpop.f32.mrb[0].mxu0
        %4254 = vdwg.mxu0
        %v4255 = vpack.c.bf16 %v3870, %v3869
        %v4256 = vpack.c.bf16 %v3872, %v3871
        %v4257 = vpack.c.bf16 %v3874, %v3873
        %v4258 = vpack.c.bf16 %v3876, %v3875
        %v4259 = vpack.c.bf16 %v3878, %v3877
        %v4260 = vpack.c.bf16 %v3880, %v3879
        %v4261 = vpack.c.bf16 %v3882, %v3881
        %v4262 = vpack.c.bf16 %v3868, %v3883
        %s4263 = scalar_lea.vmem %s7, 128
        %v4264 = vld [vmem:[%s4263] sm:$0xf]
        %v4265 = vld [vmem:[%s4263 + $0x4] sm:$0xf]
        %v4266 = vld [vmem:[%s4263 + $0x8] sm:$0xf]
        %v4267 = vld [vmem:[%s4263 + $0xc] sm:$0xf]
        %v4268 = vld [vmem:[%s4263 + $0x10] sm:$0xf]
        %v4269 = vld [vmem:[%s4263 + $0x14] sm:$0xf]
        %v4270 = vld [vmem:[%s4263 + $0x18] sm:$0xf]
        %v4271 = vld [vmem:[%s4263 + $0x1c] sm:$0xf]
        %v4272 = vld [vmem:[%s4263 + $0x20] sm:$0xf]
        %v4273 = vld [vmem:[%s4263 + $0x24] sm:$0xf]
        %v4274 = vld [vmem:[%s4263 + $0x28] sm:$0xf]
        %v4275 = vld [vmem:[%s4263 + $0x2c] sm:$0xf]
        %v4276 = vld [vmem:[%s4263 + $0x30] sm:$0xf]
        %v4277 = vld [vmem:[%s4263 + $0x34] sm:$0xf]
        %v4278 = vld [vmem:[%s4263 + $0x38] sm:$0xf]
        %v4279 = vld [vmem:[%s4263 + $0x3c] sm:$0xf]
        %v4296 = vunpack.c.l.b16 %v4264
        %v4297 = vunpack.c.l.b16 %v4265
        %v4298 = vunpack.c.l.b16 %v4266
        %v4299 = vunpack.c.l.b16 %v4267
        %v4300 = vunpack.c.l.b16 %v4268
        %v4301 = vunpack.c.l.b16 %v4269
        %v4302 = vunpack.c.l.b16 %v4270
        %v4303 = vunpack.c.l.b16 %v4271
        %v4304 = vunpack.c.l.b16 %v4272
        %v4305 = vunpack.c.l.b16 %v4273
        %v4306 = vunpack.c.l.b16 %v4274
        %v4307 = vunpack.c.l.b16 %v4275
        %v4308 = vunpack.c.l.b16 %v4276
        %v4309 = vunpack.c.l.b16 %v4277
        %v4310 = vunpack.c.l.b16 %v4278
        %v4311 = vunpack.c.l.b16 %v4279
        %v4312 = vpack.c.b16 %v4297, %v4296
        %v4313 = vpack.c.b16 %v4299, %v4298
        %v4314 = vpack.c.b16 %v4301, %v4300
        %v4315 = vpack.c.b16 %v4303, %v4302
        %v4316 = vpack.c.b16 %v4305, %v4304
        %v4317 = vpack.c.b16 %v4307, %v4306
        %v4318 = vpack.c.b16 %v4309, %v4308
        %v4319 = vpack.c.b16 %v4311, %v4310
        %4328 = vmatprep.subr.bf16.mxu0 0
        %4329 = vmatpush1.bf16.msra.mxu0 %v4312
        %4330 = vmatprep.subr.bf16.mxu0 0
        %4331 = vmatpush1.bf16.msra.mxu0 %v4313
        %4332 = vmatprep.subr.bf16.mxu0 0
        %4333 = vmatpush1.bf16.msra.mxu0 %v4314
        %4334 = vmatprep.subr.bf16.mxu0 0
        %4335 = vmatpush1.bf16.msra.mxu0 %v4315
        %4336 = vmatprep.subr.bf16.mxu0 0
        %4337 = vmatpush1.bf16.msra.mxu0 %v4316
        %4338 = vmatprep.subr.bf16.mxu0 0
        %4339 = vmatpush1.bf16.msra.mxu0 %v4317
        %4340 = vmatprep.subr.bf16.mxu0 0
        %4341 = vmatpush1.bf16.msra.mxu0 %v4318
        %4342 = vmatprep.subr.bf16.mxu0 0
        %4343 = vmatpush1.bf16.msra.mxu0 %v4319
        %4344 = vmatprep.subr.bf16.mxu0 0
        %4345 = vmatpush1.bf16.msra.mxu0 0
        %4346 = vmatprep.subr.bf16.mxu0 0
        %4347 = vmatpush1.bf16.msra.mxu0 0
        %4348 = vmatprep.subr.bf16.mxu0 0
        %4349 = vmatpush1.bf16.msra.mxu0 0
        %4350 = vmatprep.subr.bf16.mxu0 0
        %4351 = vmatpush1.bf16.msra.mxu0 0
        %4352 = vmatprep.subr.bf16.mxu0 0
        %4353 = vmatpush1.bf16.msra.mxu0 0
        %4354 = vmatprep.subr.bf16.mxu0 0
        %4355 = vmatpush1.bf16.msra.mxu0 0
        %4356 = vmatprep.subr.bf16.mxu0 0
        %4357 = vmatpush1.bf16.msra.mxu0 0
        %4358 = vmatprep.subr.bf16.mxu0 0
        %4359 = vmatpush1.bf16.msra.mxu0 0
        %4360 = vmatprep.mubr.bf16.mxu0 0
        %4361 = vmatmul.mubr.bf16.gmra.mrb[0].mxu0 %v4255
        %v4362 = vpop.f32.mrb[0].mxu0
        %v4363 = vadd.f32 0.0, %v4362
        %v4364 = vpop.f32.mrb[0].mxu0
        %v4365 = vpop.f32.mrb[0].mxu0
        %v4366 = vadd.f32 0.0, %v4365
        %v4367 = vpop.f32.mrb[0].mxu0
        %4368 = vmatprep.mubr.bf16.mxu0 0
        %4369 = vmatmul.mubr.bf16.gmra.mrb[0].mxu0 %v4256
        %v4370 = vpop.f32.mrb[0].mxu0
        %v4371 = vadd.f32 0.0, %v4370
        %v4372 = vpop.f32.mrb[0].mxu0
        %v4373 = vpop.f32.mrb[0].mxu0
        %v4374 = vadd.f32 0.0, %v4373
        %v4375 = vpop.f32.mrb[0].mxu0
        %4376 = vmatprep.mubr.bf16.mxu0 0
        %4377 = vmatmul.mubr.bf16.gmra.mrb[0].mxu0 %v4257
        %v4378 = vpop.f32.mrb[0].mxu0
        %v4379 = vadd.f32 0.0, %v4378
        %v4380 = vpop.f32.mrb[0].mxu0
        %v4381 = vpop.f32.mrb[0].mxu0
        %v4382 = vadd.f32 0.0, %v4381
        %v4383 = vpop.f32.mrb[0].mxu0
        %4384 = vmatprep.mubr.bf16.mxu0 0
        %4385 = vmatmul.mubr.bf16.gmra.mrb[0].mxu0 %v4258
        %v4386 = vpop.f32.mrb[0].mxu0
        %v4387 = vadd.f32 0.0, %v4386
        %v4388 = vpop.f32.mrb[0].mxu0
        %v4389 = vpop.f32.mrb[0].mxu0
        %v4390 = vadd.f32 0.0, %v4389
        %v4391 = vpop.f32.mrb[0].mxu0
        %4392 = vmatprep.mubr.bf16.mxu0 0
        %4393 = vmatmul.mubr.bf16.gmra.mrb[0].mxu0 %v4259
        %v4394 = vpop.f32.mrb[0].mxu0
        %v4395 = vadd.f32 0.0, %v4394
        %v4396 = vpop.f32.mrb[0].mxu0
        %v4397 = vpop.f32.mrb[0].mxu0
        %v4398 = vadd.f32 0.0, %v4397
        %v4399 = vpop.f32.mrb[0].mxu0
        %4400 = vmatprep.mubr.bf16.mxu0 0
        %4401 = vmatmul.mubr.bf16.gmra.mrb[0].mxu0 %v4260
        %v4402 = vpop.f32.mrb[0].mxu0
        %v4403 = vadd.f32 0.0, %v4402
        %v4404 = vpop.f32.mrb[0].mxu0
        %v4405 = vpop.f32.mrb[0].mxu0
        %v4406 = vadd.f32 0.0, %v4405
        %v4407 = vpop.f32.mrb[0].mxu0
        %4408 = vmatprep.mubr.bf16.mxu0 0
        %4409 = vmatmul.mubr.bf16.gmra.mrb[0].mxu0 %v4261
        %v4410 = vpop.f32.mrb[0].mxu0
        %v4411 = vadd.f32 0.0, %v4410
        %v4412 = vpop.f32.mrb[0].mxu0
        %v4413 = vpop.f32.mrb[0].mxu0
        %v4414 = vadd.f32 0.0, %v4413
        %v4415 = vpop.f32.mrb[0].mxu0
        %4416 = vmatprep.mubr.bf16.mxu0 0
        %4417 = vmatmul.mubr.bf16.gmra.mrb[0].mxu0 %v4262
        %v4418 = vpop.f32.mrb[0].mxu0
        %v4419 = vadd.f32 0.0, %v4418
        %v4420 = vpop.f32.mrb[0].mxu0
        %v4421 = vpop.f32.mrb[0].mxu0
        %v4422 = vadd.f32 0.0, %v4421
        %v4423 = vpop.f32.mrb[0].mxu0
        %4424 = vdwg.mxu0
        %v4425 = vadd.f32 %v4193, %v4363
        %v4426 = vadd.f32 %v4196, %v4366
        %v4427 = vadd.f32 %v4201, %v4371
        %v4428 = vadd.f32 %v4204, %v4374
        %v4429 = vadd.f32 %v4209, %v4379
        %v4430 = vadd.f32 %v4212, %v4382
        %v4431 = vadd.f32 %v4217, %v4387
        %v4432 = vadd.f32 %v4220, %v4390
        %v4433 = vadd.f32 %v4225, %v4395
        %v4434 = vadd.f32 %v4228, %v4398
        %v4435 = vadd.f32 %v4233, %v4403
        %v4436 = vadd.f32 %v4236, %v4406
        %v4437 = vadd.f32 %v4241, %v4411
        %v4438 = vadd.f32 %v4244, %v4414
        %v4439 = vadd.f32 %v4249, %v4419
        %v4440 = vadd.f32 %v4252, %v4422
        %v4441 = vpack.c.bf16 %v3936, %v3937
        %v4442 = vpack.c.bf16 %v3934, %v3935
        %v4443 = vpack.c.bf16 %v3932, %v3933
        %v4444 = vpack.c.bf16 %v3930, %v3931
        %v4445 = vpack.c.bf16 %v3928, %v3929
        %v4446 = vpack.c.bf16 %v3926, %v3927
        %v4447 = vpack.c.bf16 %v3924, %v3925
        %v4448 = vpack.c.bf16 %v3938, %v3939
        %s4449 = scalar_lea.vmem %s7, 192
        %v4450 = vld [vmem:[%s4449] sm:$0xf]
        %v4451 = vld [vmem:[%s4449 + $0x4] sm:$0xf]
        %v4452 = vld [vmem:[%s4449 + $0x8] sm:$0xf]
        %v4453 = vld [vmem:[%s4449 + $0xc] sm:$0xf]
        %v4454 = vld [vmem:[%s4449 + $0x10] sm:$0xf]
        %v4455 = vld [vmem:[%s4449 + $0x14] sm:$0xf]
        %v4456 = vld [vmem:[%s4449 + $0x18] sm:$0xf]
        %v4457 = vld [vmem:[%s4449 + $0x1c] sm:$0xf]
        %v4458 = vld [vmem:[%s4449 + $0x20] sm:$0xf]
        %v4459 = vld [vmem:[%s4449 + $0x24] sm:$0xf]
        %v4460 = vld [vmem:[%s4449 + $0x28] sm:$0xf]
        %v4461 = vld [vmem:[%s4449 + $0x2c] sm:$0xf]
        %v4462 = vld [vmem:[%s4449 + $0x30] sm:$0xf]
        %v4463 = vld [vmem:[%s4449 + $0x34] sm:$0xf]
        %v4464 = vld [vmem:[%s4449 + $0x38] sm:$0xf]
        %v4465 = vld [vmem:[%s4449 + $0x3c] sm:$0xf]
        %v4482 = vunpack.c.l.b16 %v4450
        %v4483 = vunpack.c.l.b16 %v4451
        %v4484 = vunpack.c.l.b16 %v4452
        %v4485 = vunpack.c.l.b16 %v4453
        %v4486 = vunpack.c.l.b16 %v4454
        %v4487 = vunpack.c.l.b16 %v4455
        %v4488 = vunpack.c.l.b16 %v4456
        %v4489 = vunpack.c.l.b16 %v4457
        %v4490 = vunpack.c.l.b16 %v4458
        %v4491 = vunpack.c.l.b16 %v4459
        %v4492 = vunpack.c.l.b16 %v4460
        %v4493 = vunpack.c.l.b16 %v4461
        %v4494 = vunpack.c.l.b16 %v4462
        %v4495 = vunpack.c.l.b16 %v4463
        %v4496 = vunpack.c.l.b16 %v4464
        %v4497 = vunpack.c.l.b16 %v4465
        %v4498 = vpack.c.b16 %v4483, %v4482
        %v4499 = vpack.c.b16 %v4485, %v4484
        %v4500 = vpack.c.b16 %v4487, %v4486
        %v4501 = vpack.c.b16 %v4489, %v4488
        %v4502 = vpack.c.b16 %v4491, %v4490
        %v4503 = vpack.c.b16 %v4493, %v4492
        %v4504 = vpack.c.b16 %v4495, %v4494
        %v4505 = vpack.c.b16 %v4497, %v4496
        %4514 = vmatprep.subr.bf16.mxu0 0
        %4515 = vmatpush1.bf16.msra.mxu0 %v4498
        %4516 = vmatprep.subr.bf16.mxu0 0
        %4517 = vmatpush1.bf16.msra.mxu0 %v4499
        %4518 = vmatprep.subr.bf16.mxu0 0
        %4519 = vmatpush1.bf16.msra.mxu0 %v4500
        %4520 = vmatprep.subr.bf16.mxu0 0
        %4521 = vmatpush1.bf16.msra.mxu0 %v4501
        %4522 = vmatprep.subr.bf16.mxu0 0
        %4523 = vmatpush1.bf16.msra.mxu0 %v4502
        %4524 = vmatprep.subr.bf16.mxu0 0
        %4525 = vmatpush1.bf16.msra.mxu0 %v4503
        %4526 = vmatprep.subr.bf16.mxu0 0
        %4527 = vmatpush1.bf16.msra.mxu0 %v4504
        %4528 = vmatprep.subr.bf16.mxu0 0
        %4529 = vmatpush1.bf16.msra.mxu0 %v4505
        %4530 = vmatprep.subr.bf16.mxu0 0
        %4531 = vmatpush1.bf16.msra.mxu0 0
        %4532 = vmatprep.subr.bf16.mxu0 0
        %4533 = vmatpush1.bf16.msra.mxu0 0
        %4534 = vmatprep.subr.bf16.mxu0 0
        %4535 = vmatpush1.bf16.msra.mxu0 0
        %4536 = vmatprep.subr.bf16.mxu0 0
        %4537 = vmatpush1.bf16.msra.mxu0 0
        %4538 = vmatprep.subr.bf16.mxu0 0
        %4539 = vmatpush1.bf16.msra.mxu0 0
        %4540 = vmatprep.subr.bf16.mxu0 0
        %4541 = vmatpush1.bf16.msra.mxu0 0
        %4542 = vmatprep.subr.bf16.mxu0 0
        %4543 = vmatpush1.bf16.msra.mxu0 0
        %4544 = vmatprep.subr.bf16.mxu0 0
        %4545 = vmatpush1.bf16.msra.mxu0 0
        %4546 = vmatprep.mubr.bf16.mxu0 0
        %4547 = vmatmul.mubr.bf16.gmra.mrb[0].mxu0 %v4441
        %v4548 = vpop.f32.mrb[0].mxu0
        %v4549 = vadd.f32 0.0, %v4548
        %v4550 = vpop.f32.mrb[0].mxu0
        %v4551 = vpop.f32.mrb[0].mxu0
        %v4552 = vadd.f32 0.0, %v4551
        %v4553 = vpop.f32.mrb[0].mxu0
        %4554 = vmatprep.mubr.bf16.mxu0 0
        %4555 = vmatmul.mubr.bf16.gmra.mrb[0].mxu0 %v4442
        %v4556 = vpop.f32.mrb[0].mxu0
        %v4557 = vadd.f32 0.0, %v4556
        %v4558 = vpop.f32.mrb[0].mxu0
        %v4559 = vpop.f32.mrb[0].mxu0
        %v4560 = vadd.f32 0.0, %v4559
        %v4561 = vpop.f32.mrb[0].mxu0
        %4562 = vmatprep.mubr.bf16.mxu0 0
        %4563 = vmatmul.mubr.bf16.gmra.mrb[0].mxu0 %v4443
        %v4564 = vpop.f32.mrb[0].mxu0
        %v4565 = vadd.f32 0.0, %v4564
        %v4566 = vpop.f32.mrb[0].mxu0
        %v4567 = vpop.f32.mrb[0].mxu0
        %v4568 = vadd.f32 0.0, %v4567
        %v4569 = vpop.f32.mrb[0].mxu0
        %4570 = vmatprep.mubr.bf16.mxu0 0
        %4571 = vmatmul.mubr.bf16.gmra.mrb[0].mxu0 %v4444
        %v4572 = vpop.f32.mrb[0].mxu0
        %v4573 = vadd.f32 0.0, %v4572
        %v4574 = vpop.f32.mrb[0].mxu0
        %v4575 = vpop.f32.mrb[0].mxu0
        %v4576 = vadd.f32 0.0, %v4575
        %v4577 = vpop.f32.mrb[0].mxu0
        %4578 = vmatprep.mubr.bf16.mxu0 0
        %4579 = vmatmul.mubr.bf16.gmra.mrb[0].mxu0 %v4445
        %v4580 = vpop.f32.mrb[0].mxu0
        %v4581 = vadd.f32 0.0, %v4580
        %v4582 = vpop.f32.mrb[0].mxu0
        %v4583 = vpop.f32.mrb[0].mxu0
        %v4584 = vadd.f32 0.0, %v4583
        %v4585 = vpop.f32.mrb[0].mxu0
        %4586 = vmatprep.mubr.bf16.mxu0 0
        %4587 = vmatmul.mubr.bf16.gmra.mrb[0].mxu0 %v4446
        %v4588 = vpop.f32.mrb[0].mxu0
        %v4589 = vadd.f32 0.0, %v4588
        %v4590 = vpop.f32.mrb[0].mxu0
        %v4591 = vpop.f32.mrb[0].mxu0
        %v4592 = vadd.f32 0.0, %v4591
        %v4593 = vpop.f32.mrb[0].mxu0
        %4594 = vmatprep.mubr.bf16.mxu0 0
        %4595 = vmatmul.mubr.bf16.gmra.mrb[0].mxu0 %v4447
        %v4596 = vpop.f32.mrb[0].mxu0
        %v4597 = vadd.f32 0.0, %v4596
        %v4598 = vpop.f32.mrb[0].mxu0
        %v4599 = vpop.f32.mrb[0].mxu0
        %v4600 = vadd.f32 0.0, %v4599
        %v4601 = vpop.f32.mrb[0].mxu0
        %4602 = vmatprep.mubr.bf16.mxu0 0
        %4603 = vmatmul.mubr.bf16.gmra.mrb[0].mxu0 %v4448
        %v4604 = vpop.f32.mrb[0].mxu0
        %v4605 = vadd.f32 0.0, %v4604
        %v4606 = vpop.f32.mrb[0].mxu0
        %v4607 = vpop.f32.mrb[0].mxu0
        %v4608 = vadd.f32 0.0, %v4607
        %v4609 = vpop.f32.mrb[0].mxu0
        %4610 = vdwg.mxu0
        %v4611 = vadd.f32 %v4425, %v4549
        %v4612 = vadd.f32 %v4426, %v4552
        %v4613 = vadd.f32 %v4427, %v4557
        %v4614 = vadd.f32 %v4428, %v4560
        %v4615 = vadd.f32 %v4429, %v4565
        %v4616 = vadd.f32 %v4430, %v4568
        %v4617 = vadd.f32 %v4431, %v4573
        %v4618 = vadd.f32 %v4432, %v4576
        %v4619 = vadd.f32 %v4433, %v4581
        %v4620 = vadd.f32 %v4434, %v4584
        %v4621 = vadd.f32 %v4435, %v4589
        %v4622 = vadd.f32 %v4436, %v4592
        %v4623 = vadd.f32 %v4437, %v4597
        %v4624 = vadd.f32 %v4438, %v4600
        %v4625 = vadd.f32 %v4439, %v4605
        %v4626 = vadd.f32 %v4440, %v4608
        %s4627 = scalar_lea.vmem %s7, 256
        %v4628 = vld [vmem:[%s4627] sm:$0xf]
        %v4629 = vld [vmem:[%s4627 + $0x4] sm:$0xf]
        %v4630 = vld [vmem:[%s4627 + $0x8] sm:$0xf]
        %v4631 = vld [vmem:[%s4627 + $0xc] sm:$0xf]
        %v4632 = vld [vmem:[%s4627 + $0x10] sm:$0xf]
        %v4633 = vld [vmem:[%s4627 + $0x14] sm:$0xf]
        %v4634 = vld [vmem:[%s4627 + $0x18] sm:$0xf]
        %v4635 = vld [vmem:[%s4627 + $0x1c] sm:$0xf]
        %v4636 = vld [vmem:[%s4627 + $0x20] sm:$0xf]
        %v4637 = vld [vmem:[%s4627 + $0x24] sm:$0xf]
        %v4638 = vld [vmem:[%s4627 + $0x28] sm:$0xf]
        %v4639 = vld [vmem:[%s4627 + $0x2c] sm:$0xf]
        %v4640 = vld [vmem:[%s4627 + $0x30] sm:$0xf]
        %v4641 = vld [vmem:[%s4627 + $0x34] sm:$0xf]
        %v4642 = vld [vmem:[%s4627 + $0x38] sm:$0xf]
        %v4643 = vld [vmem:[%s4627 + $0x3c] sm:$0xf]
        %v4660 = vunpack.c.l.b16 %v4628
        %v4661 = vunpack.c.l.b16 %v4629
        %v4662 = vunpack.c.l.b16 %v4630
        %v4663 = vunpack.c.l.b16 %v4631
        %v4664 = vunpack.c.l.b16 %v4632
        %v4665 = vunpack.c.l.b16 %v4633
        %v4666 = vunpack.c.l.b16 %v4634
        %v4667 = vunpack.c.l.b16 %v4635
        %v4668 = vunpack.c.l.b16 %v4636
        %v4669 = vunpack.c.l.b16 %v4637
        %v4670 = vunpack.c.l.b16 %v4638
        %v4671 = vunpack.c.l.b16 %v4639
        %v4672 = vunpack.c.l.b16 %v4640
        %v4673 = vunpack.c.l.b16 %v4641
        %v4674 = vunpack.c.l.b16 %v4642
        %v4675 = vunpack.c.l.b16 %v4643
        %v4676 = vpack.c.b16 %v4661, %v4660
        %v4677 = vpack.c.b16 %v4663, %v4662
        %v4678 = vpack.c.b16 %v4665, %v4664
        %v4679 = vpack.c.b16 %v4667, %v4666
        %v4680 = vpack.c.b16 %v4669, %v4668
        %v4681 = vpack.c.b16 %v4671, %v4670
        %v4682 = vpack.c.b16 %v4673, %v4672
        %v4683 = vpack.c.b16 %v4675, %v4674
        %4692 = vmatprep.subr.bf16.mxu0 0
        %4693 = vmatpush1.bf16.msra.mxu0 %v4676
        %4694 = vmatprep.subr.bf16.mxu0 0
        %4695 = vmatpush1.bf16.msra.mxu0 %v4677
        %4696 = vmatprep.subr.bf16.mxu0 0
        %4697 = vmatpush1.bf16.msra.mxu0 %v4678
        %4698 = vmatprep.subr.bf16.mxu0 0
        %4699 = vmatpush1.bf16.msra.mxu0 %v4679
        %4700 = vmatprep.subr.bf16.mxu0 0
        %4701 = vmatpush1.bf16.msra.mxu0 %v4680
        %4702 = vmatprep.subr.bf16.mxu0 0
        %4703 = vmatpush1.bf16.msra.mxu0 %v4681
        %4704 = vmatprep.subr.bf16.mxu0 0
        %4705 = vmatpush1.bf16.msra.mxu0 %v4682
        %4706 = vmatprep.subr.bf16.mxu0 0
        %4707 = vmatpush1.bf16.msra.mxu0 %v4683
        %4708 = vmatprep.subr.bf16.mxu0 0
        %4709 = vmatpush1.bf16.msra.mxu0 0
        %4710 = vmatprep.subr.bf16.mxu0 0
        %4711 = vmatpush1.bf16.msra.mxu0 0
        %4712 = vmatprep.subr.bf16.mxu0 0
        %4713 = vmatpush1.bf16.msra.mxu0 0
        %4714 = vmatprep.subr.bf16.mxu0 0
        %4715 = vmatpush1.bf16.msra.mxu0 0
        %4716 = vmatprep.subr.bf16.mxu0 0
        %4717 = vmatpush1.bf16.msra.mxu0 0
        %4718 = vmatprep.subr.bf16.mxu0 0
        %4719 = vmatpush1.bf16.msra.mxu0 0
        %4720 = vmatprep.subr.bf16.mxu0 0
        %4721 = vmatpush1.bf16.msra.mxu0 0
        %4722 = vmatprep.subr.bf16.mxu0 0
        %4723 = vmatpush1.bf16.msra.mxu0 0
        %4724 = vmatprep.mubr.bf16.mxu0 0
        %4725 = vmatmul.mubr.bf16.gmra.mrb[0].mxu0 %v3885
        %v4726 = vpop.f32.mrb[0].mxu0
        %v4727 = vadd.f32 0.0, %v4726
        %v4728 = vpop.f32.mrb[0].mxu0
        %v4729 = vpop.f32.mrb[0].mxu0
        %v4730 = vadd.f32 0.0, %v4729
        %v4731 = vpop.f32.mrb[0].mxu0
        %4732 = vmatprep.mubr.bf16.mxu0 0
        %4733 = vmatmul.mubr.bf16.gmra.mrb[0].mxu0 %v3886
        %v4734 = vpop.f32.mrb[0].mxu0
        %v4735 = vadd.f32 0.0, %v4734
        %v4736 = vpop.f32.mrb[0].mxu0
        %v4737 = vpop.f32.mrb[0].mxu0
        %v4738 = vadd.f32 0.0, %v4737
        %v4739 = vpop.f32.mrb[0].mxu0
        %4740 = vmatprep.mubr.bf16.mxu0 0
        %4741 = vmatmul.mubr.bf16.gmra.mrb[0].mxu0 %v3887
        %v4742 = vpop.f32.mrb[0].mxu0
        %v4743 = vadd.f32 0.0, %v4742
        %v4744 = vpop.f32.mrb[0].mxu0
        %v4745 = vpop.f32.mrb[0].mxu0
        %v4746 = vadd.f32 0.0, %v4745
        %v4747 = vpop.f32.mrb[0].mxu0
        %4748 = vmatprep.mubr.bf16.mxu0 0
        %4749 = vmatmul.mubr.bf16.gmra.mrb[0].mxu0 %v3888
        %v4750 = vpop.f32.mrb[0].mxu0
        %v4751 = vadd.f32 0.0, %v4750
        %v4752 = vpop.f32.mrb[0].mxu0
        %v4753 = vpop.f32.mrb[0].mxu0
        %v4754 = vadd.f32 0.0, %v4753
        %v4755 = vpop.f32.mrb[0].mxu0
        %4756 = vmatprep.mubr.bf16.mxu0 0
        %4757 = vmatmul.mubr.bf16.gmra.mrb[0].mxu0 %v3889
        %v4758 = vpop.f32.mrb[0].mxu0
        %v4759 = vadd.f32 0.0, %v4758
        %v4760 = vpop.f32.mrb[0].mxu0
        %v4761 = vpop.f32.mrb[0].mxu0
        %v4762 = vadd.f32 0.0, %v4761
        %v4763 = vpop.f32.mrb[0].mxu0
        %4764 = vmatprep.mubr.bf16.mxu0 0
        %4765 = vmatmul.mubr.bf16.gmra.mrb[0].mxu0 %v3890
        %v4766 = vpop.f32.mrb[0].mxu0
        %v4767 = vadd.f32 0.0, %v4766
        %v4768 = vpop.f32.mrb[0].mxu0
        %v4769 = vpop.f32.mrb[0].mxu0
        %v4770 = vadd.f32 0.0, %v4769
        %v4771 = vpop.f32.mrb[0].mxu0
        %4772 = vmatprep.mubr.bf16.mxu0 0
        %4773 = vmatmul.mubr.bf16.gmra.mrb[0].mxu0 %v3891
        %v4774 = vpop.f32.mrb[0].mxu0
        %v4775 = vadd.f32 0.0, %v4774
        %v4776 = vpop.f32.mrb[0].mxu0
        %v4777 = vpop.f32.mrb[0].mxu0
        %v4778 = vadd.f32 0.0, %v4777
        %v4779 = vpop.f32.mrb[0].mxu0
        %4780 = vmatprep.mubr.bf16.mxu0 0
        %4781 = vmatmul.mubr.bf16.gmra.mrb[0].mxu0 %v3884
        %v4782 = vpop.f32.mrb[0].mxu0
        %v4783 = vadd.f32 0.0, %v4782
        %v4784 = vpop.f32.mrb[0].mxu0
        %v4785 = vpop.f32.mrb[0].mxu0
        %v4786 = vadd.f32 0.0, %v4785
        %v4787 = vpop.f32.mrb[0].mxu0
        %4788 = vdwg.mxu0
        %v4789 = vadd.f32 %v4611, %v4727
        %v4790 = vadd.f32 %v4612, %v4730
        %v4791 = vadd.f32 %v4613, %v4735
        %v4792 = vadd.f32 %v4614, %v4738
        %v4793 = vadd.f32 %v4615, %v4743
        %v4794 = vadd.f32 %v4616, %v4746
        %v4795 = vadd.f32 %v4617, %v4751
        %v4796 = vadd.f32 %v4618, %v4754
        %v4797 = vadd.f32 %v4619, %v4759
        %v4798 = vadd.f32 %v4620, %v4762
        %v4799 = vadd.f32 %v4621, %v4767
        %v4800 = vadd.f32 %v4622, %v4770
        %v4801 = vadd.f32 %v4623, %v4775
        %v4802 = vadd.f32 %v4624, %v4778
        %v4803 = vadd.f32 %v4625, %v4783
        %v4804 = vadd.f32 %v4626, %v4786
        %v4805 = vld [vmem:[%s8] sm:$0x1]
        %v4807 = vlaneseq
        %v4808 = vshrl.u32 %v4807, 7
        %v4809 = vsub.s32 0, %v4808
        %v4810 = vrot.slane %v4805, %v4809
        %v4812 = vadd.f32 %v4789, %v4810
        %v4813 = vadd.f32 %v4790, %v4810
        %v4814 = vadd.f32 %v4791, %v4810
        %v4815 = vadd.f32 %v4792, %v4810
        %v4816 = vadd.f32 %v4793, %v4810
        %v4817 = vadd.f32 %v4794, %v4810
        %v4818 = vadd.f32 %v4795, %v4810
        %v4819 = vadd.f32 %v4796, %v4810
        %v4820 = vadd.f32 %v4797, %v4810
        %v4821 = vadd.f32 %v4798, %v4810
        %v4822 = vadd.f32 %v4799, %v4810
        %v4823 = vadd.f32 %v4800, %v4810
        %v4824 = vadd.f32 %v4801, %v4810
        %v4825 = vadd.f32 %v4802, %v4810
        %v4826 = vadd.f32 %v4803, %v4810
        %v4827 = vadd.f32 %v4804, %v4810
        %v4828 = vmax.f32 %v4812, 0.0
        %v4829 = vmax.f32 %v4813, 0.0
        %v4830 = vmax.f32 %v4814, 0.0
        %v4831 = vmax.f32 %v4815, 0.0
        %v4832 = vmax.f32 %v4816, 0.0
        %v4833 = vmax.f32 %v4817, 0.0
        %v4834 = vmax.f32 %v4818, 0.0
        %v4835 = vmax.f32 %v4819, 0.0
        %v4836 = vmax.f32 %v4820, 0.0
        %v4837 = vmax.f32 %v4821, 0.0
        %v4838 = vmax.f32 %v4822, 0.0
        %v4839 = vmax.f32 %v4823, 0.0
        %v4840 = vmax.f32 %v4824, 0.0
        %v4841 = vmax.f32 %v4825, 0.0
        %v4842 = vmax.f32 %v4826, 0.0
        %v4843 = vmax.f32 %v4827, 0.0
        %v4844 = vpack.c.bf16 %v4829, %v4828
        %v4845 = vpack.c.bf16 %v4831, %v4830
        %v4846 = vpack.c.bf16 %v4833, %v4832
        %v4847 = vpack.c.bf16 %v4835, %v4834
        %v4848 = vpack.c.bf16 %v4837, %v4836
        %v4849 = vpack.c.bf16 %v4839, %v4838
        %v4850 = vpack.c.bf16 %v4841, %v4840
        %v4851 = vpack.c.bf16 %v4843, %v4842
        %v4852 = vld [vmem:[#allocation8] sm:$0xf]
        %v4853 = vld [vmem:[#allocation8 + $0x4] sm:$0xf]
        %v4854 = vld [vmem:[#allocation8 + $0x8] sm:$0xf]
        %v4855 = vld [vmem:[#allocation8 + $0xc] sm:$0xf]
        %v4856 = vld [vmem:[#allocation8 + $0x10] sm:$0xf]
        %v4857 = vld [vmem:[#allocation8 + $0x14] sm:$0xf]
        %v4858 = vld [vmem:[#allocation8 + $0x18] sm:$0xf]
        %v4859 = vld [vmem:[#allocation8 + $0x1c] sm:$0xf]
        %v4860 = vld [vmem:[#allocation8 + $0x20] sm:$0xf]
        %v4861 = vld [vmem:[#allocation8 + $0x24] sm:$0xf]
        %v4862 = vld [vmem:[#allocation8 + $0x28] sm:$0xf]
        %v4863 = vld [vmem:[#allocation8 + $0x2c] sm:$0xf]
        %v4864 = vld [vmem:[#allocation8 + $0x30] sm:$0xf]
        %v4865 = vld [vmem:[#allocation8 + $0x34] sm:$0xf]
        %v4866 = vld [vmem:[#allocation8 + $0x38] sm:$0xf]
        %v4867 = vld [vmem:[#allocation8 + $0x3c] sm:$0xf]
        %v4868 = vld [vmem:[#allocation10] sm:$0x1]
        %v4870 = vlaneseq
        %v4871 = vshrl.u32 %v4870, 7
        %v4872 = vsub.s32 0, %v4871
        %v4873 = vrot.slane %v4868, %v4872
        %v4891 = vunpack.c.l.b16 %v4852
        %v4892 = vunpack.c.l.b16 %v4853
        %v4893 = vunpack.c.l.b16 %v4854
        %v4894 = vunpack.c.l.b16 %v4855
        %v4895 = vunpack.c.l.b16 %v4856
        %v4896 = vunpack.c.l.b16 %v4857
        %v4897 = vunpack.c.l.b16 %v4858
        %v4898 = vunpack.c.l.b16 %v4859
        %v4899 = vunpack.c.l.b16 %v4860
        %v4900 = vunpack.c.l.b16 %v4861
        %v4901 = vunpack.c.l.b16 %v4862
        %v4902 = vunpack.c.l.b16 %v4863
        %v4903 = vunpack.c.l.b16 %v4864
        %v4904 = vunpack.c.l.b16 %v4865
        %v4905 = vunpack.c.l.b16 %v4866
        %v4906 = vunpack.c.l.b16 %v4867
        %v4907 = vpack.c.b16 %v4892, %v4891
        %v4908 = vpack.c.b16 %v4894, %v4893
        %v4909 = vpack.c.b16 %v4896, %v4895
        %v4910 = vpack.c.b16 %v4898, %v4897
        %v4911 = vpack.c.b16 %v4900, %v4899
        %v4912 = vpack.c.b16 %v4902, %v4901
        %v4913 = vpack.c.b16 %v4904, %v4903
        %v4914 = vpack.c.b16 %v4906, %v4905
        %4923 = vmatprep.subr.bf16.mxu0 0
        %4924 = vmatpush1.bf16.msra.mxu0 %v4907
        %4925 = vmatprep.subr.bf16.mxu0 0
        %4926 = vmatpush1.bf16.msra.mxu0 %v4908
        %4927 = vmatprep.subr.bf16.mxu0 0
        %4928 = vmatpush1.bf16.msra.mxu0 %v4909
        %4929 = vmatprep.subr.bf16.mxu0 0
        %4930 = vmatpush1.bf16.msra.mxu0 %v4910
        %4931 = vmatprep.subr.bf16.mxu0 0
        %4932 = vmatpush1.bf16.msra.mxu0 %v4911
        %4933 = vmatprep.subr.bf16.mxu0 0
        %4934 = vmatpush1.bf16.msra.mxu0 %v4912
        %4935 = vmatprep.subr.bf16.mxu0 0
        %4936 = vmatpush1.bf16.msra.mxu0 %v4913
        %4937 = vmatprep.subr.bf16.mxu0 0
        %4938 = vmatpush1.bf16.msra.mxu0 %v4914
        %4939 = vmatprep.subr.bf16.mxu0 0
        %4940 = vmatpush1.bf16.msra.mxu0 0
        %4941 = vmatprep.subr.bf16.mxu0 0
        %4942 = vmatpush1.bf16.msra.mxu0 0
        %4943 = vmatprep.subr.bf16.mxu0 0
        %4944 = vmatpush1.bf16.msra.mxu0 0
        %4945 = vmatprep.subr.bf16.mxu0 0
        %4946 = vmatpush1.bf16.msra.mxu0 0
        %4947 = vmatprep.subr.bf16.mxu0 0
        %4948 = vmatpush1.bf16.msra.mxu0 0
        %4949 = vmatprep.subr.bf16.mxu0 0
        %4950 = vmatpush1.bf16.msra.mxu0 0
        %4951 = vmatprep.subr.bf16.mxu0 0
        %4952 = vmatpush1.bf16.msra.mxu0 0
        %4953 = vmatprep.subr.bf16.mxu0 0
        %4954 = vmatpush1.bf16.msra.mxu0 0
        %4955 = vmatprep.mubr.bf16.mxu0 0
        %4956 = vmatmul.mubr.bf16.gmra.mrb[0].mxu0 %v4844
        %v4957 = vpop.f32.mrb[0].mxu0
        %v4958 = vadd.f32 %v4873, %v4957
        %v4959 = vpop.f32.mrb[0].mxu0
        %v4960 = vpop.f32.mrb[0].mxu0
        %v4961 = vadd.f32 %v4873, %v4960
        %v4962 = vpop.f32.mrb[0].mxu0
        %4963 = vmatprep.mubr.bf16.mxu0 0
        %4964 = vmatmul.mubr.bf16.gmra.mrb[0].mxu0 %v4845
        %v4965 = vpop.f32.mrb[0].mxu0
        %v4966 = vadd.f32 %v4873, %v4965
        %v4967 = vpop.f32.mrb[0].mxu0
        %v4968 = vpop.f32.mrb[0].mxu0
        %v4969 = vadd.f32 %v4873, %v4968
        %v4970 = vpop.f32.mrb[0].mxu0
        %4971 = vmatprep.mubr.bf16.mxu0 0
        %4972 = vmatmul.mubr.bf16.gmra.mrb[0].mxu0 %v4846
        %v4973 = vpop.f32.mrb[0].mxu0
        %v4974 = vadd.f32 %v4873, %v4973
        %v4975 = vpop.f32.mrb[0].mxu0
        %v4976 = vpop.f32.mrb[0].mxu0
        %v4977 = vadd.f32 %v4873, %v4976
        %v4978 = vpop.f32.mrb[0].mxu0
        %4979 = vmatprep.mubr.bf16.mxu0 0
        %4980 = vmatmul.mubr.bf16.gmra.mrb[0].mxu0 %v4847
        %v4981 = vpop.f32.mrb[0].mxu0
        %v4982 = vadd.f32 %v4873, %v4981
        %v4983 = vpop.f32.mrb[0].mxu0
        %v4984 = vpop.f32.mrb[0].mxu0
        %v4985 = vadd.f32 %v4873, %v4984
        %v4986 = vpop.f32.mrb[0].mxu0
        %4987 = vmatprep.mubr.bf16.mxu0 0
        %4988 = vmatmul.mubr.bf16.gmra.mrb[0].mxu0 %v4848
        %v4989 = vpop.f32.mrb[0].mxu0
        %v4990 = vadd.f32 %v4873, %v4989
        %v4991 = vpop.f32.mrb[0].mxu0
        %v4992 = vpop.f32.mrb[0].mxu0
        %v4993 = vadd.f32 %v4873, %v4992
        %v4994 = vpop.f32.mrb[0].mxu0
        %4995 = vmatprep.mubr.bf16.mxu0 0
        %4996 = vmatmul.mubr.bf16.gmra.mrb[0].mxu0 %v4849
        %v4997 = vpop.f32.mrb[0].mxu0
        %v4998 = vadd.f32 %v4873, %v4997
        %v4999 = vpop.f32.mrb[0].mxu0
        %v5000 = vpop.f32.mrb[0].mxu0
        %v5001 = vadd.f32 %v4873, %v5000
        %v5002 = vpop.f32.mrb[0].mxu0
        %5003 = vmatprep.mubr.bf16.mxu0 0
        %5004 = vmatmul.mubr.bf16.gmra.mrb[0].mxu0 %v4850
        %v5005 = vpop.f32.mrb[0].mxu0
        %v5006 = vadd.f32 %v4873, %v5005
        %v5007 = vpop.f32.mrb[0].mxu0
        %v5008 = vpop.f32.mrb[0].mxu0
        %v5009 = vadd.f32 %v4873, %v5008
        %v5010 = vpop.f32.mrb[0].mxu0
        %5011 = vmatprep.mubr.bf16.mxu0 0
        %5012 = vmatmul.mubr.bf16.gmra.mrb[0].mxu0 %v4851
        %v5013 = vpop.f32.mrb[0].mxu0
        %v5014 = vadd.f32 %v4873, %v5013
        %v5015 = vpop.f32.mrb[0].mxu0
        %v5016 = vpop.f32.mrb[0].mxu0
        %v5017 = vadd.f32 %v4873, %v5016
        %v5018 = vpop.f32.mrb[0].mxu0
        %5019 = vdwg.mxu0
        %v5020 = vmax.f32 %v4958, 0.0
        %v5021 = vmax.f32 %v4961, 0.0
        %v5022 = vmax.f32 %v4966, 0.0
        %v5023 = vmax.f32 %v4969, 0.0
        %v5024 = vmax.f32 %v4974, 0.0
        %v5025 = vmax.f32 %v4977, 0.0
        %v5026 = vmax.f32 %v4982, 0.0
        %v5027 = vmax.f32 %v4985, 0.0
        %v5028 = vmax.f32 %v4990, 0.0
        %v5029 = vmax.f32 %v4993, 0.0
        %v5030 = vmax.f32 %v4998, 0.0
        %v5031 = vmax.f32 %v5001, 0.0
        %v5032 = vmax.f32 %v5006, 0.0
        %v5033 = vmax.f32 %v5009, 0.0
        %v5034 = vmax.f32 %v5014, 0.0
        %v5035 = vmax.f32 %v5017, 0.0
        %v5036 = vld [vmem:[#allocation11] sm:$0x1]
        %v5037 = vpack.c.bf16 %v5021, %v5020
        %v5038 = vpack.c.bf16 %v5023, %v5022
        %v5039 = vpack.c.bf16 %v5025, %v5024
        %v5040 = vpack.c.bf16 %v5027, %v5026
        %v5041 = vpack.c.bf16 %v5029, %v5028
        %v5042 = vpack.c.bf16 %v5031, %v5030
        %v5043 = vpack.c.bf16 %v5033, %v5032
        %v5044 = vpack.c.bf16 %v5035, %v5034
        %v5045 = vld [vmem:[#allocation2] sm:$0x1]
        %5047 = vset.pattern.permute.xlu0 0
        %5048 = vperm.xlu0 %5047, %v5045
        %v5049 = vpop.permute.xlu0 %5048
        %v5051 = vlaneseq
        %v5052 = vshrl.u32 %v5051, 7
        %v5053 = vsub.s32 0, %v5052
        %v5054 = vrot.slane %v5049, %v5053
        %5055 = vmatprep.subr.bf16.mxu0 0
        %5056 = vmatpush1.bf16.xpose.msra.mxu0 %v5037
        %5057 = vmatprep.subr.bf16.mxu0 0
        %5058 = vmatpush1.bf16.xpose.msra.mxu0 %v5038
        %5059 = vmatprep.subr.bf16.mxu0 0
        %5060 = vmatpush1.bf16.xpose.msra.mxu0 %v5039
        %5061 = vmatprep.subr.bf16.mxu0 0
        %5062 = vmatpush1.bf16.xpose.msra.mxu0 %v5040
        %5063 = vmatprep.subr.bf16.mxu0 0
        %5064 = vmatpush1.bf16.xpose.msra.mxu0 %v5041
        %5065 = vmatprep.subr.bf16.mxu0 0
        %5066 = vmatpush1.bf16.xpose.msra.mxu0 %v5042
        %5067 = vmatprep.subr.bf16.mxu0 0
        %5068 = vmatpush1.bf16.xpose.msra.mxu0 %v5043
        %5069 = vmatprep.subr.bf16.mxu0 0
        %5070 = vmatpush1.bf16.xpose.msra.mxu0 %v5044
        %5071 = vmatprep.subr.bf16.mxu0 0
        %5072 = vmatpush1.bf16.xpose.msra.mxu0 0
        %5073 = vmatprep.subr.bf16.mxu0 0
        %5074 = vmatpush1.bf16.xpose.msra.mxu0 0
        %5075 = vmatprep.subr.bf16.mxu0 0
        %5076 = vmatpush1.bf16.xpose.msra.mxu0 0
        %5077 = vmatprep.subr.bf16.mxu0 0
        %5078 = vmatpush1.bf16.xpose.msra.mxu0 0
        %5079 = vmatprep.subr.bf16.mxu0 0
        %5080 = vmatpush1.bf16.xpose.msra.mxu0 0
        %5081 = vmatprep.subr.bf16.mxu0 0
        %5082 = vmatpush1.bf16.xpose.msra.mxu0 0
        %5083 = vmatprep.subr.bf16.mxu0 0
        %5084 = vmatpush1.bf16.xpose.msra.mxu0 0
        %5085 = vmatprep.subr.bf16.mxu0 0
        %5086 = vmatpush1.bf16.xpose.msra.mxu0 0
        %5087 = vmatprep.mubr.bf16.mxu0 0
        %5088 = vmatmul.mubr.bf16.gmra.mrb[0].mxu0 %v5036
        %v5089 = vpop.f32.mrb[0].mxu0
        %v5090 = vadd.f32 %v5054, %v5089
        %v5091 = vpop.f32.mrb[0].mxu0
        %v5092 = vpop.f32.mrb[0].mxu0
        %v5093 = vpop.f32.mrb[0].mxu0
        %5094 = vdwg.mxu0
        %v5095 = vmul.f32 %v5090, 0.5
        %v5096 = vtanh.pop %v5095
        %v5097 = vadd.f32 %v5096, 1.0
        %v5098 = vmul.f32 %v5097, 0.5
        %5099 = vst [vmem:[%s524] sm:$0x1] %v5098
        %p5100 = scmp.lt.s32.totalorder %s30, 1
        %s5101 = scalar_select %p5100, %s30, 1
        %s5102 = scalar_lea.vmem %s13, %s5101
        // Predicated region
        $region97: #{cnnnet_forward.1} parent=71 // pred_check
          %p5103 = pneg %p326
        $region98: #{cnnnet_forward.1} parent=71 // pred_check_branch
          %5105 = sbr.rel (%p5103) target = $region100
        $region99: #{cnnnet_forward.1} parent=71 // pred_region
          _
        $region100: #{cnnnet_forward.1} parent=71 // pred_fallthru
          _
      $region72: #{cnnnet_forward.1} parent=5 // pred_fallthru
        _
      %p5106 = scmp.le.s32.totalorder 2, %s25
      // Predicated region
      $region101: #{cnnnet_forward.1} parent=5 // pred_check
        %p5107 = pneg %p5106
      $region102: #{cnnnet_forward.1} parent=5 // pred_check_branch
        %5109 = sbr.rel (%p5107) target = $region104
      $region103: #{cnnnet_forward.1} parent=5 // pred_region
        %s5110 = ssub.s32 %s25, 2
        // Predicated region
        $region105: #{cnnnet_forward.1} parent=103 // pred_check
          %p5111 = pneg %p332
        $region106: #{cnnnet_forward.1} parent=103 // pred_check_branch
          %5113 = sbr.rel (%p5111) target = $region108
        $region107: #{cnnnet_forward.1} parent=103 // pred_region
          %p5114 = scmp.lt.s32.totalorder %s31, 1
          %s5115 = scalar_select %p5114, %s31, 1
          %s5116 = scalar_lea.vmem %s13, %s5115
        $region108: #{cnnnet_forward.1} parent=103 // pred_fallthru
          _
      $region104: #{cnnnet_forward.1} parent=5 // pred_fallthru
        _
    $region6: #{cnnnet_forward.1} parent=1 // loop_footer
      %s29 = sadd.s32 1, %s25
    $region7: #{cnnnet_forward.1} parent=1 // loop_footer_branch
      %24 = sbr.rel target = $region3
    $region8: #{cnnnet_forward.1} parent=1 // loop_exit
      _
    %5117 = vsyncpa [#allocation4], 1
    %s5118 = scalar_lea.sflag [#allocation4], 1
    %5119 = vsyncpa %s5118, 1
    %5120 = vsyncpa [#allocation6], 1
    %5121 = vsyncpa [#allocation9], 1
    %5122 = vsyncpa [#allocation12], 1

</llo_original>
